<compile_context>
chip_gen: v7x
topology: tpu7x:2x2x1
jax: 0.10.0
libtpu: 0.0.40
codegen_flags: <defaults>
</compile_context>

<pallas_src>
import functools

import jax
import jax.numpy as jnp
from jax.experimental import pallas as pl
from jax.experimental.pallas import tpu as pltpu


# ----------------------------------------------------------------------------
# Kernel 1: fused conv stack (+ReLU) + LSTM input projection.
# ----------------------------------------------------------------------------
def _make_tcn_proj_kernel(n_layers, K, L, cins, couts):
    pad_l = (K - 1) // 2

    def kernel(*refs):
        x_ref = refs[0]
        layer_refs = refs[1:1 + 2 * n_layers]
        wih_ref = refs[1 + 2 * n_layers]
        bl_ref = refs[2 + 2 * n_layers]
        o_ref = refs[3 + 2 * n_layers]
        buf = refs[4 + 2 * n_layers]          # (L+K-1, Cmax) f32 halo scratch

        # Zero once; only interior rows [pad_l, pad_l+L) are ever rewritten,
        # so the 'same'-padding halo stays zero for every layer.
        buf[...] = jnp.zeros_like(buf)
        buf[pl.ds(pad_l, L), 0:cins[0]] = x_ref[0]

        act = None
        for li in range(n_layers):            # static unroll over layers
            w_ref = layer_refs[2 * li]         # (K*Ci, Co)  bf16
            b_ref = layer_refs[2 * li + 1]     # (1, Co)     f32
            ci = cins[li]
            # im2col: fold the K taps into a single matmul with contraction K*Ci.
            slab = jnp.concatenate(
                [buf[pl.ds(k, L), 0:ci] for k in range(K)], axis=-1)
            acc = jnp.dot(slab.astype(jnp.bfloat16), w_ref[...],
                          preferred_element_type=jnp.float32)
            act = jnp.maximum(acc + b_ref[0], 0.0)          # ReLU
            if li + 1 < n_layers:
                buf[pl.ds(pad_l, L), 0:couts[li]] = act

        # Hoisted LSTM input projection: gates_x = h_conv @ W_ih + b_lstm.
        gx = jnp.dot(act.astype(jnp.bfloat16), wih_ref[...],
                     preferred_element_type=jnp.float32) + bl_ref[0]
        o_ref[0] = gx

    return kernel


def tcn_lstm_proj_forward(x, tcn_params, w_ih, b_lstm):
    """x: (B, L, Cin0) f32; tcn_params: [(w (K,Ci,Co), b (1,Co)), ...];
    w_ih: (Hconv, 4H); b_lstm: (1, 4H).  Returns gates_x (B, L, 4H) f32."""
    B, L, Cin0 = x.shape
    n_layers = len(tcn_params)
    K = tcn_params[0][0].shape[0]
    cins = [w.shape[1] for w, _ in tcn_params]
    couts = [w.shape[2] for w, _ in tcn_params]
    cmax = max(cins)
    G = w_ih.shape[1]                                   # 4H

    flat_inputs = [x]
    in_specs = [pl.BlockSpec((1, L, Cin0), lambda bi: (bi, 0, 0))]
    for w, b in tcn_params:
        kci, co = w.shape[0] * w.shape[1], w.shape[2]
        flat_inputs.append(w.reshape(kci, co).astype(jnp.bfloat16))
        in_specs.append(pl.BlockSpec((kci, co), lambda bi: (0, 0)))
        flat_inputs.append(b)
        in_specs.append(pl.BlockSpec((1, co), lambda bi: (0, 0)))
    flat_inputs.append(w_ih.astype(jnp.bfloat16))
    in_specs.append(pl.BlockSpec(w_ih.shape, lambda bi: (0, 0)))
    flat_inputs.append(b_lstm)
    in_specs.append(pl.BlockSpec(b_lstm.shape, lambda bi: (0, 0)))

    kernel = _make_tcn_proj_kernel(n_layers, K, L, cins, couts)
    return pl.pallas_call(
        kernel,
        out_shape=jax.ShapeDtypeStruct((B, L, G), jnp.float32),
        grid=(B,),
        in_specs=in_specs,
        out_specs=pl.BlockSpec((1, L, G), lambda bi: (bi, 0, 0)),
        scratch_shapes=[pltpu.VMEM((L + K - 1, cmax), jnp.float32)],
        compiler_params=pltpu.CompilerParams(dimension_semantics=("parallel",)),
    )(*flat_inputs)


# ----------------------------------------------------------------------------
# Kernel 2: time-chunked LSTM recurrence fused with the decoder
#           (Linear + log_softmax), h/c persist in VMEM across grid steps.
# ----------------------------------------------------------------------------
def _lstm_decoder_kernel(gx_ref, whh_ref, wdec_ref, bdec_ref, o_ref,
                         h_scr, c_scr, hbuf):
    ci = pl.program_id(0)

    @pl.when(ci == 0)
    def _():
        h_scr[...] = jnp.zeros_like(h_scr)
        c_scr[...] = jnp.zeros_like(c_scr)

    Tc, Bp, _ = gx_ref.shape
    H = whh_ref.shape[0]
    C = wdec_ref.shape[1]

    def step(t, carry):
        # Only the recurrent half of the gate matmul runs per step.
        gates = gx_ref[t] + jnp.dot(h_scr[...].astype(jnp.bfloat16),
                                    whh_ref[...],
                                    preferred_element_type=jnp.float32)
        # TODO(synk): for production H, pad H to a multiple of 128 so the gate
        # slices below land on lane boundaries.
        i_g = jax.nn.sigmoid(gates[:, 0:H])
        f_g = jax.nn.sigmoid(gates[:, H:2 * H])
        g_g = jnp.tanh(gates[:, 2 * H:3 * H])
        o_g = jax.nn.sigmoid(gates[:, 3 * H:4 * H])
        c_new = f_g * c_scr[...] + i_g * g_g
        h_new = o_g * jnp.tanh(c_new)
        c_scr[...] = c_new
        h_scr[...] = h_new
        hbuf[t] = h_new.astype(hbuf.dtype)
        return carry

    unroll = True if Tc <= 32 else 8
    jax.lax.fori_loop(0, Tc, step, 0, unroll=unroll)

    # Fused decoder on the whole chunk: one MXU-friendly (Tc*Bp, H) matmul.
    hc = hbuf[...].reshape(Tc * Bp, H)
    logits = jnp.dot(hc, wdec_ref[...],
                     preferred_element_type=jnp.float32) + bdec_ref[0]
    m = jnp.max(logits, axis=-1, keepdims=True)
    z = logits - m
    lse = jnp.log(jnp.sum(jnp.exp(z), axis=-1, keepdims=True))
    o_ref[...] = (z - lse).reshape(Tc, Bp, C)


def lstm_decoder_forward(gx_t, w_hh, w_dec, b_dec, tc):
    """gx_t: (L, Bp, 4H) time-major gate pre-activations; returns (L, Bp, C)."""
    L, Bp, G = gx_t.shape
    H = w_hh.shape[0]
    C = w_dec.shape[1]
    n_chunks = L // tc
    return pl.pallas_call(
        _lstm_decoder_kernel,
        out_shape=jax.ShapeDtypeStruct((L, Bp, C), jnp.float32),
        grid=(n_chunks,),
        in_specs=[
            pl.BlockSpec((tc, Bp, G), lambda t: (t, 0, 0)),
            pl.BlockSpec((H, 4 * H), lambda t: (0, 0)),
            pl.BlockSpec((H, C), lambda t: (0, 0)),
            pl.BlockSpec((1, C), lambda t: (0, 0)),
        ],
        out_specs=pl.BlockSpec((tc, Bp, C), lambda t: (t, 0, 0)),
        scratch_shapes=[
            pltpu.VMEM((Bp, H), jnp.float32),        # h state (persists)
            pltpu.VMEM((Bp, H), jnp.float32),        # c state (persists)
            pltpu.VMEM((tc, Bp, H), jnp.bfloat16),   # hidden states of chunk
        ],
        compiler_params=pltpu.CompilerParams(
            dimension_semantics=("arbitrary",)),
    )(gx_t, w_hh.astype(jnp.bfloat16), w_dec.astype(jnp.bfloat16), b_dec)


def _pick_time_chunk(L, max_chunk=128):
    """Largest divisor of L that is <= max_chunk (prefer multiples of 8)."""
    best = 1
    for tc in range(1, min(L, max_chunk) + 1):
        if L % tc == 0:
            best = tc
    return best


# ----------------------------------------------------------------------------
# Parameter construction (deterministic, synthetic) and full forward pass.
# ----------------------------------------------------------------------------
def init_params(key, tcn_p, lstm_p, dec_p):
    # Conv weight layout (K, Cin, Cout); PyTorch Conv1d is (Cout, Cin, K) --
    # transpose(2,1,0) when importing trained weights.
    params = {"tcn": [], "lstm": {}, "dec": {}}
    cin = tcn_p["in_channels"]
    for _ in range(tcn_p["n_layers"]):
        key, kw, kb = jax.random.split(key, 3)
        w = 0.1 * jax.random.normal(
            kw, (tcn_p["kernel_size"], cin, tcn_p["out_channels"]), jnp.float32)
        b = 0.1 * jax.random.normal(kb, (1, tcn_p["out_channels"]), jnp.float32)
        params["tcn"].append((w, b))
        cin = tcn_p["out_channels"]

    H, Hin = lstm_p["hidden_size"], lstm_p["input_size"]
    key, k1, k2, k3 = jax.random.split(key, 4)
    params["lstm"] = {
        "w_ih": 0.1 * jax.random.normal(k1, (Hin, 4 * H), jnp.float32),
        "w_hh": 0.1 * jax.random.normal(k2, (H, 4 * H), jnp.float32),
        # single bias == PyTorch b_ih + b_hh
        "b": 0.1 * jax.random.normal(k3, (1, 4 * H), jnp.float32),
    }

    key, kw, kb = jax.random.split(key, 3)
    params["dec"] = {
        "w": 0.1 * jax.random.normal(
            kw, (dec_p["input_size"], dec_p["n_classes"]), jnp.float32),
        "b": 0.1 * jax.random.normal(kb, (1, dec_p["n_classes"]), jnp.float32),
    }
    return params


@jax.jit
def network_forward(params, input_sequence_ncl):
    """input_sequence_ncl: [B, input_dim, seq_len] (PyTorch NCL convention).
    Returns log-probabilities [B, seq_len, n_classes]."""
    x = jnp.transpose(input_sequence_ncl, (0, 2, 1)).astype(jnp.float32)  # NLC
    B, L, _ = x.shape

    # Fused TCN stack + hoisted LSTM input projection -> (B, L, 4H).
    gx = tcn_lstm_proj_forward(x, params["tcn"], params["lstm"]["w_ih"],
                               params["lstm"]["b"])

    # Pad batch to >= 8 rows so the recurrent matmul fills the MXU sublanes,
    # and go time-major so per-timestep reads are cheap leading-axis loads.
    Bp = max(8, ((B + 7) // 8) * 8)
    gx = jnp.pad(gx, ((0, Bp - B), (0, 0), (0, 0)))
    gx_t = jnp.transpose(gx, (1, 0, 2))                 # (L, Bp, 4H)

    tc = _pick_time_chunk(L)
    logp_t = lstm_decoder_forward(gx_t, params["lstm"]["w_hh"],
                                  params["dec"]["w"], params["dec"]["b"], tc)
    return jnp.transpose(logp_t, (1, 0, 2))[:B]         # [B, seq_len, n_classes]


if __name__ == "__main__":
    batch, in_dim, seq_len = 2, 4, 16
    hidden, n_classes = 32, 5

    TCN_parameters = {"in_channels": in_dim, "out_channels": hidden,
                      "kernel_size": 3, "n_layers": 2}
    LSTM_parameters = {"input_size": hidden, "hidden_size": hidden}
    decoder_parameters = {"input_size": hidden, "n_classes": n_classes}

    key = jax.random.PRNGKey(0)
    key, kx = jax.random.split(key)
    params = init_params(key, TCN_parameters, LSTM_parameters,
                         decoder_parameters)
    x = jax.random.normal(kx, (batch, in_dim, seq_len), jnp.float32)

    out = network_forward(params, x)
    jax.block_until_ready(out)
    assert out.shape == (batch, seq_len, n_classes)
    print("KERNEL_OK")
</pallas_src>

<mosaic_0001>
module attributes {stable_mosaic.version = 11 : i64} {
  func.func @kernel(%arg0: i32, %arg1: memref<1x16x4xf32, #tpu.memory_space<vmem>>, %arg2: memref<12x32xbf16, #tpu.memory_space<vmem>>, %arg3: memref<1x32xf32, #tpu.memory_space<vmem>>, %arg4: memref<96x32xbf16, #tpu.memory_space<vmem>>, %arg5: memref<1x32xf32, #tpu.memory_space<vmem>>, %arg6: memref<32x128xbf16, #tpu.memory_space<vmem>>, %arg7: memref<1x128xf32, #tpu.memory_space<vmem>>, %arg8: memref<1x16x128xf32, #tpu.memory_space<vmem>>, %arg9: memref<18x32xf32, #tpu.memory_space<vmem>>) attributes {dimension_semantics = [#tpu.dimension_semantics<parallel>], iteration_bounds = array<i64: 2>, scalar_prefetch = 0 : i64, scratch_operands = 1 : i64, tpu.core_type = #tpu.core_type<tc>, window_params = [{transform_indices = @transform_0, window_bounds = array<i64: 1, 16, 4>}, {pipeline_mode = #tpu.pipeline_mode<synchronous>, transform_indices = @transform_1, window_bounds = array<i64: 12, 32>}, {pipeline_mode = #tpu.pipeline_mode<synchronous>, transform_indices = @transform_2, window_bounds = array<i64: 1, 32>}, {pipeline_mode = #tpu.pipeline_mode<synchronous>, transform_indices = @transform_3, window_bounds = array<i64: 96, 32>}, {pipeline_mode = #tpu.pipeline_mode<synchronous>, transform_indices = @transform_4, window_bounds = array<i64: 1, 32>}, {pipeline_mode = #tpu.pipeline_mode<synchronous>, transform_indices = @transform_5, window_bounds = array<i64: 32, 128>}, {pipeline_mode = #tpu.pipeline_mode<synchronous>, transform_indices = @transform_6, window_bounds = array<i64: 1, 128>}, {transform_indices = @transform_7, window_bounds = array<i64: 1, 16, 128>}]} {
    %cst = arith.constant 0.000000e+00 : f32
    %0 = vector.broadcast %cst : f32 to vector<18x32xf32>
    %c0 = arith.constant 0 : index
    %c0_0 = arith.constant 0 : index
    %1 = vector.load %arg9[%c0, %c0_0] : memref<18x32xf32, #tpu.memory_space<vmem>>, vector<18x32xf32>
    tpu.vector_store %arg9[%c0, %c0_0], %0 {strides = array<i32>} : memref<18x32xf32, #tpu.memory_space<vmem>>, vector<18x32xf32>,
    %c0_1 = arith.constant 0 : index
    %c0_2 = arith.constant 0 : index
    %c0_3 = arith.constant 0 : index
    %2 = vector.load %arg1[%c0_1, %c0_2, %c0_3] : memref<1x16x4xf32, #tpu.memory_space<vmem>>, vector<1x16x4xf32>
    %3 = vector.shape_cast %2 : vector<1x16x4xf32> to vector<16x4xf32>
    %c1 = arith.constant 1 : index
    %c0_4 = arith.constant 0 : index
    %4 = vector.load %arg9[%c1, %c0_4] : memref<18x32xf32, #tpu.memory_space<vmem>>, vector<16x4xf32>
    tpu.vector_store %arg9[%c1, %c0_4], %3 {strides = array<i32>} : memref<18x32xf32, #tpu.memory_space<vmem>>, vector<16x4xf32>,
    %c0_5 = arith.constant 0 : index
    %c0_6 = arith.constant 0 : index
    %5 = vector.load %arg9[%c0_5, %c0_6] : memref<18x32xf32, #tpu.memory_space<vmem>>, vector<16x4xf32>
    %c1_7 = arith.constant 1 : index
    %c0_8 = arith.constant 0 : index
    %6 = vector.load %arg9[%c1_7, %c0_8] : memref<18x32xf32, #tpu.memory_space<vmem>>, vector<16x4xf32>
    %c2 = arith.constant 2 : index
    %c0_9 = arith.constant 0 : index
    %7 = vector.load %arg9[%c2, %c0_9] : memref<18x32xf32, #tpu.memory_space<vmem>>, vector<16x4xf32>
    %8 = tpu.concatenate %5, %6, %7 in 1 : vector<16x4xf32>, vector<16x4xf32>, vector<16x4xf32> -> vector<16x12xf32>
    %9 = arith.truncf %8 : vector<16x12xf32> to vector<16x12xbf16>
    %c0_10 = arith.constant 0 : index
    %c0_11 = arith.constant 0 : index
    %10 = vector.load %arg2[%c0_10, %c0_11] : memref<12x32xbf16, #tpu.memory_space<vmem>>, vector<12x32xbf16>
    %cst_12 = arith.constant dense<0.000000e+00> : vector<16x32xf32>
    %11 = tpu.matmul %9, %10, %cst_12 {dimension_numbers = #tpu.dot_dimension_numbers<[1], [0], [0], [1], [0, 0, 1, 1], [], []>} : vector<16x12xbf16>, vector<12x32xbf16>, vector<16x32xf32> -> vector<16x32xf32>
    %c0_13 = arith.constant 0 : index
    %c0_14 = arith.constant 0 : index
    %12 = vector.load %arg3[%c0_13, %c0_14] : memref<1x32xf32, #tpu.memory_space<vmem>>, vector<1x32xf32>
    %13 = vector.shape_cast %12 : vector<1x32xf32> to vector<32xf32>
    %14 = vector.shape_cast %13 : vector<32xf32> to vector<1x32xf32>
    %15 = vector.broadcast %14 : vector<1x32xf32> to vector<16x32xf32>
    %16 = arith.addf %11, %15 : vector<16x32xf32>
    %cst_15 = arith.constant 0.000000e+00 : f32
    %17 = vector.broadcast %cst_15 : f32 to vector<16x32xf32>
    %18 = arith.maximumf %16, %17 : vector<16x32xf32>
    %c1_16 = arith.constant 1 : index
    %c0_17 = arith.constant 0 : index
    %19 = vector.load %arg9[%c1_16, %c0_17] : memref<18x32xf32, #tpu.memory_space<vmem>>, vector<16x32xf32>
    tpu.vector_store %arg9[%c1_16, %c0_17], %18 {strides = array<i32>} : memref<18x32xf32, #tpu.memory_space<vmem>>, vector<16x32xf32>,
    %c0_18 = arith.constant 0 : index
    %c0_19 = arith.constant 0 : index
    %20 = vector.load %arg9[%c0_18, %c0_19] : memref<18x32xf32, #tpu.memory_space<vmem>>, vector<16x32xf32>
    %c1_20 = arith.constant 1 : index
    %c0_21 = arith.constant 0 : index
    %21 = vector.load %arg9[%c1_20, %c0_21] : memref<18x32xf32, #tpu.memory_space<vmem>>, vector<16x32xf32>
    %c2_22 = arith.constant 2 : index
    %c0_23 = arith.constant 0 : index
    %22 = vector.load %arg9[%c2_22, %c0_23] : memref<18x32xf32, #tpu.memory_space<vmem>>, vector<16x32xf32>
    %23 = tpu.concatenate %20, %21, %22 in 1 : vector<16x32xf32>, vector<16x32xf32>, vector<16x32xf32> -> vector<16x96xf32>
    %24 = arith.truncf %23 : vector<16x96xf32> to vector<16x96xbf16>
    %c0_24 = arith.constant 0 : index
    %c0_25 = arith.constant 0 : index
    %25 = vector.load %arg4[%c0_24, %c0_25] : memref<96x32xbf16, #tpu.memory_space<vmem>>, vector<96x32xbf16>
    %cst_26 = arith.constant dense<0.000000e+00> : vector<16x32xf32>
    %26 = tpu.matmul %24, %25, %cst_26 {dimension_numbers = #tpu.dot_dimension_numbers<[1], [0], [0], [1], [0, 0, 1, 1], [], []>} : vector<16x96xbf16>, vector<96x32xbf16>, vector<16x32xf32> -> vector<16x32xf32>
    %c0_27 = arith.constant 0 : index
    %c0_28 = arith.constant 0 : index
    %27 = vector.load %arg5[%c0_27, %c0_28] : memref<1x32xf32, #tpu.memory_space<vmem>>, vector<1x32xf32>
    %28 = vector.shape_cast %27 : vector<1x32xf32> to vector<32xf32>
    %29 = vector.shape_cast %28 : vector<32xf32> to vector<1x32xf32>
    %30 = vector.broadcast %29 : vector<1x32xf32> to vector<16x32xf32>
    %31 = arith.addf %26, %30 : vector<16x32xf32>
    %cst_29 = arith.constant 0.000000e+00 : f32
    %32 = vector.broadcast %cst_29 : f32 to vector<16x32xf32>
    %33 = arith.maximumf %31, %32 : vector<16x32xf32>
    %34 = arith.truncf %33 : vector<16x32xf32> to vector<16x32xbf16>
    %c0_30 = arith.constant 0 : index
    %c0_31 = arith.constant 0 : index
    %35 = vector.load %arg6[%c0_30, %c0_31] : memref<32x128xbf16, #tpu.memory_space<vmem>>, vector<32x128xbf16>
    %cst_32 = arith.constant dense<0.000000e+00> : vector<16x128xf32>
    %36 = tpu.matmul %34, %35, %cst_32 {dimension_numbers = #tpu.dot_dimension_numbers<[1], [0], [0], [1], [0, 0, 1, 1], [], []>} : vector<16x32xbf16>, vector<32x128xbf16>, vector<16x128xf32> -> vector<16x128xf32>
    %c0_33 = arith.constant 0 : index
    %c0_34 = arith.constant 0 : index
    %37 = vector.load %arg7[%c0_33, %c0_34] : memref<1x128xf32, #tpu.memory_space<vmem>>, vector<1x128xf32>
    %38 = vector.shape_cast %37 : vector<1x128xf32> to vector<128xf32>
    %39 = vector.shape_cast %38 : vector<128xf32> to vector<1x128xf32>
    %40 = vector.broadcast %39 : vector<1x128xf32> to vector<16x128xf32>
    %41 = arith.addf %36, %40 : vector<16x128xf32>
    %c0_35 = arith.constant 0 : index
    %c0_36 = arith.constant 0 : index
    %c0_37 = arith.constant 0 : index
    %42 = vector.load %arg8[%c0_35, %c0_36, %c0_37] : memref<1x16x128xf32, #tpu.memory_space<vmem>>, vector<1x16x128xf32>
    %43 = vector.shape_cast %42 : vector<1x16x128xf32> to vector<16x128xf32>
    %44 = vector.shape_cast %41 : vector<16x128xf32> to vector<1x16x128xf32>
    tpu.vector_store %arg8[%c0_35, %c0_36, %c0_37], %44 {strides = array<i32>} : memref<1x16x128xf32, #tpu.memory_space<vmem>>, vector<1x16x128xf32>,
    return
  }
  func.func @transform_0(%arg0: i32) -> (i32, i32, i32) {
    %c0_i32 = arith.constant 0 : i32
    %c0_i32_0 = arith.constant 0 : i32
    %c0_i32_1 = arith.constant 0 : i32
    return %arg0, %c0_i32, %c0_i32_0 : i32, i32, i32
  }
  func.func @transform_1(%arg0: i32) -> (i32, i32) {
    %c0_i32 = arith.constant 0 : i32
    %c0_i32_0 = arith.constant 0 : i32
    %c0_i32_1 = arith.constant 0 : i32
    return %c0_i32, %c0_i32_0 : i32, i32
  }
  func.func @transform_2(%arg0: i32) -> (i32, i32) {
    %c0_i32 = arith.constant 0 : i32
    %c0_i32_0 = arith.constant 0 : i32
    %c0_i32_1 = arith.constant 0 : i32
    return %c0_i32, %c0_i32_0 : i32, i32
  }
  func.func @transform_3(%arg0: i32) -> (i32, i32) {
    %c0_i32 = arith.constant 0 : i32
    %c0_i32_0 = arith.constant 0 : i32
    %c0_i32_1 = arith.constant 0 : i32
    return %c0_i32, %c0_i32_0 : i32, i32
  }
  func.func @transform_4(%arg0: i32) -> (i32, i32) {
    %c0_i32 = arith.constant 0 : i32
    %c0_i32_0 = arith.constant 0 : i32
    %c0_i32_1 = arith.constant 0 : i32
    return %c0_i32, %c0_i32_0 : i32, i32
  }
  func.func @transform_5(%arg0: i32) -> (i32, i32) {
    %c0_i32 = arith.constant 0 : i32
    %c0_i32_0 = arith.constant 0 : i32
    %c0_i32_1 = arith.constant 0 : i32
    return %c0_i32, %c0_i32_0 : i32, i32
  }
  func.func @transform_6(%arg0: i32) -> (i32, i32) {
    %c0_i32 = arith.constant 0 : i32
    %c0_i32_0 = arith.constant 0 : i32
    %c0_i32_1 = arith.constant 0 : i32
    return %c0_i32, %c0_i32_0 : i32, i32
  }
  func.func @transform_7(%arg0: i32) -> (i32, i32, i32) {
    %c0_i32 = arith.constant 0 : i32
    %c0_i32_0 = arith.constant 0 : i32
    %c0_i32_1 = arith.constant 0 : i32
    return %arg0, %c0_i32, %c0_i32_0 : i32, i32, i32
  }
}

module attributes {stable_mosaic.version = 11 : i64} {
  func.func @_lstm_decoder_kernel(%arg0: i32, %arg1: memref<16x8x128xf32, #tpu.memory_space<vmem>>, %arg2: memref<32x128xbf16, #tpu.memory_space<vmem>>, %arg3: memref<32x5xbf16, #tpu.memory_space<vmem>>, %arg4: memref<1x5xf32, #tpu.memory_space<vmem>>, %arg5: memref<16x8x5xf32, #tpu.memory_space<vmem>>, %arg6: memref<8x32xf32, #tpu.memory_space<vmem>>, %arg7: memref<8x32xf32, #tpu.memory_space<vmem>>, %arg8: memref<16x8x32xbf16, #tpu.memory_space<vmem>>) attributes {dimension_semantics = [#tpu.dimension_semantics<arbitrary>], iteration_bounds = array<i64: 1>, scalar_prefetch = 0 : i64, scratch_operands = 3 : i64, tpu.core_type = #tpu.core_type<tc>, window_params = [{transform_indices = @transform_0, window_bounds = array<i64: 16, 8, 128>}, {pipeline_mode = #tpu.pipeline_mode<synchronous>, transform_indices = @transform_1, window_bounds = array<i64: 32, 128>}, {pipeline_mode = #tpu.pipeline_mode<synchronous>, transform_indices = @transform_2, window_bounds = array<i64: 32, 5>}, {pipeline_mode = #tpu.pipeline_mode<synchronous>, transform_indices = @transform_3, window_bounds = array<i64: 1, 5>}, {transform_indices = @transform_4, window_bounds = array<i64: 16, 8, 5>}]} {
    %c0_i32 = arith.constant 0 : i32
    %0 = arith.cmpi eq, %arg0, %c0_i32 : i32
    %1 = arith.extui %0 : i1 to i32
    %c0_i32_0 = arith.constant 0 : i32
    %2 = arith.cmpi ne, %1, %c0_i32_0 : i32
    scf.if %2 {
      %cst_301 = arith.constant 0.000000e+00 : f32
      %680 = vector.broadcast %cst_301 : f32 to vector<8x32xf32>
      %c0_302 = arith.constant 0 : index
      %c0_303 = arith.constant 0 : index
      %681 = vector.load %arg6[%c0_302, %c0_303] : memref<8x32xf32, #tpu.memory_space<vmem>>, vector<8x32xf32>
      tpu.vector_store %arg6[%c0_302, %c0_303], %680 {strides = array<i32>} : memref<8x32xf32, #tpu.memory_space<vmem>>, vector<8x32xf32>,
      %cst_304 = arith.constant 0.000000e+00 : f32
      %682 = vector.broadcast %cst_304 : f32 to vector<8x32xf32>
      %c0_305 = arith.constant 0 : index
      %c0_306 = arith.constant 0 : index
      %683 = vector.load %arg7[%c0_305, %c0_306] : memref<8x32xf32, #tpu.memory_space<vmem>>, vector<8x32xf32>
      tpu.vector_store %arg7[%c0_305, %c0_306], %682 {strides = array<i32>} : memref<8x32xf32, #tpu.memory_space<vmem>>, vector<8x32xf32>,
    } else {
    }
    %c0_i32_1 = arith.constant 0 : i32
    %3 = arith.index_cast %c0_i32_1 : i32 to index
    %c0 = arith.constant 0 : index
    %c0_2 = arith.constant 0 : index
    %4 = vector.load %arg1[%3, %c0, %c0_2] : memref<16x8x128xf32, #tpu.memory_space<vmem>>, vector<1x8x128xf32>
    %5 = vector.shape_cast %4 : vector<1x8x128xf32> to vector<8x128xf32>
    %c0_3 = arith.constant 0 : index
    %c0_4 = arith.constant 0 : index
    %6 = vector.load %arg6[%c0_3, %c0_4] : memref<8x32xf32, #tpu.memory_space<vmem>>, vector<8x32xf32>
    %7 = arith.truncf %6 : vector<8x32xf32> to vector<8x32xbf16>
    %c0_5 = arith.constant 0 : index
    %c0_6 = arith.constant 0 : index
    %8 = vector.load %arg2[%c0_5, %c0_6] : memref<32x128xbf16, #tpu.memory_space<vmem>>, vector<32x128xbf16>
    %cst = arith.constant dense<0.000000e+00> : vector<8x128xf32>
    %9 = tpu.matmul %7, %8, %cst {dimension_numbers = #tpu.dot_dimension_numbers<[1], [0], [0], [1], [0, 0, 1, 1], [], []>} : vector<8x32xbf16>, vector<32x128xbf16>, vector<8x128xf32> -> vector<8x128xf32>
    %10 = arith.addf %5, %9 : vector<8x128xf32>
    %11 = vector.extract_strided_slice %10 {offsets = [0, 0], sizes = [8, 32], strides = [1, 1]} : vector<8x128xf32> to vector<8x32xf32>
    %12 = arith.negf %11 : vector<8x32xf32>
    %13 = math.exp %12 : vector<8x32xf32>
    %cst_7 = arith.constant 1.000000e+00 : f32
    %14 = vector.broadcast %cst_7 : f32 to vector<8x32xf32>
    %15 = arith.addf %14, %13 : vector<8x32xf32>
    %16 = arith.divf %14, %15 : vector<8x32xf32>
    %17 = vector.extract_strided_slice %10 {offsets = [0, 32], sizes = [8, 32], strides = [1, 1]} : vector<8x128xf32> to vector<8x32xf32>
    %18 = arith.negf %17 : vector<8x32xf32>
    %19 = math.exp %18 : vector<8x32xf32>
    %cst_8 = arith.constant 1.000000e+00 : f32
    %20 = vector.broadcast %cst_8 : f32 to vector<8x32xf32>
    %21 = arith.addf %20, %19 : vector<8x32xf32>
    %22 = arith.divf %20, %21 : vector<8x32xf32>
    %23 = vector.extract_strided_slice %10 {offsets = [0, 64], sizes = [8, 32], strides = [1, 1]} : vector<8x128xf32> to vector<8x32xf32>
    %24 = math.tanh %23 : vector<8x32xf32>
    %25 = vector.extract_strided_slice %10 {offsets = [0, 96], sizes = [8, 32], strides = [1, 1]} : vector<8x128xf32> to vector<8x32xf32>
    %26 = arith.negf %25 : vector<8x32xf32>
    %27 = math.exp %26 : vector<8x32xf32>
    %cst_9 = arith.constant 1.000000e+00 : f32
    %28 = vector.broadcast %cst_9 : f32 to vector<8x32xf32>
    %29 = arith.addf %28, %27 : vector<8x32xf32>
    %30 = arith.divf %28, %29 : vector<8x32xf32>
    %c0_10 = arith.constant 0 : index
    %c0_11 = arith.constant 0 : index
    %31 = vector.load %arg7[%c0_10, %c0_11] : memref<8x32xf32, #tpu.memory_space<vmem>>, vector<8x32xf32>
    %32 = arith.mulf %22, %31 : vector<8x32xf32>
    %33 = arith.mulf %16, %24 : vector<8x32xf32>
    %34 = arith.addf %32, %33 : vector<8x32xf32>
    %35 = math.tanh %34 : vector<8x32xf32>
    %36 = arith.mulf %30, %35 : vector<8x32xf32>
    %c0_12 = arith.constant 0 : index
    %c0_13 = arith.constant 0 : index
    %37 = vector.load %arg7[%c0_12, %c0_13] : memref<8x32xf32, #tpu.memory_space<vmem>>, vector<8x32xf32>
    tpu.vector_store %arg7[%c0_12, %c0_13], %34 {strides = array<i32>} : memref<8x32xf32, #tpu.memory_space<vmem>>, vector<8x32xf32>,
    %c0_14 = arith.constant 0 : index
    %c0_15 = arith.constant 0 : index
    %38 = vector.load %arg6[%c0_14, %c0_15] : memref<8x32xf32, #tpu.memory_space<vmem>>, vector<8x32xf32>
    tpu.vector_store %arg6[%c0_14, %c0_15], %36 {strides = array<i32>} : memref<8x32xf32, #tpu.memory_space<vmem>>, vector<8x32xf32>,
    %39 = arith.truncf %36 : vector<8x32xf32> to vector<8x32xbf16>
    %40 = arith.index_cast %c0_i32_1 : i32 to index
    %c0_16 = arith.constant 0 : index
    %c0_17 = arith.constant 0 : index
    %41 = vector.load %arg8[%40, %c0_16, %c0_17] : memref<16x8x32xbf16, #tpu.memory_space<vmem>>, vector<1x8x32xbf16>
    %42 = vector.shape_cast %41 : vector<1x8x32xbf16> to vector<8x32xbf16>
    %43 = vector.shape_cast %39 : vector<8x32xbf16> to vector<1x8x32xbf16>
    tpu.vector_store %arg8[%40, %c0_16, %c0_17], %43 {strides = array<i32>} : memref<16x8x32xbf16, #tpu.memory_space<vmem>>, vector<1x8x32xbf16>,
    %c1_i32 = arith.constant 1 : i32
    %44 = arith.index_cast %c1_i32 : i32 to index
    %c0_18 = arith.constant 0 : index
    %c0_19 = arith.constant 0 : index
    %45 = vector.load %arg1[%44, %c0_18, %c0_19] : memref<16x8x128xf32, #tpu.memory_space<vmem>>, vector<1x8x128xf32>
    %46 = vector.shape_cast %45 : vector<1x8x128xf32> to vector<8x128xf32>
    %c0_20 = arith.constant 0 : index
    %c0_21 = arith.constant 0 : index
    %47 = vector.load %arg6[%c0_20, %c0_21] : memref<8x32xf32, #tpu.memory_space<vmem>>, vector<8x32xf32>
    %48 = arith.truncf %47 : vector<8x32xf32> to vector<8x32xbf16>
    %c0_22 = arith.constant 0 : index
    %c0_23 = arith.constant 0 : index
    %49 = vector.load %arg2[%c0_22, %c0_23] : memref<32x128xbf16, #tpu.memory_space<vmem>>, vector<32x128xbf16>
    %cst_24 = arith.constant dense<0.000000e+00> : vector<8x128xf32>
    %50 = tpu.matmul %48, %49, %cst_24 {dimension_numbers = #tpu.dot_dimension_numbers<[1], [0], [0], [1], [0, 0, 1, 1], [], []>} : vector<8x32xbf16>, vector<32x128xbf16>, vector<8x128xf32> -> vector<8x128xf32>
    %51 = arith.addf %46, %50 : vector<8x128xf32>
    %52 = vector.extract_strided_slice %51 {offsets = [0, 0], sizes = [8, 32], strides = [1, 1]} : vector<8x128xf32> to vector<8x32xf32>
    %53 = arith.negf %52 : vector<8x32xf32>
    %54 = math.exp %53 : vector<8x32xf32>
    %cst_25 = arith.constant 1.000000e+00 : f32
    %55 = vector.broadcast %cst_25 : f32 to vector<8x32xf32>
    %56 = arith.addf %55, %54 : vector<8x32xf32>
    %57 = arith.divf %55, %56 : vector<8x32xf32>
    %58 = vector.extract_strided_slice %51 {offsets = [0, 32], sizes = [8, 32], strides = [1, 1]} : vector<8x128xf32> to vector<8x32xf32>
    %59 = arith.negf %58 : vector<8x32xf32>
    %60 = math.exp %59 : vector<8x32xf32>
    %cst_26 = arith.constant 1.000000e+00 : f32
    %61 = vector.broadcast %cst_26 : f32 to vector<8x32xf32>
    %62 = arith.addf %61, %60 : vector<8x32xf32>
    %63 = arith.divf %61, %62 : vector<8x32xf32>
    %64 = vector.extract_strided_slice %51 {offsets = [0, 64], sizes = [8, 32], strides = [1, 1]} : vector<8x128xf32> to vector<8x32xf32>
    %65 = math.tanh %64 : vector<8x32xf32>
    %66 = vector.extract_strided_slice %51 {offsets = [0, 96], sizes = [8, 32], strides = [1, 1]} : vector<8x128xf32> to vector<8x32xf32>
    %67 = arith.negf %66 : vector<8x32xf32>
    %68 = math.exp %67 : vector<8x32xf32>
    %cst_27 = arith.constant 1.000000e+00 : f32
    %69 = vector.broadcast %cst_27 : f32 to vector<8x32xf32>
    %70 = arith.addf %69, %68 : vector<8x32xf32>
    %71 = arith.divf %69, %70 : vector<8x32xf32>
    %c0_28 = arith.constant 0 : index
    %c0_29 = arith.constant 0 : index
    %72 = vector.load %arg7[%c0_28, %c0_29] : memref<8x32xf32, #tpu.memory_space<vmem>>, vector<8x32xf32>
    %73 = arith.mulf %63, %72 : vector<8x32xf32>
    %74 = arith.mulf %57, %65 : vector<8x32xf32>
    %75 = arith.addf %73, %74 : vector<8x32xf32>
    %76 = math.tanh %75 : vector<8x32xf32>
    %77 = arith.mulf %71, %76 : vector<8x32xf32>
    %c0_30 = arith.constant 0 : index
    %c0_31 = arith.constant 0 : index
    %78 = vector.load %arg7[%c0_30, %c0_31] : memref<8x32xf32, #tpu.memory_space<vmem>>, vector<8x32xf32>
    tpu.vector_store %arg7[%c0_30, %c0_31], %75 {strides = array<i32>} : memref<8x32xf32, #tpu.memory_space<vmem>>, vector<8x32xf32>,
    %c0_32 = arith.constant 0 : index
    %c0_33 = arith.constant 0 : index
    %79 = vector.load %arg6[%c0_32, %c0_33] : memref<8x32xf32, #tpu.memory_space<vmem>>, vector<8x32xf32>
    tpu.vector_store %arg6[%c0_32, %c0_33], %77 {strides = array<i32>} : memref<8x32xf32, #tpu.memory_space<vmem>>, vector<8x32xf32>,
    %80 = arith.truncf %77 : vector<8x32xf32> to vector<8x32xbf16>
    %81 = arith.index_cast %c1_i32 : i32 to index
    %c0_34 = arith.constant 0 : index
    %c0_35 = arith.constant 0 : index
    %82 = vector.load %arg8[%81, %c0_34, %c0_35] : memref<16x8x32xbf16, #tpu.memory_space<vmem>>, vector<1x8x32xbf16>
    %83 = vector.shape_cast %82 : vector<1x8x32xbf16> to vector<8x32xbf16>
    %84 = vector.shape_cast %80 : vector<8x32xbf16> to vector<1x8x32xbf16>
    tpu.vector_store %arg8[%81, %c0_34, %c0_35], %84 {strides = array<i32>} : memref<16x8x32xbf16, #tpu.memory_space<vmem>>, vector<1x8x32xbf16>,
    %c2_i32 = arith.constant 2 : i32
    %85 = arith.index_cast %c2_i32 : i32 to index
    %c0_36 = arith.constant 0 : index
    %c0_37 = arith.constant 0 : index
    %86 = vector.load %arg1[%85, %c0_36, %c0_37] : memref<16x8x128xf32, #tpu.memory_space<vmem>>, vector<1x8x128xf32>
    %87 = vector.shape_cast %86 : vector<1x8x128xf32> to vector<8x128xf32>
    %c0_38 = arith.constant 0 : index
    %c0_39 = arith.constant 0 : index
    %88 = vector.load %arg6[%c0_38, %c0_39] : memref<8x32xf32, #tpu.memory_space<vmem>>, vector<8x32xf32>
    %89 = arith.truncf %88 : vector<8x32xf32> to vector<8x32xbf16>
    %c0_40 = arith.constant 0 : index
    %c0_41 = arith.constant 0 : index
    %90 = vector.load %arg2[%c0_40, %c0_41] : memref<32x128xbf16, #tpu.memory_space<vmem>>, vector<32x128xbf16>
    %cst_42 = arith.constant dense<0.000000e+00> : vector<8x128xf32>
    %91 = tpu.matmul %89, %90, %cst_42 {dimension_numbers = #tpu.dot_dimension_numbers<[1], [0], [0], [1], [0, 0, 1, 1], [], []>} : vector<8x32xbf16>, vector<32x128xbf16>, vector<8x128xf32> -> vector<8x128xf32>
    %92 = arith.addf %87, %91 : vector<8x128xf32>
    %93 = vector.extract_strided_slice %92 {offsets = [0, 0], sizes = [8, 32], strides = [1, 1]} : vector<8x128xf32> to vector<8x32xf32>
    %94 = arith.negf %93 : vector<8x32xf32>
    %95 = math.exp %94 : vector<8x32xf32>
    %cst_43 = arith.constant 1.000000e+00 : f32
    %96 = vector.broadcast %cst_43 : f32 to vector<8x32xf32>
    %97 = arith.addf %96, %95 : vector<8x32xf32>
    %98 = arith.divf %96, %97 : vector<8x32xf32>
    %99 = vector.extract_strided_slice %92 {offsets = [0, 32], sizes = [8, 32], strides = [1, 1]} : vector<8x128xf32> to vector<8x32xf32>
    %100 = arith.negf %99 : vector<8x32xf32>
    %101 = math.exp %100 : vector<8x32xf32>
    %cst_44 = arith.constant 1.000000e+00 : f32
    %102 = vector.broadcast %cst_44 : f32 to vector<8x32xf32>
    %103 = arith.addf %102, %101 : vector<8x32xf32>
    %104 = arith.divf %102, %103 : vector<8x32xf32>
    %105 = vector.extract_strided_slice %92 {offsets = [0, 64], sizes = [8, 32], strides = [1, 1]} : vector<8x128xf32> to vector<8x32xf32>
    %106 = math.tanh %105 : vector<8x32xf32>
    %107 = vector.extract_strided_slice %92 {offsets = [0, 96], sizes = [8, 32], strides = [1, 1]} : vector<8x128xf32> to vector<8x32xf32>
    %108 = arith.negf %107 : vector<8x32xf32>
    %109 = math.exp %108 : vector<8x32xf32>
    %cst_45 = arith.constant 1.000000e+00 : f32
    %110 = vector.broadcast %cst_45 : f32 to vector<8x32xf32>
    %111 = arith.addf %110, %109 : vector<8x32xf32>
    %112 = arith.divf %110, %111 : vector<8x32xf32>
    %c0_46 = arith.constant 0 : index
    %c0_47 = arith.constant 0 : index
    %113 = vector.load %arg7[%c0_46, %c0_47] : memref<8x32xf32, #tpu.memory_space<vmem>>, vector<8x32xf32>
    %114 = arith.mulf %104, %113 : vector<8x32xf32>
    %115 = arith.mulf %98, %106 : vector<8x32xf32>
    %116 = arith.addf %114, %115 : vector<8x32xf32>
    %117 = math.tanh %116 : vector<8x32xf32>
    %118 = arith.mulf %112, %117 : vector<8x32xf32>
    %c0_48 = arith.constant 0 : index
    %c0_49 = arith.constant 0 : index
    %119 = vector.load %arg7[%c0_48, %c0_49] : memref<8x32xf32, #tpu.memory_space<vmem>>, vector<8x32xf32>
    tpu.vector_store %arg7[%c0_48, %c0_49], %116 {strides = array<i32>} : memref<8x32xf32, #tpu.memory_space<vmem>>, vector<8x32xf32>,
    %c0_50 = arith.constant 0 : index
    %c0_51 = arith.constant 0 : index
    %120 = vector.load %arg6[%c0_50, %c0_51] : memref<8x32xf32, #tpu.memory_space<vmem>>, vector<8x32xf32>
    tpu.vector_store %arg6[%c0_50, %c0_51], %118 {strides = array<i32>} : memref<8x32xf32, #tpu.memory_space<vmem>>, vector<8x32xf32>,
    %121 = arith.truncf %118 : vector<8x32xf32> to vector<8x32xbf16>
    %122 = arith.index_cast %c2_i32 : i32 to index
    %c0_52 = arith.constant 0 : index
    %c0_53 = arith.constant 0 : index
    %123 = vector.load %arg8[%122, %c0_52, %c0_53] : memref<16x8x32xbf16, #tpu.memory_space<vmem>>, vector<1x8x32xbf16>
    %124 = vector.shape_cast %123 : vector<1x8x32xbf16> to vector<8x32xbf16>
    %125 = vector.shape_cast %121 : vector<8x32xbf16> to vector<1x8x32xbf16>
    tpu.vector_store %arg8[%122, %c0_52, %c0_53], %125 {strides = array<i32>} : memref<16x8x32xbf16, #tpu.memory_space<vmem>>, vector<1x8x32xbf16>,
    %c3_i32 = arith.constant 3 : i32
    %126 = arith.index_cast %c3_i32 : i32 to index
    %c0_54 = arith.constant 0 : index
    %c0_55 = arith.constant 0 : index
    %127 = vector.load %arg1[%126, %c0_54, %c0_55] : memref<16x8x128xf32, #tpu.memory_space<vmem>>, vector<1x8x128xf32>
    %128 = vector.shape_cast %127 : vector<1x8x128xf32> to vector<8x128xf32>
    %c0_56 = arith.constant 0 : index
    %c0_57 = arith.constant 0 : index
    %129 = vector.load %arg6[%c0_56, %c0_57] : memref<8x32xf32, #tpu.memory_space<vmem>>, vector<8x32xf32>
    %130 = arith.truncf %129 : vector<8x32xf32> to vector<8x32xbf16>
    %c0_58 = arith.constant 0 : index
    %c0_59 = arith.constant 0 : index
    %131 = vector.load %arg2[%c0_58, %c0_59] : memref<32x128xbf16, #tpu.memory_space<vmem>>, vector<32x128xbf16>
    %cst_60 = arith.constant dense<0.000000e+00> : vector<8x128xf32>
    %132 = tpu.matmul %130, %131, %cst_60 {dimension_numbers = #tpu.dot_dimension_numbers<[1], [0], [0], [1], [0, 0, 1, 1], [], []>} : vector<8x32xbf16>, vector<32x128xbf16>, vector<8x128xf32> -> vector<8x128xf32>
    %133 = arith.addf %128, %132 : vector<8x128xf32>
    %134 = vector.extract_strided_slice %133 {offsets = [0, 0], sizes = [8, 32], strides = [1, 1]} : vector<8x128xf32> to vector<8x32xf32>
    %135 = arith.negf %134 : vector<8x32xf32>
    %136 = math.exp %135 : vector<8x32xf32>
    %cst_61 = arith.constant 1.000000e+00 : f32
    %137 = vector.broadcast %cst_61 : f32 to vector<8x32xf32>
    %138 = arith.addf %137, %136 : vector<8x32xf32>
    %139 = arith.divf %137, %138 : vector<8x32xf32>
    %140 = vector.extract_strided_slice %133 {offsets = [0, 32], sizes = [8, 32], strides = [1, 1]} : vector<8x128xf32> to vector<8x32xf32>
    %141 = arith.negf %140 : vector<8x32xf32>
    %142 = math.exp %141 : vector<8x32xf32>
    %cst_62 = arith.constant 1.000000e+00 : f32
    %143 = vector.broadcast %cst_62 : f32 to vector<8x32xf32>
    %144 = arith.addf %143, %142 : vector<8x32xf32>
    %145 = arith.divf %143, %144 : vector<8x32xf32>
    %146 = vector.extract_strided_slice %133 {offsets = [0, 64], sizes = [8, 32], strides = [1, 1]} : vector<8x128xf32> to vector<8x32xf32>
    %147 = math.tanh %146 : vector<8x32xf32>
    %148 = vector.extract_strided_slice %133 {offsets = [0, 96], sizes = [8, 32], strides = [1, 1]} : vector<8x128xf32> to vector<8x32xf32>
    %149 = arith.negf %148 : vector<8x32xf32>
    %150 = math.exp %149 : vector<8x32xf32>
    %cst_63 = arith.constant 1.000000e+00 : f32
    %151 = vector.broadcast %cst_63 : f32 to vector<8x32xf32>
    %152 = arith.addf %151, %150 : vector<8x32xf32>
    %153 = arith.divf %151, %152 : vector<8x32xf32>
    %c0_64 = arith.constant 0 : index
    %c0_65 = arith.constant 0 : index
    %154 = vector.load %arg7[%c0_64, %c0_65] : memref<8x32xf32, #tpu.memory_space<vmem>>, vector<8x32xf32>
    %155 = arith.mulf %145, %154 : vector<8x32xf32>
    %156 = arith.mulf %139, %147 : vector<8x32xf32>
    %157 = arith.addf %155, %156 : vector<8x32xf32>
    %158 = math.tanh %157 : vector<8x32xf32>
    %159 = arith.mulf %153, %158 : vector<8x32xf32>
    %c0_66 = arith.constant 0 : index
    %c0_67 = arith.constant 0 : index
    %160 = vector.load %arg7[%c0_66, %c0_67] : memref<8x32xf32, #tpu.memory_space<vmem>>, vector<8x32xf32>
    tpu.vector_store %arg7[%c0_66, %c0_67], %157 {strides = array<i32>} : memref<8x32xf32, #tpu.memory_space<vmem>>, vector<8x32xf32>,
    %c0_68 = arith.constant 0 : index
    %c0_69 = arith.constant 0 : index
    %161 = vector.load %arg6[%c0_68, %c0_69] : memref<8x32xf32, #tpu.memory_space<vmem>>, vector<8x32xf32>
    tpu.vector_store %arg6[%c0_68, %c0_69], %159 {strides = array<i32>} : memref<8x32xf32, #tpu.memory_space<vmem>>, vector<8x32xf32>,
    %162 = arith.truncf %159 : vector<8x32xf32> to vector<8x32xbf16>
    %163 = arith.index_cast %c3_i32 : i32 to index
    %c0_70 = arith.constant 0 : index
    %c0_71 = arith.constant 0 : index
    %164 = vector.load %arg8[%163, %c0_70, %c0_71] : memref<16x8x32xbf16, #tpu.memory_space<vmem>>, vector<1x8x32xbf16>
    %165 = vector.shape_cast %164 : vector<1x8x32xbf16> to vector<8x32xbf16>
    %166 = vector.shape_cast %162 : vector<8x32xbf16> to vector<1x8x32xbf16>
    tpu.vector_store %arg8[%163, %c0_70, %c0_71], %166 {strides = array<i32>} : memref<16x8x32xbf16, #tpu.memory_space<vmem>>, vector<1x8x32xbf16>,
    %c4_i32 = arith.constant 4 : i32
    %167 = arith.index_cast %c4_i32 : i32 to index
    %c0_72 = arith.constant 0 : index
    %c0_73 = arith.constant 0 : index
    %168 = vector.load %arg1[%167, %c0_72, %c0_73] : memref<16x8x128xf32, #tpu.memory_space<vmem>>, vector<1x8x128xf32>
    %169 = vector.shape_cast %168 : vector<1x8x128xf32> to vector<8x128xf32>
    %c0_74 = arith.constant 0 : index
    %c0_75 = arith.constant 0 : index
    %170 = vector.load %arg6[%c0_74, %c0_75] : memref<8x32xf32, #tpu.memory_space<vmem>>, vector<8x32xf32>
    %171 = arith.truncf %170 : vector<8x32xf32> to vector<8x32xbf16>
    %c0_76 = arith.constant 0 : index
    %c0_77 = arith.constant 0 : index
    %172 = vector.load %arg2[%c0_76, %c0_77] : memref<32x128xbf16, #tpu.memory_space<vmem>>, vector<32x128xbf16>
    %cst_78 = arith.constant dense<0.000000e+00> : vector<8x128xf32>
    %173 = tpu.matmul %171, %172, %cst_78 {dimension_numbers = #tpu.dot_dimension_numbers<[1], [0], [0], [1], [0, 0, 1, 1], [], []>} : vector<8x32xbf16>, vector<32x128xbf16>, vector<8x128xf32> -> vector<8x128xf32>
    %174 = arith.addf %169, %173 : vector<8x128xf32>
    %175 = vector.extract_strided_slice %174 {offsets = [0, 0], sizes = [8, 32], strides = [1, 1]} : vector<8x128xf32> to vector<8x32xf32>
    %176 = arith.negf %175 : vector<8x32xf32>
    %177 = math.exp %176 : vector<8x32xf32>
    %cst_79 = arith.constant 1.000000e+00 : f32
    %178 = vector.broadcast %cst_79 : f32 to vector<8x32xf32>
    %179 = arith.addf %178, %177 : vector<8x32xf32>
    %180 = arith.divf %178, %179 : vector<8x32xf32>
    %181 = vector.extract_strided_slice %174 {offsets = [0, 32], sizes = [8, 32], strides = [1, 1]} : vector<8x128xf32> to vector<8x32xf32>
    %182 = arith.negf %181 : vector<8x32xf32>
    %183 = math.exp %182 : vector<8x32xf32>
    %cst_80 = arith.constant 1.000000e+00 : f32
    %184 = vector.broadcast %cst_80 : f32 to vector<8x32xf32>
    %185 = arith.addf %184, %183 : vector<8x32xf32>
    %186 = arith.divf %184, %185 : vector<8x32xf32>
    %187 = vector.extract_strided_slice %174 {offsets = [0, 64], sizes = [8, 32], strides = [1, 1]} : vector<8x128xf32> to vector<8x32xf32>
    %188 = math.tanh %187 : vector<8x32xf32>
    %189 = vector.extract_strided_slice %174 {offsets = [0, 96], sizes = [8, 32], strides = [1, 1]} : vector<8x128xf32> to vector<8x32xf32>
    %190 = arith.negf %189 : vector<8x32xf32>
    %191 = math.exp %190 : vector<8x32xf32>
    %cst_81 = arith.constant 1.000000e+00 : f32
    %192 = vector.broadcast %cst_81 : f32 to vector<8x32xf32>
    %193 = arith.addf %192, %191 : vector<8x32xf32>
    %194 = arith.divf %192, %193 : vector<8x32xf32>
    %c0_82 = arith.constant 0 : index
    %c0_83 = arith.constant 0 : index
    %195 = vector.load %arg7[%c0_82, %c0_83] : memref<8x32xf32, #tpu.memory_space<vmem>>, vector<8x32xf32>
    %196 = arith.mulf %186, %195 : vector<8x32xf32>
    %197 = arith.mulf %180, %188 : vector<8x32xf32>
    %198 = arith.addf %196, %197 : vector<8x32xf32>
    %199 = math.tanh %198 : vector<8x32xf32>
    %200 = arith.mulf %194, %199 : vector<8x32xf32>
    %c0_84 = arith.constant 0 : index
    %c0_85 = arith.constant 0 : index
    %201 = vector.load %arg7[%c0_84, %c0_85] : memref<8x32xf32, #tpu.memory_space<vmem>>, vector<8x32xf32>
    tpu.vector_store %arg7[%c0_84, %c0_85], %198 {strides = array<i32>} : memref<8x32xf32, #tpu.memory_space<vmem>>, vector<8x32xf32>,
    %c0_86 = arith.constant 0 : index
    %c0_87 = arith.constant 0 : index
    %202 = vector.load %arg6[%c0_86, %c0_87] : memref<8x32xf32, #tpu.memory_space<vmem>>, vector<8x32xf32>
    tpu.vector_store %arg6[%c0_86, %c0_87], %200 {strides = array<i32>} : memref<8x32xf32, #tpu.memory_space<vmem>>, vector<8x32xf32>,
    %203 = arith.truncf %200 : vector<8x32xf32> to vector<8x32xbf16>
    %204 = arith.index_cast %c4_i32 : i32 to index
    %c0_88 = arith.constant 0 : index
    %c0_89 = arith.constant 0 : index
    %205 = vector.load %arg8[%204, %c0_88, %c0_89] : memref<16x8x32xbf16, #tpu.memory_space<vmem>>, vector<1x8x32xbf16>
    %206 = vector.shape_cast %205 : vector<1x8x32xbf16> to vector<8x32xbf16>
    %207 = vector.shape_cast %203 : vector<8x32xbf16> to vector<1x8x32xbf16>
    tpu.vector_store %arg8[%204, %c0_88, %c0_89], %207 {strides = array<i32>} : memref<16x8x32xbf16, #tpu.memory_space<vmem>>, vector<1x8x32xbf16>,
    %c5_i32 = arith.constant 5 : i32
    %208 = arith.index_cast %c5_i32 : i32 to index
    %c0_90 = arith.constant 0 : index
    %c0_91 = arith.constant 0 : index
    %209 = vector.load %arg1[%208, %c0_90, %c0_91] : memref<16x8x128xf32, #tpu.memory_space<vmem>>, vector<1x8x128xf32>
    %210 = vector.shape_cast %209 : vector<1x8x128xf32> to vector<8x128xf32>
    %c0_92 = arith.constant 0 : index
    %c0_93 = arith.constant 0 : index
    %211 = vector.load %arg6[%c0_92, %c0_93] : memref<8x32xf32, #tpu.memory_space<vmem>>, vector<8x32xf32>
    %212 = arith.truncf %211 : vector<8x32xf32> to vector<8x32xbf16>
    %c0_94 = arith.constant 0 : index
    %c0_95 = arith.constant 0 : index
    %213 = vector.load %arg2[%c0_94, %c0_95] : memref<32x128xbf16, #tpu.memory_space<vmem>>, vector<32x128xbf16>
    %cst_96 = arith.constant dense<0.000000e+00> : vector<8x128xf32>
    %214 = tpu.matmul %212, %213, %cst_96 {dimension_numbers = #tpu.dot_dimension_numbers<[1], [0], [0], [1], [0, 0, 1, 1], [], []>} : vector<8x32xbf16>, vector<32x128xbf16>, vector<8x128xf32> -> vector<8x128xf32>
    %215 = arith.addf %210, %214 : vector<8x128xf32>
    %216 = vector.extract_strided_slice %215 {offsets = [0, 0], sizes = [8, 32], strides = [1, 1]} : vector<8x128xf32> to vector<8x32xf32>
    %217 = arith.negf %216 : vector<8x32xf32>
    %218 = math.exp %217 : vector<8x32xf32>
    %cst_97 = arith.constant 1.000000e+00 : f32
    %219 = vector.broadcast %cst_97 : f32 to vector<8x32xf32>
    %220 = arith.addf %219, %218 : vector<8x32xf32>
    %221 = arith.divf %219, %220 : vector<8x32xf32>
    %222 = vector.extract_strided_slice %215 {offsets = [0, 32], sizes = [8, 32], strides = [1, 1]} : vector<8x128xf32> to vector<8x32xf32>
    %223 = arith.negf %222 : vector<8x32xf32>
    %224 = math.exp %223 : vector<8x32xf32>
    %cst_98 = arith.constant 1.000000e+00 : f32
    %225 = vector.broadcast %cst_98 : f32 to vector<8x32xf32>
    %226 = arith.addf %225, %224 : vector<8x32xf32>
    %227 = arith.divf %225, %226 : vector<8x32xf32>
    %228 = vector.extract_strided_slice %215 {offsets = [0, 64], sizes = [8, 32], strides = [1, 1]} : vector<8x128xf32> to vector<8x32xf32>
    %229 = math.tanh %228 : vector<8x32xf32>
    %230 = vector.extract_strided_slice %215 {offsets = [0, 96], sizes = [8, 32], strides = [1, 1]} : vector<8x128xf32> to vector<8x32xf32>
    %231 = arith.negf %230 : vector<8x32xf32>
    %232 = math.exp %231 : vector<8x32xf32>
    %cst_99 = arith.constant 1.000000e+00 : f32
    %233 = vector.broadcast %cst_99 : f32 to vector<8x32xf32>
    %234 = arith.addf %233, %232 : vector<8x32xf32>
    %235 = arith.divf %233, %234 : vector<8x32xf32>
    %c0_100 = arith.constant 0 : index
    %c0_101 = arith.constant 0 : index
    %236 = vector.load %arg7[%c0_100, %c0_101] : memref<8x32xf32, #tpu.memory_space<vmem>>, vector<8x32xf32>
    %237 = arith.mulf %227, %236 : vector<8x32xf32>
    %238 = arith.mulf %221, %229 : vector<8x32xf32>
    %239 = arith.addf %237, %238 : vector<8x32xf32>
    %240 = math.tanh %239 : vector<8x32xf32>
    %241 = arith.mulf %235, %240 : vector<8x32xf32>
    %c0_102 = arith.constant 0 : index
    %c0_103 = arith.constant 0 : index
    %242 = vector.load %arg7[%c0_102, %c0_103] : memref<8x32xf32, #tpu.memory_space<vmem>>, vector<8x32xf32>
    tpu.vector_store %arg7[%c0_102, %c0_103], %239 {strides = array<i32>} : memref<8x32xf32, #tpu.memory_space<vmem>>, vector<8x32xf32>,
    %c0_104 = arith.constant 0 : index
    %c0_105 = arith.constant 0 : index
    %243 = vector.load %arg6[%c0_104, %c0_105] : memref<8x32xf32, #tpu.memory_space<vmem>>, vector<8x32xf32>
    tpu.vector_store %arg6[%c0_104, %c0_105], %241 {strides = array<i32>} : memref<8x32xf32, #tpu.memory_space<vmem>>, vector<8x32xf32>,
    %244 = arith.truncf %241 : vector<8x32xf32> to vector<8x32xbf16>
    %245 = arith.index_cast %c5_i32 : i32 to index
    %c0_106 = arith.constant 0 : index
    %c0_107 = arith.constant 0 : index
    %246 = vector.load %arg8[%245, %c0_106, %c0_107] : memref<16x8x32xbf16, #tpu.memory_space<vmem>>, vector<1x8x32xbf16>
    %247 = vector.shape_cast %246 : vector<1x8x32xbf16> to vector<8x32xbf16>
    %248 = vector.shape_cast %244 : vector<8x32xbf16> to vector<1x8x32xbf16>
    tpu.vector_store %arg8[%245, %c0_106, %c0_107], %248 {strides = array<i32>} : memref<16x8x32xbf16, #tpu.memory_space<vmem>>, vector<1x8x32xbf16>,
    %c6_i32 = arith.constant 6 : i32
    %249 = arith.index_cast %c6_i32 : i32 to index
    %c0_108 = arith.constant 0 : index
    %c0_109 = arith.constant 0 : index
    %250 = vector.load %arg1[%249, %c0_108, %c0_109] : memref<16x8x128xf32, #tpu.memory_space<vmem>>, vector<1x8x128xf32>
    %251 = vector.shape_cast %250 : vector<1x8x128xf32> to vector<8x128xf32>
    %c0_110 = arith.constant 0 : index
    %c0_111 = arith.constant 0 : index
    %252 = vector.load %arg6[%c0_110, %c0_111] : memref<8x32xf32, #tpu.memory_space<vmem>>, vector<8x32xf32>
    %253 = arith.truncf %252 : vector<8x32xf32> to vector<8x32xbf16>
    %c0_112 = arith.constant 0 : index
    %c0_113 = arith.constant 0 : index
    %254 = vector.load %arg2[%c0_112, %c0_113] : memref<32x128xbf16, #tpu.memory_space<vmem>>, vector<32x128xbf16>
    %cst_114 = arith.constant dense<0.000000e+00> : vector<8x128xf32>
    %255 = tpu.matmul %253, %254, %cst_114 {dimension_numbers = #tpu.dot_dimension_numbers<[1], [0], [0], [1], [0, 0, 1, 1], [], []>} : vector<8x32xbf16>, vector<32x128xbf16>, vector<8x128xf32> -> vector<8x128xf32>
    %256 = arith.addf %251, %255 : vector<8x128xf32>
    %257 = vector.extract_strided_slice %256 {offsets = [0, 0], sizes = [8, 32], strides = [1, 1]} : vector<8x128xf32> to vector<8x32xf32>
    %258 = arith.negf %257 : vector<8x32xf32>
    %259 = math.exp %258 : vector<8x32xf32>
    %cst_115 = arith.constant 1.000000e+00 : f32
    %260 = vector.broadcast %cst_115 : f32 to vector<8x32xf32>
    %261 = arith.addf %260, %259 : vector<8x32xf32>
    %262 = arith.divf %260, %261 : vector<8x32xf32>
    %263 = vector.extract_strided_slice %256 {offsets = [0, 32], sizes = [8, 32], strides = [1, 1]} : vector<8x128xf32> to vector<8x32xf32>
    %264 = arith.negf %263 : vector<8x32xf32>
    %265 = math.exp %264 : vector<8x32xf32>
    %cst_116 = arith.constant 1.000000e+00 : f32
    %266 = vector.broadcast %cst_116 : f32 to vector<8x32xf32>
    %267 = arith.addf %266, %265 : vector<8x32xf32>
    %268 = arith.divf %266, %267 : vector<8x32xf32>
    %269 = vector.extract_strided_slice %256 {offsets = [0, 64], sizes = [8, 32], strides = [1, 1]} : vector<8x128xf32> to vector<8x32xf32>
    %270 = math.tanh %269 : vector<8x32xf32>
    %271 = vector.extract_strided_slice %256 {offsets = [0, 96], sizes = [8, 32], strides = [1, 1]} : vector<8x128xf32> to vector<8x32xf32>
    %272 = arith.negf %271 : vector<8x32xf32>
    %273 = math.exp %272 : vector<8x32xf32>
    %cst_117 = arith.constant 1.000000e+00 : f32
    %274 = vector.broadcast %cst_117 : f32 to vector<8x32xf32>
    %275 = arith.addf %274, %273 : vector<8x32xf32>
    %276 = arith.divf %274, %275 : vector<8x32xf32>
    %c0_118 = arith.constant 0 : index
    %c0_119 = arith.constant 0 : index
    %277 = vector.load %arg7[%c0_118, %c0_119] : memref<8x32xf32, #tpu.memory_space<vmem>>, vector<8x32xf32>
    %278 = arith.mulf %268, %277 : vector<8x32xf32>
    %279 = arith.mulf %262, %270 : vector<8x32xf32>
    %280 = arith.addf %278, %279 : vector<8x32xf32>
    %281 = math.tanh %280 : vector<8x32xf32>
    %282 = arith.mulf %276, %281 : vector<8x32xf32>
    %c0_120 = arith.constant 0 : index
    %c0_121 = arith.constant 0 : index
    %283 = vector.load %arg7[%c0_120, %c0_121] : memref<8x32xf32, #tpu.memory_space<vmem>>, vector<8x32xf32>
    tpu.vector_store %arg7[%c0_120, %c0_121], %280 {strides = array<i32>} : memref<8x32xf32, #tpu.memory_space<vmem>>, vector<8x32xf32>,
    %c0_122 = arith.constant 0 : index
    %c0_123 = arith.constant 0 : index
    %284 = vector.load %arg6[%c0_122, %c0_123] : memref<8x32xf32, #tpu.memory_space<vmem>>, vector<8x32xf32>
    tpu.vector_store %arg6[%c0_122, %c0_123], %282 {strides = array<i32>} : memref<8x32xf32, #tpu.memory_space<vmem>>, vector<8x32xf32>,
    %285 = arith.truncf %282 : vector<8x32xf32> to vector<8x32xbf16>
    %286 = arith.index_cast %c6_i32 : i32 to index
    %c0_124 = arith.constant 0 : index
    %c0_125 = arith.constant 0 : index
    %287 = vector.load %arg8[%286, %c0_124, %c0_125] : memref<16x8x32xbf16, #tpu.memory_space<vmem>>, vector<1x8x32xbf16>
    %288 = vector.shape_cast %287 : vector<1x8x32xbf16> to vector<8x32xbf16>
    %289 = vector.shape_cast %285 : vector<8x32xbf16> to vector<1x8x32xbf16>
    tpu.vector_store %arg8[%286, %c0_124, %c0_125], %289 {strides = array<i32>} : memref<16x8x32xbf16, #tpu.memory_space<vmem>>, vector<1x8x32xbf16>,
    %c7_i32 = arith.constant 7 : i32
    %290 = arith.index_cast %c7_i32 : i32 to index
    %c0_126 = arith.constant 0 : index
    %c0_127 = arith.constant 0 : index
    %291 = vector.load %arg1[%290, %c0_126, %c0_127] : memref<16x8x128xf32, #tpu.memory_space<vmem>>, vector<1x8x128xf32>
    %292 = vector.shape_cast %291 : vector<1x8x128xf32> to vector<8x128xf32>
    %c0_128 = arith.constant 0 : index
    %c0_129 = arith.constant 0 : index
    %293 = vector.load %arg6[%c0_128, %c0_129] : memref<8x32xf32, #tpu.memory_space<vmem>>, vector<8x32xf32>
    %294 = arith.truncf %293 : vector<8x32xf32> to vector<8x32xbf16>
    %c0_130 = arith.constant 0 : index
    %c0_131 = arith.constant 0 : index
    %295 = vector.load %arg2[%c0_130, %c0_131] : memref<32x128xbf16, #tpu.memory_space<vmem>>, vector<32x128xbf16>
    %cst_132 = arith.constant dense<0.000000e+00> : vector<8x128xf32>
    %296 = tpu.matmul %294, %295, %cst_132 {dimension_numbers = #tpu.dot_dimension_numbers<[1], [0], [0], [1], [0, 0, 1, 1], [], []>} : vector<8x32xbf16>, vector<32x128xbf16>, vector<8x128xf32> -> vector<8x128xf32>
    %297 = arith.addf %292, %296 : vector<8x128xf32>
    %298 = vector.extract_strided_slice %297 {offsets = [0, 0], sizes = [8, 32], strides = [1, 1]} : vector<8x128xf32> to vector<8x32xf32>
    %299 = arith.negf %298 : vector<8x32xf32>
    %300 = math.exp %299 : vector<8x32xf32>
    %cst_133 = arith.constant 1.000000e+00 : f32
    %301 = vector.broadcast %cst_133 : f32 to vector<8x32xf32>
    %302 = arith.addf %301, %300 : vector<8x32xf32>
    %303 = arith.divf %301, %302 : vector<8x32xf32>
    %304 = vector.extract_strided_slice %297 {offsets = [0, 32], sizes = [8, 32], strides = [1, 1]} : vector<8x128xf32> to vector<8x32xf32>
    %305 = arith.negf %304 : vector<8x32xf32>
    %306 = math.exp %305 : vector<8x32xf32>
    %cst_134 = arith.constant 1.000000e+00 : f32
    %307 = vector.broadcast %cst_134 : f32 to vector<8x32xf32>
    %308 = arith.addf %307, %306 : vector<8x32xf32>
    %309 = arith.divf %307, %308 : vector<8x32xf32>
    %310 = vector.extract_strided_slice %297 {offsets = [0, 64], sizes = [8, 32], strides = [1, 1]} : vector<8x128xf32> to vector<8x32xf32>
    %311 = math.tanh %310 : vector<8x32xf32>
    %312 = vector.extract_strided_slice %297 {offsets = [0, 96], sizes = [8, 32], strides = [1, 1]} : vector<8x128xf32> to vector<8x32xf32>
    %313 = arith.negf %312 : vector<8x32xf32>
    %314 = math.exp %313 : vector<8x32xf32>
    %cst_135 = arith.constant 1.000000e+00 : f32
    %315 = vector.broadcast %cst_135 : f32 to vector<8x32xf32>
    %316 = arith.addf %315, %314 : vector<8x32xf32>
    %317 = arith.divf %315, %316 : vector<8x32xf32>
    %c0_136 = arith.constant 0 : index
    %c0_137 = arith.constant 0 : index
    %318 = vector.load %arg7[%c0_136, %c0_137] : memref<8x32xf32, #tpu.memory_space<vmem>>, vector<8x32xf32>
    %319 = arith.mulf %309, %318 : vector<8x32xf32>
    %320 = arith.mulf %303, %311 : vector<8x32xf32>
    %321 = arith.addf %319, %320 : vector<8x32xf32>
    %322 = math.tanh %321 : vector<8x32xf32>
    %323 = arith.mulf %317, %322 : vector<8x32xf32>
    %c0_138 = arith.constant 0 : index
    %c0_139 = arith.constant 0 : index
    %324 = vector.load %arg7[%c0_138, %c0_139] : memref<8x32xf32, #tpu.memory_space<vmem>>, vector<8x32xf32>
    tpu.vector_store %arg7[%c0_138, %c0_139], %321 {strides = array<i32>} : memref<8x32xf32, #tpu.memory_space<vmem>>, vector<8x32xf32>,
    %c0_140 = arith.constant 0 : index
    %c0_141 = arith.constant 0 : index
    %325 = vector.load %arg6[%c0_140, %c0_141] : memref<8x32xf32, #tpu.memory_space<vmem>>, vector<8x32xf32>
    tpu.vector_store %arg6[%c0_140, %c0_141], %323 {strides = array<i32>} : memref<8x32xf32, #tpu.memory_space<vmem>>, vector<8x32xf32>,
    %326 = arith.truncf %323 : vector<8x32xf32> to vector<8x32xbf16>
    %327 = arith.index_cast %c7_i32 : i32 to index
    %c0_142 = arith.constant 0 : index
    %c0_143 = arith.constant 0 : index
    %328 = vector.load %arg8[%327, %c0_142, %c0_143] : memref<16x8x32xbf16, #tpu.memory_space<vmem>>, vector<1x8x32xbf16>
    %329 = vector.shape_cast %328 : vector<1x8x32xbf16> to vector<8x32xbf16>
    %330 = vector.shape_cast %326 : vector<8x32xbf16> to vector<1x8x32xbf16>
    tpu.vector_store %arg8[%327, %c0_142, %c0_143], %330 {strides = array<i32>} : memref<16x8x32xbf16, #tpu.memory_space<vmem>>, vector<1x8x32xbf16>,
    %c8_i32 = arith.constant 8 : i32
    %331 = arith.index_cast %c8_i32 : i32 to index
    %c0_144 = arith.constant 0 : index
    %c0_145 = arith.constant 0 : index
    %332 = vector.load %arg1[%331, %c0_144, %c0_145] : memref<16x8x128xf32, #tpu.memory_space<vmem>>, vector<1x8x128xf32>
    %333 = vector.shape_cast %332 : vector<1x8x128xf32> to vector<8x128xf32>
    %c0_146 = arith.constant 0 : index
    %c0_147 = arith.constant 0 : index
    %334 = vector.load %arg6[%c0_146, %c0_147] : memref<8x32xf32, #tpu.memory_space<vmem>>, vector<8x32xf32>
    %335 = arith.truncf %334 : vector<8x32xf32> to vector<8x32xbf16>
    %c0_148 = arith.constant 0 : index
    %c0_149 = arith.constant 0 : index
    %336 = vector.load %arg2[%c0_148, %c0_149] : memref<32x128xbf16, #tpu.memory_space<vmem>>, vector<32x128xbf16>
    %cst_150 = arith.constant dense<0.000000e+00> : vector<8x128xf32>
    %337 = tpu.matmul %335, %336, %cst_150 {dimension_numbers = #tpu.dot_dimension_numbers<[1], [0], [0], [1], [0, 0, 1, 1], [], []>} : vector<8x32xbf16>, vector<32x128xbf16>, vector<8x128xf32> -> vector<8x128xf32>
    %338 = arith.addf %333, %337 : vector<8x128xf32>
    %339 = vector.extract_strided_slice %338 {offsets = [0, 0], sizes = [8, 32], strides = [1, 1]} : vector<8x128xf32> to vector<8x32xf32>
    %340 = arith.negf %339 : vector<8x32xf32>
    %341 = math.exp %340 : vector<8x32xf32>
    %cst_151 = arith.constant 1.000000e+00 : f32
    %342 = vector.broadcast %cst_151 : f32 to vector<8x32xf32>
    %343 = arith.addf %342, %341 : vector<8x32xf32>
    %344 = arith.divf %342, %343 : vector<8x32xf32>
    %345 = vector.extract_strided_slice %338 {offsets = [0, 32], sizes = [8, 32], strides = [1, 1]} : vector<8x128xf32> to vector<8x32xf32>
    %346 = arith.negf %345 : vector<8x32xf32>
    %347 = math.exp %346 : vector<8x32xf32>
    %cst_152 = arith.constant 1.000000e+00 : f32
    %348 = vector.broadcast %cst_152 : f32 to vector<8x32xf32>
    %349 = arith.addf %348, %347 : vector<8x32xf32>
    %350 = arith.divf %348, %349 : vector<8x32xf32>
    %351 = vector.extract_strided_slice %338 {offsets = [0, 64], sizes = [8, 32], strides = [1, 1]} : vector<8x128xf32> to vector<8x32xf32>
    %352 = math.tanh %351 : vector<8x32xf32>
    %353 = vector.extract_strided_slice %338 {offsets = [0, 96], sizes = [8, 32], strides = [1, 1]} : vector<8x128xf32> to vector<8x32xf32>
    %354 = arith.negf %353 : vector<8x32xf32>
    %355 = math.exp %354 : vector<8x32xf32>
    %cst_153 = arith.constant 1.000000e+00 : f32
    %356 = vector.broadcast %cst_153 : f32 to vector<8x32xf32>
    %357 = arith.addf %356, %355 : vector<8x32xf32>
    %358 = arith.divf %356, %357 : vector<8x32xf32>
    %c0_154 = arith.constant 0 : index
    %c0_155 = arith.constant 0 : index
    %359 = vector.load %arg7[%c0_154, %c0_155] : memref<8x32xf32, #tpu.memory_space<vmem>>, vector<8x32xf32>
    %360 = arith.mulf %350, %359 : vector<8x32xf32>
    %361 = arith.mulf %344, %352 : vector<8x32xf32>
    %362 = arith.addf %360, %361 : vector<8x32xf32>
    %363 = math.tanh %362 : vector<8x32xf32>
    %364 = arith.mulf %358, %363 : vector<8x32xf32>
    %c0_156 = arith.constant 0 : index
    %c0_157 = arith.constant 0 : index
    %365 = vector.load %arg7[%c0_156, %c0_157] : memref<8x32xf32, #tpu.memory_space<vmem>>, vector<8x32xf32>
    tpu.vector_store %arg7[%c0_156, %c0_157], %362 {strides = array<i32>} : memref<8x32xf32, #tpu.memory_space<vmem>>, vector<8x32xf32>,
    %c0_158 = arith.constant 0 : index
    %c0_159 = arith.constant 0 : index
    %366 = vector.load %arg6[%c0_158, %c0_159] : memref<8x32xf32, #tpu.memory_space<vmem>>, vector<8x32xf32>
    tpu.vector_store %arg6[%c0_158, %c0_159], %364 {strides = array<i32>} : memref<8x32xf32, #tpu.memory_space<vmem>>, vector<8x32xf32>,
    %367 = arith.truncf %364 : vector<8x32xf32> to vector<8x32xbf16>
    %368 = arith.index_cast %c8_i32 : i32 to index
    %c0_160 = arith.constant 0 : index
    %c0_161 = arith.constant 0 : index
    %369 = vector.load %arg8[%368, %c0_160, %c0_161] : memref<16x8x32xbf16, #tpu.memory_space<vmem>>, vector<1x8x32xbf16>
    %370 = vector.shape_cast %369 : vector<1x8x32xbf16> to vector<8x32xbf16>
    %371 = vector.shape_cast %367 : vector<8x32xbf16> to vector<1x8x32xbf16>
    tpu.vector_store %arg8[%368, %c0_160, %c0_161], %371 {strides = array<i32>} : memref<16x8x32xbf16, #tpu.memory_space<vmem>>, vector<1x8x32xbf16>,
    %c9_i32 = arith.constant 9 : i32
    %372 = arith.index_cast %c9_i32 : i32 to index
    %c0_162 = arith.constant 0 : index
    %c0_163 = arith.constant 0 : index
    %373 = vector.load %arg1[%372, %c0_162, %c0_163] : memref<16x8x128xf32, #tpu.memory_space<vmem>>, vector<1x8x128xf32>
    %374 = vector.shape_cast %373 : vector<1x8x128xf32> to vector<8x128xf32>
    %c0_164 = arith.constant 0 : index
    %c0_165 = arith.constant 0 : index
    %375 = vector.load %arg6[%c0_164, %c0_165] : memref<8x32xf32, #tpu.memory_space<vmem>>, vector<8x32xf32>
    %376 = arith.truncf %375 : vector<8x32xf32> to vector<8x32xbf16>
    %c0_166 = arith.constant 0 : index
    %c0_167 = arith.constant 0 : index
    %377 = vector.load %arg2[%c0_166, %c0_167] : memref<32x128xbf16, #tpu.memory_space<vmem>>, vector<32x128xbf16>
    %cst_168 = arith.constant dense<0.000000e+00> : vector<8x128xf32>
    %378 = tpu.matmul %376, %377, %cst_168 {dimension_numbers = #tpu.dot_dimension_numbers<[1], [0], [0], [1], [0, 0, 1, 1], [], []>} : vector<8x32xbf16>, vector<32x128xbf16>, vector<8x128xf32> -> vector<8x128xf32>
    %379 = arith.addf %374, %378 : vector<8x128xf32>
    %380 = vector.extract_strided_slice %379 {offsets = [0, 0], sizes = [8, 32], strides = [1, 1]} : vector<8x128xf32> to vector<8x32xf32>
    %381 = arith.negf %380 : vector<8x32xf32>
    %382 = math.exp %381 : vector<8x32xf32>
    %cst_169 = arith.constant 1.000000e+00 : f32
    %383 = vector.broadcast %cst_169 : f32 to vector<8x32xf32>
    %384 = arith.addf %383, %382 : vector<8x32xf32>
    %385 = arith.divf %383, %384 : vector<8x32xf32>
    %386 = vector.extract_strided_slice %379 {offsets = [0, 32], sizes = [8, 32], strides = [1, 1]} : vector<8x128xf32> to vector<8x32xf32>
    %387 = arith.negf %386 : vector<8x32xf32>
    %388 = math.exp %387 : vector<8x32xf32>
    %cst_170 = arith.constant 1.000000e+00 : f32
    %389 = vector.broadcast %cst_170 : f32 to vector<8x32xf32>
    %390 = arith.addf %389, %388 : vector<8x32xf32>
    %391 = arith.divf %389, %390 : vector<8x32xf32>
    %392 = vector.extract_strided_slice %379 {offsets = [0, 64], sizes = [8, 32], strides = [1, 1]} : vector<8x128xf32> to vector<8x32xf32>
    %393 = math.tanh %392 : vector<8x32xf32>
    %394 = vector.extract_strided_slice %379 {offsets = [0, 96], sizes = [8, 32], strides = [1, 1]} : vector<8x128xf32> to vector<8x32xf32>
    %395 = arith.negf %394 : vector<8x32xf32>
    %396 = math.exp %395 : vector<8x32xf32>
    %cst_171 = arith.constant 1.000000e+00 : f32
    %397 = vector.broadcast %cst_171 : f32 to vector<8x32xf32>
    %398 = arith.addf %397, %396 : vector<8x32xf32>
    %399 = arith.divf %397, %398 : vector<8x32xf32>
    %c0_172 = arith.constant 0 : index
    %c0_173 = arith.constant 0 : index
    %400 = vector.load %arg7[%c0_172, %c0_173] : memref<8x32xf32, #tpu.memory_space<vmem>>, vector<8x32xf32>
    %401 = arith.mulf %391, %400 : vector<8x32xf32>
    %402 = arith.mulf %385, %393 : vector<8x32xf32>
    %403 = arith.addf %401, %402 : vector<8x32xf32>
    %404 = math.tanh %403 : vector<8x32xf32>
    %405 = arith.mulf %399, %404 : vector<8x32xf32>
    %c0_174 = arith.constant 0 : index
    %c0_175 = arith.constant 0 : index
    %406 = vector.load %arg7[%c0_174, %c0_175] : memref<8x32xf32, #tpu.memory_space<vmem>>, vector<8x32xf32>
    tpu.vector_store %arg7[%c0_174, %c0_175], %403 {strides = array<i32>} : memref<8x32xf32, #tpu.memory_space<vmem>>, vector<8x32xf32>,
    %c0_176 = arith.constant 0 : index
    %c0_177 = arith.constant 0 : index
    %407 = vector.load %arg6[%c0_176, %c0_177] : memref<8x32xf32, #tpu.memory_space<vmem>>, vector<8x32xf32>
    tpu.vector_store %arg6[%c0_176, %c0_177], %405 {strides = array<i32>} : memref<8x32xf32, #tpu.memory_space<vmem>>, vector<8x32xf32>,
    %408 = arith.truncf %405 : vector<8x32xf32> to vector<8x32xbf16>
    %409 = arith.index_cast %c9_i32 : i32 to index
    %c0_178 = arith.constant 0 : index
    %c0_179 = arith.constant 0 : index
    %410 = vector.load %arg8[%409, %c0_178, %c0_179] : memref<16x8x32xbf16, #tpu.memory_space<vmem>>, vector<1x8x32xbf16>
    %411 = vector.shape_cast %410 : vector<1x8x32xbf16> to vector<8x32xbf16>
    %412 = vector.shape_cast %408 : vector<8x32xbf16> to vector<1x8x32xbf16>
    tpu.vector_store %arg8[%409, %c0_178, %c0_179], %412 {strides = array<i32>} : memref<16x8x32xbf16, #tpu.memory_space<vmem>>, vector<1x8x32xbf16>,
    %c10_i32 = arith.constant 10 : i32
    %413 = arith.index_cast %c10_i32 : i32 to index
    %c0_180 = arith.constant 0 : index
    %c0_181 = arith.constant 0 : index
    %414 = vector.load %arg1[%413, %c0_180, %c0_181] : memref<16x8x128xf32, #tpu.memory_space<vmem>>, vector<1x8x128xf32>
    %415 = vector.shape_cast %414 : vector<1x8x128xf32> to vector<8x128xf32>
    %c0_182 = arith.constant 0 : index
    %c0_183 = arith.constant 0 : index
    %416 = vector.load %arg6[%c0_182, %c0_183] : memref<8x32xf32, #tpu.memory_space<vmem>>, vector<8x32xf32>
    %417 = arith.truncf %416 : vector<8x32xf32> to vector<8x32xbf16>
    %c0_184 = arith.constant 0 : index
    %c0_185 = arith.constant 0 : index
    %418 = vector.load %arg2[%c0_184, %c0_185] : memref<32x128xbf16, #tpu.memory_space<vmem>>, vector<32x128xbf16>
    %cst_186 = arith.constant dense<0.000000e+00> : vector<8x128xf32>
    %419 = tpu.matmul %417, %418, %cst_186 {dimension_numbers = #tpu.dot_dimension_numbers<[1], [0], [0], [1], [0, 0, 1, 1], [], []>} : vector<8x32xbf16>, vector<32x128xbf16>, vector<8x128xf32> -> vector<8x128xf32>
    %420 = arith.addf %415, %419 : vector<8x128xf32>
    %421 = vector.extract_strided_slice %420 {offsets = [0, 0], sizes = [8, 32], strides = [1, 1]} : vector<8x128xf32> to vector<8x32xf32>
    %422 = arith.negf %421 : vector<8x32xf32>
    %423 = math.exp %422 : vector<8x32xf32>
    %cst_187 = arith.constant 1.000000e+00 : f32
    %424 = vector.broadcast %cst_187 : f32 to vector<8x32xf32>
    %425 = arith.addf %424, %423 : vector<8x32xf32>
    %426 = arith.divf %424, %425 : vector<8x32xf32>
    %427 = vector.extract_strided_slice %420 {offsets = [0, 32], sizes = [8, 32], strides = [1, 1]} : vector<8x128xf32> to vector<8x32xf32>
    %428 = arith.negf %427 : vector<8x32xf32>
    %429 = math.exp %428 : vector<8x32xf32>
    %cst_188 = arith.constant 1.000000e+00 : f32
    %430 = vector.broadcast %cst_188 : f32 to vector<8x32xf32>
    %431 = arith.addf %430, %429 : vector<8x32xf32>
    %432 = arith.divf %430, %431 : vector<8x32xf32>
    %433 = vector.extract_strided_slice %420 {offsets = [0, 64], sizes = [8, 32], strides = [1, 1]} : vector<8x128xf32> to vector<8x32xf32>
    %434 = math.tanh %433 : vector<8x32xf32>
    %435 = vector.extract_strided_slice %420 {offsets = [0, 96], sizes = [8, 32], strides = [1, 1]} : vector<8x128xf32> to vector<8x32xf32>
    %436 = arith.negf %435 : vector<8x32xf32>
    %437 = math.exp %436 : vector<8x32xf32>
    %cst_189 = arith.constant 1.000000e+00 : f32
    %438 = vector.broadcast %cst_189 : f32 to vector<8x32xf32>
    %439 = arith.addf %438, %437 : vector<8x32xf32>
    %440 = arith.divf %438, %439 : vector<8x32xf32>
    %c0_190 = arith.constant 0 : index
    %c0_191 = arith.constant 0 : index
    %441 = vector.load %arg7[%c0_190, %c0_191] : memref<8x32xf32, #tpu.memory_space<vmem>>, vector<8x32xf32>
    %442 = arith.mulf %432, %441 : vector<8x32xf32>
    %443 = arith.mulf %426, %434 : vector<8x32xf32>
    %444 = arith.addf %442, %443 : vector<8x32xf32>
    %445 = math.tanh %444 : vector<8x32xf32>
    %446 = arith.mulf %440, %445 : vector<8x32xf32>
    %c0_192 = arith.constant 0 : index
    %c0_193 = arith.constant 0 : index
    %447 = vector.load %arg7[%c0_192, %c0_193] : memref<8x32xf32, #tpu.memory_space<vmem>>, vector<8x32xf32>
    tpu.vector_store %arg7[%c0_192, %c0_193], %444 {strides = array<i32>} : memref<8x32xf32, #tpu.memory_space<vmem>>, vector<8x32xf32>,
    %c0_194 = arith.constant 0 : index
    %c0_195 = arith.constant 0 : index
    %448 = vector.load %arg6[%c0_194, %c0_195] : memref<8x32xf32, #tpu.memory_space<vmem>>, vector<8x32xf32>
    tpu.vector_store %arg6[%c0_194, %c0_195], %446 {strides = array<i32>} : memref<8x32xf32, #tpu.memory_space<vmem>>, vector<8x32xf32>,
    %449 = arith.truncf %446 : vector<8x32xf32> to vector<8x32xbf16>
    %450 = arith.index_cast %c10_i32 : i32 to index
    %c0_196 = arith.constant 0 : index
    %c0_197 = arith.constant 0 : index
    %451 = vector.load %arg8[%450, %c0_196, %c0_197] : memref<16x8x32xbf16, #tpu.memory_space<vmem>>, vector<1x8x32xbf16>
    %452 = vector.shape_cast %451 : vector<1x8x32xbf16> to vector<8x32xbf16>
    %453 = vector.shape_cast %449 : vector<8x32xbf16> to vector<1x8x32xbf16>
    tpu.vector_store %arg8[%450, %c0_196, %c0_197], %453 {strides = array<i32>} : memref<16x8x32xbf16, #tpu.memory_space<vmem>>, vector<1x8x32xbf16>,
    %c11_i32 = arith.constant 11 : i32
    %454 = arith.index_cast %c11_i32 : i32 to index
    %c0_198 = arith.constant 0 : index
    %c0_199 = arith.constant 0 : index
    %455 = vector.load %arg1[%454, %c0_198, %c0_199] : memref<16x8x128xf32, #tpu.memory_space<vmem>>, vector<1x8x128xf32>
    %456 = vector.shape_cast %455 : vector<1x8x128xf32> to vector<8x128xf32>
    %c0_200 = arith.constant 0 : index
    %c0_201 = arith.constant 0 : index
    %457 = vector.load %arg6[%c0_200, %c0_201] : memref<8x32xf32, #tpu.memory_space<vmem>>, vector<8x32xf32>
    %458 = arith.truncf %457 : vector<8x32xf32> to vector<8x32xbf16>
    %c0_202 = arith.constant 0 : index
    %c0_203 = arith.constant 0 : index
    %459 = vector.load %arg2[%c0_202, %c0_203] : memref<32x128xbf16, #tpu.memory_space<vmem>>, vector<32x128xbf16>
    %cst_204 = arith.constant dense<0.000000e+00> : vector<8x128xf32>
    %460 = tpu.matmul %458, %459, %cst_204 {dimension_numbers = #tpu.dot_dimension_numbers<[1], [0], [0], [1], [0, 0, 1, 1], [], []>} : vector<8x32xbf16>, vector<32x128xbf16>, vector<8x128xf32> -> vector<8x128xf32>
    %461 = arith.addf %456, %460 : vector<8x128xf32>
    %462 = vector.extract_strided_slice %461 {offsets = [0, 0], sizes = [8, 32], strides = [1, 1]} : vector<8x128xf32> to vector<8x32xf32>
    %463 = arith.negf %462 : vector<8x32xf32>
    %464 = math.exp %463 : vector<8x32xf32>
    %cst_205 = arith.constant 1.000000e+00 : f32
    %465 = vector.broadcast %cst_205 : f32 to vector<8x32xf32>
    %466 = arith.addf %465, %464 : vector<8x32xf32>
    %467 = arith.divf %465, %466 : vector<8x32xf32>
    %468 = vector.extract_strided_slice %461 {offsets = [0, 32], sizes = [8, 32], strides = [1, 1]} : vector<8x128xf32> to vector<8x32xf32>
    %469 = arith.negf %468 : vector<8x32xf32>
    %470 = math.exp %469 : vector<8x32xf32>
    %cst_206 = arith.constant 1.000000e+00 : f32
    %471 = vector.broadcast %cst_206 : f32 to vector<8x32xf32>
    %472 = arith.addf %471, %470 : vector<8x32xf32>
    %473 = arith.divf %471, %472 : vector<8x32xf32>
    %474 = vector.extract_strided_slice %461 {offsets = [0, 64], sizes = [8, 32], strides = [1, 1]} : vector<8x128xf32> to vector<8x32xf32>
    %475 = math.tanh %474 : vector<8x32xf32>
    %476 = vector.extract_strided_slice %461 {offsets = [0, 96], sizes = [8, 32], strides = [1, 1]} : vector<8x128xf32> to vector<8x32xf32>
    %477 = arith.negf %476 : vector<8x32xf32>
    %478 = math.exp %477 : vector<8x32xf32>
    %cst_207 = arith.constant 1.000000e+00 : f32
    %479 = vector.broadcast %cst_207 : f32 to vector<8x32xf32>
    %480 = arith.addf %479, %478 : vector<8x32xf32>
    %481 = arith.divf %479, %480 : vector<8x32xf32>
    %c0_208 = arith.constant 0 : index
    %c0_209 = arith.constant 0 : index
    %482 = vector.load %arg7[%c0_208, %c0_209] : memref<8x32xf32, #tpu.memory_space<vmem>>, vector<8x32xf32>
    %483 = arith.mulf %473, %482 : vector<8x32xf32>
    %484 = arith.mulf %467, %475 : vector<8x32xf32>
    %485 = arith.addf %483, %484 : vector<8x32xf32>
    %486 = math.tanh %485 : vector<8x32xf32>
    %487 = arith.mulf %481, %486 : vector<8x32xf32>
    %c0_210 = arith.constant 0 : index
    %c0_211 = arith.constant 0 : index
    %488 = vector.load %arg7[%c0_210, %c0_211] : memref<8x32xf32, #tpu.memory_space<vmem>>, vector<8x32xf32>
    tpu.vector_store %arg7[%c0_210, %c0_211], %485 {strides = array<i32>} : memref<8x32xf32, #tpu.memory_space<vmem>>, vector<8x32xf32>,
    %c0_212 = arith.constant 0 : index
    %c0_213 = arith.constant 0 : index
    %489 = vector.load %arg6[%c0_212, %c0_213] : memref<8x32xf32, #tpu.memory_space<vmem>>, vector<8x32xf32>
    tpu.vector_store %arg6[%c0_212, %c0_213], %487 {strides = array<i32>} : memref<8x32xf32, #tpu.memory_space<vmem>>, vector<8x32xf32>,
    %490 = arith.truncf %487 : vector<8x32xf32> to vector<8x32xbf16>
    %491 = arith.index_cast %c11_i32 : i32 to index
    %c0_214 = arith.constant 0 : index
    %c0_215 = arith.constant 0 : index
    %492 = vector.load %arg8[%491, %c0_214, %c0_215] : memref<16x8x32xbf16, #tpu.memory_space<vmem>>, vector<1x8x32xbf16>
    %493 = vector.shape_cast %492 : vector<1x8x32xbf16> to vector<8x32xbf16>
    %494 = vector.shape_cast %490 : vector<8x32xbf16> to vector<1x8x32xbf16>
    tpu.vector_store %arg8[%491, %c0_214, %c0_215], %494 {strides = array<i32>} : memref<16x8x32xbf16, #tpu.memory_space<vmem>>, vector<1x8x32xbf16>,
    %c12_i32 = arith.constant 12 : i32
    %495 = arith.index_cast %c12_i32 : i32 to index
    %c0_216 = arith.constant 0 : index
    %c0_217 = arith.constant 0 : index
    %496 = vector.load %arg1[%495, %c0_216, %c0_217] : memref<16x8x128xf32, #tpu.memory_space<vmem>>, vector<1x8x128xf32>
    %497 = vector.shape_cast %496 : vector<1x8x128xf32> to vector<8x128xf32>
    %c0_218 = arith.constant 0 : index
    %c0_219 = arith.constant 0 : index
    %498 = vector.load %arg6[%c0_218, %c0_219] : memref<8x32xf32, #tpu.memory_space<vmem>>, vector<8x32xf32>
    %499 = arith.truncf %498 : vector<8x32xf32> to vector<8x32xbf16>
    %c0_220 = arith.constant 0 : index
    %c0_221 = arith.constant 0 : index
    %500 = vector.load %arg2[%c0_220, %c0_221] : memref<32x128xbf16, #tpu.memory_space<vmem>>, vector<32x128xbf16>
    %cst_222 = arith.constant dense<0.000000e+00> : vector<8x128xf32>
    %501 = tpu.matmul %499, %500, %cst_222 {dimension_numbers = #tpu.dot_dimension_numbers<[1], [0], [0], [1], [0, 0, 1, 1], [], []>} : vector<8x32xbf16>, vector<32x128xbf16>, vector<8x128xf32> -> vector<8x128xf32>
    %502 = arith.addf %497, %501 : vector<8x128xf32>
    %503 = vector.extract_strided_slice %502 {offsets = [0, 0], sizes = [8, 32], strides = [1, 1]} : vector<8x128xf32> to vector<8x32xf32>
    %504 = arith.negf %503 : vector<8x32xf32>
    %505 = math.exp %504 : vector<8x32xf32>
    %cst_223 = arith.constant 1.000000e+00 : f32
    %506 = vector.broadcast %cst_223 : f32 to vector<8x32xf32>
    %507 = arith.addf %506, %505 : vector<8x32xf32>
    %508 = arith.divf %506, %507 : vector<8x32xf32>
    %509 = vector.extract_strided_slice %502 {offsets = [0, 32], sizes = [8, 32], strides = [1, 1]} : vector<8x128xf32> to vector<8x32xf32>
    %510 = arith.negf %509 : vector<8x32xf32>
    %511 = math.exp %510 : vector<8x32xf32>
    %cst_224 = arith.constant 1.000000e+00 : f32
    %512 = vector.broadcast %cst_224 : f32 to vector<8x32xf32>
    %513 = arith.addf %512, %511 : vector<8x32xf32>
    %514 = arith.divf %512, %513 : vector<8x32xf32>
    %515 = vector.extract_strided_slice %502 {offsets = [0, 64], sizes = [8, 32], strides = [1, 1]} : vector<8x128xf32> to vector<8x32xf32>
    %516 = math.tanh %515 : vector<8x32xf32>
    %517 = vector.extract_strided_slice %502 {offsets = [0, 96], sizes = [8, 32], strides = [1, 1]} : vector<8x128xf32> to vector<8x32xf32>
    %518 = arith.negf %517 : vector<8x32xf32>
    %519 = math.exp %518 : vector<8x32xf32>
    %cst_225 = arith.constant 1.000000e+00 : f32
    %520 = vector.broadcast %cst_225 : f32 to vector<8x32xf32>
    %521 = arith.addf %520, %519 : vector<8x32xf32>
    %522 = arith.divf %520, %521 : vector<8x32xf32>
    %c0_226 = arith.constant 0 : index
    %c0_227 = arith.constant 0 : index
    %523 = vector.load %arg7[%c0_226, %c0_227] : memref<8x32xf32, #tpu.memory_space<vmem>>, vector<8x32xf32>
    %524 = arith.mulf %514, %523 : vector<8x32xf32>
    %525 = arith.mulf %508, %516 : vector<8x32xf32>
    %526 = arith.addf %524, %525 : vector<8x32xf32>
    %527 = math.tanh %526 : vector<8x32xf32>
    %528 = arith.mulf %522, %527 : vector<8x32xf32>
    %c0_228 = arith.constant 0 : index
    %c0_229 = arith.constant 0 : index
    %529 = vector.load %arg7[%c0_228, %c0_229] : memref<8x32xf32, #tpu.memory_space<vmem>>, vector<8x32xf32>
    tpu.vector_store %arg7[%c0_228, %c0_229], %526 {strides = array<i32>} : memref<8x32xf32, #tpu.memory_space<vmem>>, vector<8x32xf32>,
    %c0_230 = arith.constant 0 : index
    %c0_231 = arith.constant 0 : index
    %530 = vector.load %arg6[%c0_230, %c0_231] : memref<8x32xf32, #tpu.memory_space<vmem>>, vector<8x32xf32>
    tpu.vector_store %arg6[%c0_230, %c0_231], %528 {strides = array<i32>} : memref<8x32xf32, #tpu.memory_space<vmem>>, vector<8x32xf32>,
    %531 = arith.truncf %528 : vector<8x32xf32> to vector<8x32xbf16>
    %532 = arith.index_cast %c12_i32 : i32 to index
    %c0_232 = arith.constant 0 : index
    %c0_233 = arith.constant 0 : index
    %533 = vector.load %arg8[%532, %c0_232, %c0_233] : memref<16x8x32xbf16, #tpu.memory_space<vmem>>, vector<1x8x32xbf16>
    %534 = vector.shape_cast %533 : vector<1x8x32xbf16> to vector<8x32xbf16>
    %535 = vector.shape_cast %531 : vector<8x32xbf16> to vector<1x8x32xbf16>
    tpu.vector_store %arg8[%532, %c0_232, %c0_233], %535 {strides = array<i32>} : memref<16x8x32xbf16, #tpu.memory_space<vmem>>, vector<1x8x32xbf16>,
    %c13_i32 = arith.constant 13 : i32
    %536 = arith.index_cast %c13_i32 : i32 to index
    %c0_234 = arith.constant 0 : index
    %c0_235 = arith.constant 0 : index
    %537 = vector.load %arg1[%536, %c0_234, %c0_235] : memref<16x8x128xf32, #tpu.memory_space<vmem>>, vector<1x8x128xf32>
    %538 = vector.shape_cast %537 : vector<1x8x128xf32> to vector<8x128xf32>
    %c0_236 = arith.constant 0 : index
    %c0_237 = arith.constant 0 : index
    %539 = vector.load %arg6[%c0_236, %c0_237] : memref<8x32xf32, #tpu.memory_space<vmem>>, vector<8x32xf32>
    %540 = arith.truncf %539 : vector<8x32xf32> to vector<8x32xbf16>
    %c0_238 = arith.constant 0 : index
    %c0_239 = arith.constant 0 : index
    %541 = vector.load %arg2[%c0_238, %c0_239] : memref<32x128xbf16, #tpu.memory_space<vmem>>, vector<32x128xbf16>
    %cst_240 = arith.constant dense<0.000000e+00> : vector<8x128xf32>
    %542 = tpu.matmul %540, %541, %cst_240 {dimension_numbers = #tpu.dot_dimension_numbers<[1], [0], [0], [1], [0, 0, 1, 1], [], []>} : vector<8x32xbf16>, vector<32x128xbf16>, vector<8x128xf32> -> vector<8x128xf32>
    %543 = arith.addf %538, %542 : vector<8x128xf32>
    %544 = vector.extract_strided_slice %543 {offsets = [0, 0], sizes = [8, 32], strides = [1, 1]} : vector<8x128xf32> to vector<8x32xf32>
    %545 = arith.negf %544 : vector<8x32xf32>
    %546 = math.exp %545 : vector<8x32xf32>
    %cst_241 = arith.constant 1.000000e+00 : f32
    %547 = vector.broadcast %cst_241 : f32 to vector<8x32xf32>
    %548 = arith.addf %547, %546 : vector<8x32xf32>
    %549 = arith.divf %547, %548 : vector<8x32xf32>
    %550 = vector.extract_strided_slice %543 {offsets = [0, 32], sizes = [8, 32], strides = [1, 1]} : vector<8x128xf32> to vector<8x32xf32>
    %551 = arith.negf %550 : vector<8x32xf32>
    %552 = math.exp %551 : vector<8x32xf32>
    %cst_242 = arith.constant 1.000000e+00 : f32
    %553 = vector.broadcast %cst_242 : f32 to vector<8x32xf32>
    %554 = arith.addf %553, %552 : vector<8x32xf32>
    %555 = arith.divf %553, %554 : vector<8x32xf32>
    %556 = vector.extract_strided_slice %543 {offsets = [0, 64], sizes = [8, 32], strides = [1, 1]} : vector<8x128xf32> to vector<8x32xf32>
    %557 = math.tanh %556 : vector<8x32xf32>
    %558 = vector.extract_strided_slice %543 {offsets = [0, 96], sizes = [8, 32], strides = [1, 1]} : vector<8x128xf32> to vector<8x32xf32>
    %559 = arith.negf %558 : vector<8x32xf32>
    %560 = math.exp %559 : vector<8x32xf32>
    %cst_243 = arith.constant 1.000000e+00 : f32
    %561 = vector.broadcast %cst_243 : f32 to vector<8x32xf32>
    %562 = arith.addf %561, %560 : vector<8x32xf32>
    %563 = arith.divf %561, %562 : vector<8x32xf32>
    %c0_244 = arith.constant 0 : index
    %c0_245 = arith.constant 0 : index
    %564 = vector.load %arg7[%c0_244, %c0_245] : memref<8x32xf32, #tpu.memory_space<vmem>>, vector<8x32xf32>
    %565 = arith.mulf %555, %564 : vector<8x32xf32>
    %566 = arith.mulf %549, %557 : vector<8x32xf32>
    %567 = arith.addf %565, %566 : vector<8x32xf32>
    %568 = math.tanh %567 : vector<8x32xf32>
    %569 = arith.mulf %563, %568 : vector<8x32xf32>
    %c0_246 = arith.constant 0 : index
    %c0_247 = arith.constant 0 : index
    %570 = vector.load %arg7[%c0_246, %c0_247] : memref<8x32xf32, #tpu.memory_space<vmem>>, vector<8x32xf32>
    tpu.vector_store %arg7[%c0_246, %c0_247], %567 {strides = array<i32>} : memref<8x32xf32, #tpu.memory_space<vmem>>, vector<8x32xf32>,
    %c0_248 = arith.constant 0 : index
    %c0_249 = arith.constant 0 : index
    %571 = vector.load %arg6[%c0_248, %c0_249] : memref<8x32xf32, #tpu.memory_space<vmem>>, vector<8x32xf32>
    tpu.vector_store %arg6[%c0_248, %c0_249], %569 {strides = array<i32>} : memref<8x32xf32, #tpu.memory_space<vmem>>, vector<8x32xf32>,
    %572 = arith.truncf %569 : vector<8x32xf32> to vector<8x32xbf16>
    %573 = arith.index_cast %c13_i32 : i32 to index
    %c0_250 = arith.constant 0 : index
    %c0_251 = arith.constant 0 : index
    %574 = vector.load %arg8[%573, %c0_250, %c0_251] : memref<16x8x32xbf16, #tpu.memory_space<vmem>>, vector<1x8x32xbf16>
    %575 = vector.shape_cast %574 : vector<1x8x32xbf16> to vector<8x32xbf16>
    %576 = vector.shape_cast %572 : vector<8x32xbf16> to vector<1x8x32xbf16>
    tpu.vector_store %arg8[%573, %c0_250, %c0_251], %576 {strides = array<i32>} : memref<16x8x32xbf16, #tpu.memory_space<vmem>>, vector<1x8x32xbf16>,
    %c14_i32 = arith.constant 14 : i32
    %577 = arith.index_cast %c14_i32 : i32 to index
    %c0_252 = arith.constant 0 : index
    %c0_253 = arith.constant 0 : index
    %578 = vector.load %arg1[%577, %c0_252, %c0_253] : memref<16x8x128xf32, #tpu.memory_space<vmem>>, vector<1x8x128xf32>
    %579 = vector.shape_cast %578 : vector<1x8x128xf32> to vector<8x128xf32>
    %c0_254 = arith.constant 0 : index
    %c0_255 = arith.constant 0 : index
    %580 = vector.load %arg6[%c0_254, %c0_255] : memref<8x32xf32, #tpu.memory_space<vmem>>, vector<8x32xf32>
    %581 = arith.truncf %580 : vector<8x32xf32> to vector<8x32xbf16>
    %c0_256 = arith.constant 0 : index
    %c0_257 = arith.constant 0 : index
    %582 = vector.load %arg2[%c0_256, %c0_257] : memref<32x128xbf16, #tpu.memory_space<vmem>>, vector<32x128xbf16>
    %cst_258 = arith.constant dense<0.000000e+00> : vector<8x128xf32>
    %583 = tpu.matmul %581, %582, %cst_258 {dimension_numbers = #tpu.dot_dimension_numbers<[1], [0], [0], [1], [0, 0, 1, 1], [], []>} : vector<8x32xbf16>, vector<32x128xbf16>, vector<8x128xf32> -> vector<8x128xf32>
    %584 = arith.addf %579, %583 : vector<8x128xf32>
    %585 = vector.extract_strided_slice %584 {offsets = [0, 0], sizes = [8, 32], strides = [1, 1]} : vector<8x128xf32> to vector<8x32xf32>
    %586 = arith.negf %585 : vector<8x32xf32>
    %587 = math.exp %586 : vector<8x32xf32>
    %cst_259 = arith.constant 1.000000e+00 : f32
    %588 = vector.broadcast %cst_259 : f32 to vector<8x32xf32>
    %589 = arith.addf %588, %587 : vector<8x32xf32>
    %590 = arith.divf %588, %589 : vector<8x32xf32>
    %591 = vector.extract_strided_slice %584 {offsets = [0, 32], sizes = [8, 32], strides = [1, 1]} : vector<8x128xf32> to vector<8x32xf32>
    %592 = arith.negf %591 : vector<8x32xf32>
    %593 = math.exp %592 : vector<8x32xf32>
    %cst_260 = arith.constant 1.000000e+00 : f32
    %594 = vector.broadcast %cst_260 : f32 to vector<8x32xf32>
    %595 = arith.addf %594, %593 : vector<8x32xf32>
    %596 = arith.divf %594, %595 : vector<8x32xf32>
    %597 = vector.extract_strided_slice %584 {offsets = [0, 64], sizes = [8, 32], strides = [1, 1]} : vector<8x128xf32> to vector<8x32xf32>
    %598 = math.tanh %597 : vector<8x32xf32>
    %599 = vector.extract_strided_slice %584 {offsets = [0, 96], sizes = [8, 32], strides = [1, 1]} : vector<8x128xf32> to vector<8x32xf32>
    %600 = arith.negf %599 : vector<8x32xf32>
    %601 = math.exp %600 : vector<8x32xf32>
    %cst_261 = arith.constant 1.000000e+00 : f32
    %602 = vector.broadcast %cst_261 : f32 to vector<8x32xf32>
    %603 = arith.addf %602, %601 : vector<8x32xf32>
    %604 = arith.divf %602, %603 : vector<8x32xf32>
    %c0_262 = arith.constant 0 : index
    %c0_263 = arith.constant 0 : index
    %605 = vector.load %arg7[%c0_262, %c0_263] : memref<8x32xf32, #tpu.memory_space<vmem>>, vector<8x32xf32>
    %606 = arith.mulf %596, %605 : vector<8x32xf32>
    %607 = arith.mulf %590, %598 : vector<8x32xf32>
    %608 = arith.addf %606, %607 : vector<8x32xf32>
    %609 = math.tanh %608 : vector<8x32xf32>
    %610 = arith.mulf %604, %609 : vector<8x32xf32>
    %c0_264 = arith.constant 0 : index
    %c0_265 = arith.constant 0 : index
    %611 = vector.load %arg7[%c0_264, %c0_265] : memref<8x32xf32, #tpu.memory_space<vmem>>, vector<8x32xf32>
    tpu.vector_store %arg7[%c0_264, %c0_265], %608 {strides = array<i32>} : memref<8x32xf32, #tpu.memory_space<vmem>>, vector<8x32xf32>,
    %c0_266 = arith.constant 0 : index
    %c0_267 = arith.constant 0 : index
    %612 = vector.load %arg6[%c0_266, %c0_267] : memref<8x32xf32, #tpu.memory_space<vmem>>, vector<8x32xf32>
    tpu.vector_store %arg6[%c0_266, %c0_267], %610 {strides = array<i32>} : memref<8x32xf32, #tpu.memory_space<vmem>>, vector<8x32xf32>,
    %613 = arith.truncf %610 : vector<8x32xf32> to vector<8x32xbf16>
    %614 = arith.index_cast %c14_i32 : i32 to index
    %c0_268 = arith.constant 0 : index
    %c0_269 = arith.constant 0 : index
    %615 = vector.load %arg8[%614, %c0_268, %c0_269] : memref<16x8x32xbf16, #tpu.memory_space<vmem>>, vector<1x8x32xbf16>
    %616 = vector.shape_cast %615 : vector<1x8x32xbf16> to vector<8x32xbf16>
    %617 = vector.shape_cast %613 : vector<8x32xbf16> to vector<1x8x32xbf16>
    tpu.vector_store %arg8[%614, %c0_268, %c0_269], %617 {strides = array<i32>} : memref<16x8x32xbf16, #tpu.memory_space<vmem>>, vector<1x8x32xbf16>,
    %c15_i32 = arith.constant 15 : i32
    %618 = arith.index_cast %c15_i32 : i32 to index
    %c0_270 = arith.constant 0 : index
    %c0_271 = arith.constant 0 : index
    %619 = vector.load %arg1[%618, %c0_270, %c0_271] : memref<16x8x128xf32, #tpu.memory_space<vmem>>, vector<1x8x128xf32>
    %620 = vector.shape_cast %619 : vector<1x8x128xf32> to vector<8x128xf32>
    %c0_272 = arith.constant 0 : index
    %c0_273 = arith.constant 0 : index
    %621 = vector.load %arg6[%c0_272, %c0_273] : memref<8x32xf32, #tpu.memory_space<vmem>>, vector<8x32xf32>
    %622 = arith.truncf %621 : vector<8x32xf32> to vector<8x32xbf16>
    %c0_274 = arith.constant 0 : index
    %c0_275 = arith.constant 0 : index
    %623 = vector.load %arg2[%c0_274, %c0_275] : memref<32x128xbf16, #tpu.memory_space<vmem>>, vector<32x128xbf16>
    %cst_276 = arith.constant dense<0.000000e+00> : vector<8x128xf32>
    %624 = tpu.matmul %622, %623, %cst_276 {dimension_numbers = #tpu.dot_dimension_numbers<[1], [0], [0], [1], [0, 0, 1, 1], [], []>} : vector<8x32xbf16>, vector<32x128xbf16>, vector<8x128xf32> -> vector<8x128xf32>
    %625 = arith.addf %620, %624 : vector<8x128xf32>
    %626 = vector.extract_strided_slice %625 {offsets = [0, 0], sizes = [8, 32], strides = [1, 1]} : vector<8x128xf32> to vector<8x32xf32>
    %627 = arith.negf %626 : vector<8x32xf32>
    %628 = math.exp %627 : vector<8x32xf32>
    %cst_277 = arith.constant 1.000000e+00 : f32
    %629 = vector.broadcast %cst_277 : f32 to vector<8x32xf32>
    %630 = arith.addf %629, %628 : vector<8x32xf32>
    %631 = arith.divf %629, %630 : vector<8x32xf32>
    %632 = vector.extract_strided_slice %625 {offsets = [0, 32], sizes = [8, 32], strides = [1, 1]} : vector<8x128xf32> to vector<8x32xf32>
    %633 = arith.negf %632 : vector<8x32xf32>
    %634 = math.exp %633 : vector<8x32xf32>
    %cst_278 = arith.constant 1.000000e+00 : f32
    %635 = vector.broadcast %cst_278 : f32 to vector<8x32xf32>
    %636 = arith.addf %635, %634 : vector<8x32xf32>
    %637 = arith.divf %635, %636 : vector<8x32xf32>
    %638 = vector.extract_strided_slice %625 {offsets = [0, 64], sizes = [8, 32], strides = [1, 1]} : vector<8x128xf32> to vector<8x32xf32>
    %639 = math.tanh %638 : vector<8x32xf32>
    %640 = vector.extract_strided_slice %625 {offsets = [0, 96], sizes = [8, 32], strides = [1, 1]} : vector<8x128xf32> to vector<8x32xf32>
    %641 = arith.negf %640 : vector<8x32xf32>
    %642 = math.exp %641 : vector<8x32xf32>
    %cst_279 = arith.constant 1.000000e+00 : f32
    %643 = vector.broadcast %cst_279 : f32 to vector<8x32xf32>
    %644 = arith.addf %643, %642 : vector<8x32xf32>
    %645 = arith.divf %643, %644 : vector<8x32xf32>
    %c0_280 = arith.constant 0 : index
    %c0_281 = arith.constant 0 : index
    %646 = vector.load %arg7[%c0_280, %c0_281] : memref<8x32xf32, #tpu.memory_space<vmem>>, vector<8x32xf32>
    %647 = arith.mulf %637, %646 : vector<8x32xf32>
    %648 = arith.mulf %631, %639 : vector<8x32xf32>
    %649 = arith.addf %647, %648 : vector<8x32xf32>
    %650 = math.tanh %649 : vector<8x32xf32>
    %651 = arith.mulf %645, %650 : vector<8x32xf32>
    %c0_282 = arith.constant 0 : index
    %c0_283 = arith.constant 0 : index
    %652 = vector.load %arg7[%c0_282, %c0_283] : memref<8x32xf32, #tpu.memory_space<vmem>>, vector<8x32xf32>
    tpu.vector_store %arg7[%c0_282, %c0_283], %649 {strides = array<i32>} : memref<8x32xf32, #tpu.memory_space<vmem>>, vector<8x32xf32>,
    %c0_284 = arith.constant 0 : index
    %c0_285 = arith.constant 0 : index
    %653 = vector.load %arg6[%c0_284, %c0_285] : memref<8x32xf32, #tpu.memory_space<vmem>>, vector<8x32xf32>
    tpu.vector_store %arg6[%c0_284, %c0_285], %651 {strides = array<i32>} : memref<8x32xf32, #tpu.memory_space<vmem>>, vector<8x32xf32>,
    %654 = arith.truncf %651 : vector<8x32xf32> to vector<8x32xbf16>
    %655 = arith.index_cast %c15_i32 : i32 to index
    %c0_286 = arith.constant 0 : index
    %c0_287 = arith.constant 0 : index
    %656 = vector.load %arg8[%655, %c0_286, %c0_287] : memref<16x8x32xbf16, #tpu.memory_space<vmem>>, vector<1x8x32xbf16>
    %657 = vector.shape_cast %656 : vector<1x8x32xbf16> to vector<8x32xbf16>
    %658 = vector.shape_cast %654 : vector<8x32xbf16> to vector<1x8x32xbf16>
    tpu.vector_store %arg8[%655, %c0_286, %c0_287], %658 {strides = array<i32>} : memref<16x8x32xbf16, #tpu.memory_space<vmem>>, vector<1x8x32xbf16>,
    %c16_i32 = arith.constant 16 : i32
    %c0_288 = arith.constant 0 : index
    %c0_289 = arith.constant 0 : index
    %c0_290 = arith.constant 0 : index
    %659 = vector.load %arg8[%c0_288, %c0_289, %c0_290] : memref<16x8x32xbf16, #tpu.memory_space<vmem>>, vector<16x8x32xbf16>
    %660 = vector.shape_cast %659 : vector<16x8x32xbf16> to vector<128x32xbf16>
    %c0_291 = arith.constant 0 : index
    %c0_292 = arith.constant 0 : index
    %661 = vector.load %arg3[%c0_291, %c0_292] : memref<32x5xbf16, #tpu.memory_space<vmem>>, vector<32x5xbf16>
    %cst_293 = arith.constant dense<0.000000e+00> : vector<128x5xf32>
    %662 = tpu.matmul %660, %661, %cst_293 {dimension_numbers = #tpu.dot_dimension_numbers<[1], [0], [0], [1], [0, 0, 1, 1], [], []>} : vector<128x32xbf16>, vector<32x5xbf16>, vector<128x5xf32> -> vector<128x5xf32>
    %c0_294 = arith.constant 0 : index
    %c0_295 = arith.constant 0 : index
    %663 = vector.load %arg4[%c0_294, %c0_295] : memref<1x5xf32, #tpu.memory_space<vmem>>, vector<1x5xf32>
    %664 = vector.shape_cast %663 : vector<1x5xf32> to vector<5xf32>
    %665 = vector.shape_cast %664 : vector<5xf32> to vector<1x5xf32>
    %666 = vector.broadcast %665 : vector<1x5xf32> to vector<128x5xf32>
    %667 = arith.addf %662, %666 : vector<128x5xf32>
    %cst_296 = arith.constant dense<0xFF800000> : vector<128xf32>
    %668 = vector.multi_reduction <maximumf>, %667, %cst_296 [1] : vector<128x5xf32> to vector<128xf32>
    %669 = vector.shape_cast %668 : vector<128xf32> to vector<128x1xf32>
    %670 = vector.broadcast %669 : vector<128x1xf32> to vector<128x5xf32>
    %671 = arith.subf %667, %670 : vector<128x5xf32>
    %672 = math.exp %671 : vector<128x5xf32>
    %cst_297 = arith.constant dense<0.000000e+00> : vector<128xf32>
    %673 = vector.multi_reduction <add>, %672, %cst_297 [1] : vector<128x5xf32> to vector<128xf32>
    %674 = vector.shape_cast %673 : vector<128xf32> to vector<128x1xf32>
    %675 = math.log %674 : vector<128x1xf32>
    %676 = vector.broadcast %675 : vector<128x1xf32> to vector<128x5xf32>
    %677 = arith.subf %671, %676 : vector<128x5xf32>
    %678 = vector.shape_cast %677 : vector<128x5xf32> to vector<16x8x5xf32>
    %c0_298 = arith.constant 0 : index
    %c0_299 = arith.constant 0 : index
    %c0_300 = arith.constant 0 : index
    %679 = vector.load %arg5[%c0_298, %c0_299, %c0_300] : memref<16x8x5xf32, #tpu.memory_space<vmem>>, vector<16x8x5xf32>
    tpu.vector_store %arg5[%c0_298, %c0_299, %c0_300], %678 {strides = array<i32>} : memref<16x8x5xf32, #tpu.memory_space<vmem>>, vector<16x8x5xf32>,
    return
  }
  func.func @transform_0(%arg0: i32) -> (i32, i32, i32) {
    %c0_i32 = arith.constant 0 : i32
    %c0_i32_0 = arith.constant 0 : i32
    %c0_i32_1 = arith.constant 0 : i32
    return %arg0, %c0_i32, %c0_i32_0 : i32, i32, i32
  }
  func.func @transform_1(%arg0: i32) -> (i32, i32) {
    %c0_i32 = arith.constant 0 : i32
    %c0_i32_0 = arith.constant 0 : i32
    %c0_i32_1 = arith.constant 0 : i32
    return %c0_i32, %c0_i32_0 : i32, i32
  }
  func.func @transform_2(%arg0: i32) -> (i32, i32) {
    %c0_i32 = arith.constant 0 : i32
    %c0_i32_0 = arith.constant 0 : i32
    %c0_i32_1 = arith.constant 0 : i32
    return %c0_i32, %c0_i32_0 : i32, i32
  }
  func.func @transform_3(%arg0: i32) -> (i32, i32) {
    %c0_i32 = arith.constant 0 : i32
    %c0_i32_0 = arith.constant 0 : i32
    %c0_i32_1 = arith.constant 0 : i32
    return %c0_i32, %c0_i32_0 : i32, i32
  }
  func.func @transform_4(%arg0: i32) -> (i32, i32, i32) {
    %c0_i32 = arith.constant 0 : i32
    %c0_i32_0 = arith.constant 0 : i32
    %c0_i32_1 = arith.constant 0 : i32
    return %arg0, %c0_i32, %c0_i32_0 : i32, i32, i32
  }
}

</mosaic_0001>

<llo_original>
// kernel: network_forward.2
$region0: #{network_forward.2}
  #allocation0 [shape = 'u32[]', space=smem, size = 0x4, offset = 0x4, fixed_abs, tag = 'smem constant byte address 0x4 - core index']
  #allocation1 [shape = 'u32[144,128]{1,0:T(1,128)}', space=vmem, size = 0x12000, scoped, tag = 'internal scratch']
  #allocation2 [shape = 'f32[18,32]{1,0:T(8,128)}', space=vmem, size = 0x3000, scoped, tag = 'scratch operand']
  %s0 = inlined_call_operand.vmem [shape: f32[2,16,4], index: 0, kind: input, shape index: {}]
  %s1 = inlined_call_operand.vmem [shape: bf16[12,32], index: 1, kind: input, shape index: {}]
  %s2 = inlined_call_operand.vmem [shape: f32[1,32], index: 2, kind: input, shape index: {}]
  %s3 = inlined_call_operand.vmem [shape: bf16[96,32], index: 3, kind: input, shape index: {}]
  %s4 = inlined_call_operand.vmem [shape: f32[1,32], index: 4, kind: input, shape index: {}]
  %s5 = inlined_call_operand.vmem [shape: bf16[32,128], index: 5, kind: input, shape index: {}]
  %s6 = inlined_call_operand.vmem [shape: f32[1,128], index: 6, kind: input, shape index: {}]
  %s7 = inlined_call_operand.vmem [shape: f32[2,16,128], index: 7, kind: output, shape index: {}]
  %s8 = sld [smem:[#allocation0]]
  $region61: #{network_forward.2} parent=0
    _
  %s10 = ssub.s32 1, %s8
  %s11 = scalar_select 0, %s10, %s8
  loop: start=0, step=1, limit=4
  $region2: #{network_forward.2} parent=0 // loop_pre_header
    _
  $region3: #{network_forward.2} parent=0 // loop_header
    %s13 = sphi 0, %s17
    %p14 = scmp.ge.s32.totalorder %s13, 4
    %s23 = sphi 0, %s25
    %s26 = sphi 0, %s23
    %s27 = sphi 0, %s26
    %s43 = sphi 0, %s27
    %s47 = sphi 0, %s47
    %s49 = sphi 0, %s47
    %s50 = sphi 0, %s49
    %s64 = sphi 0, %s50
    %s68 = sphi 0, %s68
    %s70 = sphi 0, %s68
    %s71 = sphi 0, %s70
    %s85 = sphi 0, %s71
    %s89 = sphi 0, %s89
    %s91 = sphi 0, %s89
    %s92 = sphi 0, %s91
    %s106 = sphi 0, %s92
    %s110 = sphi 0, %s110
    %s112 = sphi 0, %s110
    %s113 = sphi 0, %s112
    %s127 = sphi 0, %s113
    %s131 = sphi 0, %s131
    %s133 = sphi 0, %s131
    %s134 = sphi 0, %s133
    %s148 = sphi 0, %s134
    %s152 = sphi 0, %s152
    %s154 = sphi 0, %s152
    %s155 = sphi 0, %s154
    %s169 = sphi 0, %s155
    %s175 = sphi 0, %s177
    %s178 = sphi 0, %s175
    %s179 = sphi 0, %s178
    %s195 = sphi 0, %s179
  $region4: #{network_forward.2} parent=0 // loop_header_branch
    %16 = sbr.rel (%p14) target = $region8
  $region5: #{network_forward.2} parent=0 // loop_body
    %s18 = ssub.s32 %s13, 1
    %s19 = ssub.s32 %s13, 2
    %s20 = sadd.s32 %s13, 1
    %s21 = ssub.s32 %s13, %s20
    %p22 = scmp.eq.s32.totalorder %s21, 0
    %s24 = sadd.s32 %s23, 1
    %s25 = scalar_select %p22, %s23, %s24
    %p28 = pneg %p22
    %p29 = scmp.eq.s32.totalorder %s13, 1
    %p30 = por %p28, %p29
    %p31 = scmp.ne.s32.totalorder %s23, %s26
    %p32 = scmp.eq.s32.totalorder %s13, 0
    %p33 = por %p31, %p32
    %p34 = scmp.ne.s32.totalorder %s23, %s26
    %p35 = scmp.eq.s32.totalorder %s18, 1
    %p36 = por %p34, %p35
    %p37 = scmp.ne.s32.totalorder %s26, %s27
    %p38 = scmp.eq.s32.totalorder %s18, 0
    %p39 = por %p37, %p38
    %p40 = scmp.ne.s32.totalorder %s26, %s27
    %p41 = scmp.eq.s32.totalorder %s19, 1
    %p42 = por %p40, %p41
    %p44 = scmp.ne.s32.totalorder %s27, %s43
    %p45 = scmp.eq.s32.totalorder %s19, 0
    %p46 = por %p44, %p45
    %s48 = sadd.s32 %s47, 1
    %p51 = scmp.eq.s32.totalorder %s13, 1
    %p52 = scmp.ne.s32.totalorder %s47, %s49
    %p53 = scmp.eq.s32.totalorder %s13, 0
    %p54 = por %p52, %p53
    %p55 = scmp.ne.s32.totalorder %s47, %s49
    %p56 = scmp.eq.s32.totalorder %s18, 1
    %p57 = por %p55, %p56
    %p58 = scmp.ne.s32.totalorder %s49, %s50
    %p59 = scmp.eq.s32.totalorder %s18, 0
    %p60 = por %p58, %p59
    %p61 = scmp.ne.s32.totalorder %s49, %s50
    %p62 = scmp.eq.s32.totalorder %s19, 1
    %p63 = por %p61, %p62
    %p65 = scmp.ne.s32.totalorder %s50, %s64
    %p66 = scmp.eq.s32.totalorder %s19, 0
    %p67 = por %p65, %p66
    %s69 = sadd.s32 %s68, 1
    %p72 = scmp.eq.s32.totalorder %s13, 1
    %p73 = scmp.ne.s32.totalorder %s68, %s70
    %p74 = scmp.eq.s32.totalorder %s13, 0
    %p75 = por %p73, %p74
    %p76 = scmp.ne.s32.totalorder %s68, %s70
    %p77 = scmp.eq.s32.totalorder %s18, 1
    %p78 = por %p76, %p77
    %p79 = scmp.ne.s32.totalorder %s70, %s71
    %p80 = scmp.eq.s32.totalorder %s18, 0
    %p81 = por %p79, %p80
    %p82 = scmp.ne.s32.totalorder %s70, %s71
    %p83 = scmp.eq.s32.totalorder %s19, 1
    %p84 = por %p82, %p83
    %p86 = scmp.ne.s32.totalorder %s71, %s85
    %p87 = scmp.eq.s32.totalorder %s19, 0
    %p88 = por %p86, %p87
    %s90 = sadd.s32 %s89, 1
    %p93 = scmp.eq.s32.totalorder %s13, 1
    %p94 = scmp.ne.s32.totalorder %s89, %s91
    %p95 = scmp.eq.s32.totalorder %s13, 0
    %p96 = por %p94, %p95
    %p97 = scmp.ne.s32.totalorder %s89, %s91
    %p98 = scmp.eq.s32.totalorder %s18, 1
    %p99 = por %p97, %p98
    %p100 = scmp.ne.s32.totalorder %s91, %s92
    %p101 = scmp.eq.s32.totalorder %s18, 0
    %p102 = por %p100, %p101
    %p103 = scmp.ne.s32.totalorder %s91, %s92
    %p104 = scmp.eq.s32.totalorder %s19, 1
    %p105 = por %p103, %p104
    %p107 = scmp.ne.s32.totalorder %s92, %s106
    %p108 = scmp.eq.s32.totalorder %s19, 0
    %p109 = por %p107, %p108
    %s111 = sadd.s32 %s110, 1
    %p114 = scmp.eq.s32.totalorder %s13, 1
    %p115 = scmp.ne.s32.totalorder %s110, %s112
    %p116 = scmp.eq.s32.totalorder %s13, 0
    %p117 = por %p115, %p116
    %p118 = scmp.ne.s32.totalorder %s110, %s112
    %p119 = scmp.eq.s32.totalorder %s18, 1
    %p120 = por %p118, %p119
    %p121 = scmp.ne.s32.totalorder %s112, %s113
    %p122 = scmp.eq.s32.totalorder %s18, 0
    %p123 = por %p121, %p122
    %p124 = scmp.ne.s32.totalorder %s112, %s113
    %p125 = scmp.eq.s32.totalorder %s19, 1
    %p126 = por %p124, %p125
    %p128 = scmp.ne.s32.totalorder %s113, %s127
    %p129 = scmp.eq.s32.totalorder %s19, 0
    %p130 = por %p128, %p129
    %s132 = sadd.s32 %s131, 1
    %p135 = scmp.eq.s32.totalorder %s13, 1
    %p136 = scmp.ne.s32.totalorder %s131, %s133
    %p137 = scmp.eq.s32.totalorder %s13, 0
    %p138 = por %p136, %p137
    %p139 = scmp.ne.s32.totalorder %s131, %s133
    %p140 = scmp.eq.s32.totalorder %s18, 1
    %p141 = por %p139, %p140
    %p142 = scmp.ne.s32.totalorder %s133, %s134
    %p143 = scmp.eq.s32.totalorder %s18, 0
    %p144 = por %p142, %p143
    %p145 = scmp.ne.s32.totalorder %s133, %s134
    %p146 = scmp.eq.s32.totalorder %s19, 1
    %p147 = por %p145, %p146
    %p149 = scmp.ne.s32.totalorder %s134, %s148
    %p150 = scmp.eq.s32.totalorder %s19, 0
    %p151 = por %p149, %p150
    %s153 = sadd.s32 %s152, 1
    %p156 = scmp.eq.s32.totalorder %s13, 1
    %p157 = scmp.ne.s32.totalorder %s152, %s154
    %p158 = scmp.eq.s32.totalorder %s13, 0
    %p159 = por %p157, %p158
    %p160 = scmp.ne.s32.totalorder %s152, %s154
    %p161 = scmp.eq.s32.totalorder %s18, 1
    %p162 = por %p160, %p161
    %p163 = scmp.ne.s32.totalorder %s154, %s155
    %p164 = scmp.eq.s32.totalorder %s18, 0
    %p165 = por %p163, %p164
    %p166 = scmp.ne.s32.totalorder %s154, %s155
    %p167 = scmp.eq.s32.totalorder %s19, 1
    %p168 = por %p166, %p167
    %p170 = scmp.ne.s32.totalorder %s155, %s169
    %p171 = scmp.eq.s32.totalorder %s19, 0
    %p172 = por %p170, %p171
    %s173 = ssub.s32 %s13, %s20
    %p174 = scmp.eq.s32.totalorder %s173, 0
    %s176 = sadd.s32 %s175, 1
    %s177 = scalar_select %p174, %s175, %s176
    %p180 = pneg %p174
    %p181 = scmp.eq.s32.totalorder %s13, 1
    %p182 = por %p180, %p181
    %p183 = scmp.ne.s32.totalorder %s175, %s178
    %p184 = scmp.eq.s32.totalorder %s13, 0
    %p185 = por %p183, %p184
    %p186 = scmp.ne.s32.totalorder %s175, %s178
    %p187 = scmp.eq.s32.totalorder %s18, 1
    %p188 = por %p186, %p187
    %p189 = scmp.ne.s32.totalorder %s178, %s179
    %p190 = scmp.eq.s32.totalorder %s18, 0
    %p191 = por %p189, %p190
    %p192 = scmp.ne.s32.totalorder %s178, %s179
    %p193 = scmp.eq.s32.totalorder %s19, 1
    %p194 = por %p192, %p193
    %p196 = scmp.ne.s32.totalorder %s179, %s195
    %p197 = scmp.eq.s32.totalorder %s19, 0
    %p198 = por %p196, %p197
    %p199 = scmp.le.s32.totalorder 1, %s13
    %p200 = scmp.lt.s32.totalorder %s13, 3
    %p201 = pnand %p199, %p200
    %p202 = pneg %p201
    // Predicated region
    $region9: #{network_forward.2} parent=5 // pred_check
      _
    $region10: #{network_forward.2} parent=5 // pred_check_branch
      %204 = sbr.rel (%p201) target = $region12
    $region11: #{network_forward.2} parent=5 // pred_region
      %s205 = ssub.s32 %s13, 1
      // Predicated region
      $region13: #{network_forward.2} parent=11 // pred_check
        %p206 = pneg %p60
      $region14: #{network_forward.2} parent=11 // pred_check_branch
        %208 = sbr.rel (%p206) target = $region16
      $region15: #{network_forward.2} parent=11 // pred_region
        _
      $region16: #{network_forward.2} parent=11 // pred_fallthru
        _
      // Predicated region
      $region17: #{network_forward.2} parent=11 // pred_check
        %p209 = pneg %p81
      $region18: #{network_forward.2} parent=11 // pred_check_branch
        %211 = sbr.rel (%p209) target = $region20
      $region19: #{network_forward.2} parent=11 // pred_region
        _
      $region20: #{network_forward.2} parent=11 // pred_fallthru
        _
      // Predicated region
      $region21: #{network_forward.2} parent=11 // pred_check
        %p212 = pneg %p102
      $region22: #{network_forward.2} parent=11 // pred_check_branch
        %214 = sbr.rel (%p212) target = $region24
      $region23: #{network_forward.2} parent=11 // pred_region
        _
      $region24: #{network_forward.2} parent=11 // pred_fallthru
        _
      // Predicated region
      $region25: #{network_forward.2} parent=11 // pred_check
        %p215 = pneg %p123
      $region26: #{network_forward.2} parent=11 // pred_check_branch
        %217 = sbr.rel (%p215) target = $region28
      $region27: #{network_forward.2} parent=11 // pred_region
        _
      $region28: #{network_forward.2} parent=11 // pred_fallthru
        _
      // Predicated region
      $region29: #{network_forward.2} parent=11 // pred_check
        %p218 = pneg %p144
      $region30: #{network_forward.2} parent=11 // pred_check_branch
        %220 = sbr.rel (%p218) target = $region32
      $region31: #{network_forward.2} parent=11 // pred_region
        _
      $region32: #{network_forward.2} parent=11 // pred_fallthru
        _
      // Predicated region
      $region33: #{network_forward.2} parent=11 // pred_check
        %p221 = pneg %p165
      $region34: #{network_forward.2} parent=11 // pred_check_branch
        %223 = sbr.rel (%p221) target = $region36
      $region35: #{network_forward.2} parent=11 // pred_region
        _
      $region36: #{network_forward.2} parent=11 // pred_fallthru
        _
    $region12: #{network_forward.2} parent=5 // pred_fallthru
      _
    %p224 = scmp.lt.s32.totalorder %s13, 2
    // Predicated region
    $region37: #{network_forward.2} parent=5 // pred_check
      %p225 = pneg %p224
    $region38: #{network_forward.2} parent=5 // pred_check_branch
      %227 = sbr.rel (%p225) target = $region40
    $region39: #{network_forward.2} parent=5 // pred_region
      // Predicated region
      $region41: #{network_forward.2} parent=39 // pred_check
        %p228 = pneg %p33
      $region42: #{network_forward.2} parent=39 // pred_check_branch
        %230 = sbr.rel (%p228) target = $region44
      $region43: #{network_forward.2} parent=39 // pred_region
        %p231 = scmp.lt.s32.totalorder %s13, 1
        %s232 = scalar_select %p231, %s13, 1
        %s233 = smul.addr %s232, 2
        %s234 = smul.addr %s233, 8
        %s235 = scalar_lea.vmem %s0, %s234
      $region44: #{network_forward.2} parent=39 // pred_fallthru
        _
    $region40: #{network_forward.2} parent=5 // pred_fallthru
      _
    %p236 = scmp.le.s32.totalorder 1, %s13
    %p237 = scmp.lt.s32.totalorder %s13, 3
    %p238 = pnand %p236, %p237
    %p239 = pneg %p238
    // Predicated region
    $region45: #{network_forward.2} parent=5 // pred_check
      _
    $region46: #{network_forward.2} parent=5 // pred_check_branch
      %241 = sbr.rel (%p238) target = $region48
    $region47: #{network_forward.2} parent=5 // pred_region
      %s242 = ssub.s32 %s13, 1
      %p243 = scmp.lt.s32.totalorder %s18, 1
      %s244 = scalar_select %p243, %s18, 1
      %s245 = smul.addr %s244, 2
      %s246 = smul.addr %s245, 8
      %s247 = scalar_lea.vmem %s0, %s246
      %p248 = pneg %p39
      %p249 = pneg %p36
      %p250 = pneg %p60
      %p251 = pneg %p57
      %p252 = pneg %p81
      %p253 = pneg %p78
      %p254 = pneg %p102
      %p255 = pneg %p99
      %p256 = pneg %p123
      %p257 = pneg %p120
      %p258 = pneg %p144
      %p259 = pneg %p141
      %p260 = pneg %p165
      %p261 = pneg %p162
      %p262 = pneg %p191
      %p263 = pneg %p188
      %p264 = scmp.lt.s32.totalorder %s18, 1
      %s265 = scalar_select %p264, %s18, 1
      %s266 = smul.addr %s265, 2
      %s267 = smul.addr %s266, 8
      %s268 = scalar_lea.vmem %s7, %s267
      %p269 = scmp.lt.s32.totalorder %s18, 1
      %s270 = scalar_select %p269, %s18, 1
      %s271 = smul.addr %s270, 2
      %s272 = smul.addr %s271, 8
      %s273 = scalar_lea.vmem %s0, %s272
      %p274 = scmp.lt.s32.totalorder %s18, 1
      %s275 = scalar_select %p274, %s18, 1
      %s276 = smul.addr %s275, 2
      %s277 = smul.addr %s276, 8
      %s278 = scalar_lea.vmem %s7, %s277
      %vm280 = vcmask 261120
      %281 = vst.msk [vmem:[#allocation2] sm:$0xff] %vm280, 0.0
      %282 = vst.msk [vmem:[#allocation2 + $0x8] sm:$0xff] %vm280, 0.0
      %vm283 = vcmask 254976
      %284 = vst.msk [vmem:[#allocation2 + $0x10] sm:$0x3] %vm283, 0.0
      %v285 = vld [vmem:[%s273] sm:$0xff]
      %v286 = vld [vmem:[%s273 + $0x8] sm:$0xff]
      %vm287 = vcmask 31744
      %288 = vst.msk [vmem:[#allocation2 + $0x1] sm:$0xff] %vm287, %v285
      %289 = vst.msk [vmem:[#allocation2 + $0x9] sm:$0xff] %vm287, %v286
      %v290 = vld [vmem:[#allocation2] sm:$0xff]
      %v291 = vld [vmem:[#allocation2 + $0x8] sm:$0xff]
      %v292 = vld [vmem:[#allocation2 + $0x1] sm:$0xff]
      %v293 = vld [vmem:[#allocation2 + $0x9] sm:$0xff]
      %v294 = vld [vmem:[#allocation2 + $0x2] sm:$0xff]
      %v295 = vld [vmem:[#allocation2 + $0xa] sm:$0xff]
      %298 = vrot.lane.b32.xlu0 %v292, 4
      %v299 = vpop.permute.xlu0 %298
      %300 = vrot.lane.b32.xlu0 %v293, 4
      %v301 = vpop.permute.xlu0 %300
      %306 = vrot.lane.b32.xlu0 %v294, 8
      %v307 = vpop.permute.xlu0 %306
      %308 = vrot.lane.b32.xlu0 %v295, 8
      %v309 = vpop.permute.xlu0 %308
      %v312 = vsel %vm287, %v290, %v299
      %v313 = vsel %vm287, %v291, %v301
      %vm314 = vcmask 64512
      %v315 = vsel %vm314, %v312, %v307
      %v316 = vsel %vm314, %v313, %v309
      %v317 = vpack.c.bf16 %v316, %v315
      %v318 = vld [vmem:[%s1] sm:$0xf]
      %v319 = vld [vmem:[%s1 + $0x4] sm:$0x3]
      %v320 = vld [vmem:[%s2] sm:$0x1]
      %v322 = vlaneseq
      %v323 = vshrl.u32 %v322, 7
      %v324 = vsub.s32 0, %v323
      %v325 = vrot.slane %v320, %v324
      %v329 = vunpack.c.l.b16 %v318
      %v330 = vunpack.c.l.b16 %v319
      %v331 = vpack.c.b16 %v330, %v329
      %vm332 = vcmask 97280
      %v334 = vsel %vm332, %v317, 0
      %vm336 = vcmask 1045504
      %v338 = vsel %vm336, %v331, 0
      %340 = vmatprep.subr.bf16.mxu0 0
      %341 = vmatpush1.bf16.msra.mxu0 %v338
      %342 = vmatprep.subr.bf16.mxu0 0
      %343 = vmatpush1.bf16.msra.mxu0 0
      %344 = vmatprep.subr.bf16.mxu0 0
      %345 = vmatpush1.bf16.msra.mxu0 0
      %346 = vmatprep.subr.bf16.mxu0 0
      %347 = vmatpush1.bf16.msra.mxu0 0
      %348 = vmatprep.subr.bf16.mxu0 0
      %349 = vmatpush1.bf16.msra.mxu0 0
      %350 = vmatprep.subr.bf16.mxu0 0
      %351 = vmatpush1.bf16.msra.mxu0 0
      %352 = vmatprep.subr.bf16.mxu0 0
      %353 = vmatpush1.bf16.msra.mxu0 0
      %354 = vmatprep.subr.bf16.mxu0 0
      %355 = vmatpush1.bf16.msra.mxu0 0
      %356 = vmatprep.subr.bf16.mxu0 0
      %357 = vmatpush1.bf16.msra.mxu0 0
      %358 = vmatprep.subr.bf16.mxu0 0
      %359 = vmatpush1.bf16.msra.mxu0 0
      %360 = vmatprep.subr.bf16.mxu0 0
      %361 = vmatpush1.bf16.msra.mxu0 0
      %362 = vmatprep.subr.bf16.mxu0 0
      %363 = vmatpush1.bf16.msra.mxu0 0
      %364 = vmatprep.subr.bf16.mxu0 0
      %365 = vmatpush1.bf16.msra.mxu0 0
      %366 = vmatprep.subr.bf16.mxu0 0
      %367 = vmatpush1.bf16.msra.mxu0 0
      %368 = vmatprep.subr.bf16.mxu0 0
      %369 = vmatpush1.bf16.msra.mxu0 0
      %370 = vmatprep.subr.bf16.mxu0 0
      %371 = vmatpush1.bf16.msra.mxu0 0
      %372 = vmatprep.mubr.bf16.mxu0 0
      %373 = vmatmul.mubr.bf16.gmra.mrb[0].mxu0 %v334
      %v374 = vpop.f32.mrb[0].mxu0
      %v375 = vadd.f32 %v325, %v374
      %v376 = vpop.f32.mrb[0].mxu0
      %v377 = vpop.f32.mrb[0].mxu0
      %v378 = vadd.f32 %v325, %v377
      %v379 = vpop.f32.mrb[0].mxu0
      %380 = vdwg.mxu0
      %v381 = vmax.f32 %v375, 0.0
      %v382 = vmax.f32 %v378, 0.0
      %383 = vst.msk [vmem:[#allocation2 + $0x1] sm:$0xff] %vm280, %v381
      %384 = vst.msk [vmem:[#allocation2 + $0x9] sm:$0xff] %vm280, %v382
      %v385 = vld [vmem:[#allocation2] sm:$0xff]
      %v386 = vld [vmem:[#allocation2 + $0x8] sm:$0xff]
      %v387 = vld [vmem:[#allocation2 + $0x1] sm:$0xff]
      %v388 = vld [vmem:[#allocation2 + $0x9] sm:$0xff]
      %v389 = vld [vmem:[#allocation2 + $0x2] sm:$0xff]
      %v390 = vld [vmem:[#allocation2 + $0xa] sm:$0xff]
      %393 = vrot.lane.b32.xlu0 %v387, 32
      %v394 = vpop.permute.xlu0 %393
      %395 = vrot.lane.b32.xlu0 %v388, 32
      %v396 = vpop.permute.xlu0 %395
      %401 = vrot.lane.b32.xlu0 %v389, 64
      %v402 = vpop.permute.xlu0 %401
      %403 = vrot.lane.b32.xlu0 %v390, 64
      %v404 = vpop.permute.xlu0 %403
      %v407 = vsel %vm280, %v385, %v394
      %v408 = vsel %vm280, %v386, %v396
      %vm409 = vcmask 523264
      %v410 = vsel %vm409, %v407, %v402
      %v411 = vsel %vm409, %v408, %v404
      %v412 = vpack.c.bf16 %v411, %v410
      %v413 = vld [vmem:[%s3] sm:$0xf]
      %v414 = vld [vmem:[%s3 + $0x4] sm:$0xf]
      %v415 = vld [vmem:[%s3 + $0x8] sm:$0xf]
      %v416 = vld [vmem:[%s3 + $0xc] sm:$0xf]
      %v417 = vld [vmem:[%s3 + $0x10] sm:$0xf]
      %v418 = vld [vmem:[%s3 + $0x14] sm:$0xf]
      %v419 = vld [vmem:[%s3 + $0x18] sm:$0xf]
      %v420 = vld [vmem:[%s3 + $0x1c] sm:$0xf]
      %v421 = vld [vmem:[%s3 + $0x20] sm:$0xf]
      %v422 = vld [vmem:[%s3 + $0x24] sm:$0xf]
      %v423 = vld [vmem:[%s3 + $0x28] sm:$0xf]
      %v424 = vld [vmem:[%s3 + $0x2c] sm:$0xf]
      %v425 = vld [vmem:[%s4] sm:$0x1]
      %v427 = vlaneseq
      %v428 = vshrl.u32 %v427, 7
      %v429 = vsub.s32 0, %v428
      %v430 = vrot.slane %v425, %v429
      %v444 = vunpack.c.l.b16 %v413
      %v445 = vunpack.c.l.b16 %v414
      %v446 = vunpack.c.l.b16 %v415
      %v447 = vunpack.c.l.b16 %v416
      %v448 = vunpack.c.l.b16 %v417
      %v449 = vunpack.c.l.b16 %v418
      %v450 = vunpack.c.l.b16 %v419
      %v451 = vunpack.c.l.b16 %v420
      %v452 = vunpack.c.l.b16 %v421
      %v453 = vunpack.c.l.b16 %v422
      %v454 = vunpack.c.l.b16 %v423
      %v455 = vunpack.c.l.b16 %v424
      %v456 = vpack.c.b16 %v445, %v444
      %v457 = vpack.c.b16 %v447, %v446
      %v458 = vpack.c.b16 %v449, %v448
      %v459 = vpack.c.b16 %v451, %v450
      %v460 = vpack.c.b16 %v453, %v452
      %v461 = vpack.c.b16 %v455, %v454
      %vm468 = vcmask 785408
      %v470 = vsel %vm468, %v412, 0
      %472 = vmatprep.subr.bf16.mxu0 0
      %473 = vmatpush1.bf16.msra.mxu0 %v456
      %474 = vmatprep.subr.bf16.mxu0 0
      %475 = vmatpush1.bf16.msra.mxu0 %v457
      %476 = vmatprep.subr.bf16.mxu0 0
      %477 = vmatpush1.bf16.msra.mxu0 %v458
      %478 = vmatprep.subr.bf16.mxu0 0
      %479 = vmatpush1.bf16.msra.mxu0 %v459
      %480 = vmatprep.subr.bf16.mxu0 0
      %481 = vmatpush1.bf16.msra.mxu0 %v460
      %482 = vmatprep.subr.bf16.mxu0 0
      %483 = vmatpush1.bf16.msra.mxu0 %v461
      %484 = vmatprep.subr.bf16.mxu0 0
      %485 = vmatpush1.bf16.msra.mxu0 0
      %486 = vmatprep.subr.bf16.mxu0 0
      %487 = vmatpush1.bf16.msra.mxu0 0
      %488 = vmatprep.subr.bf16.mxu0 0
      %489 = vmatpush1.bf16.msra.mxu0 0
      %490 = vmatprep.subr.bf16.mxu0 0
      %491 = vmatpush1.bf16.msra.mxu0 0
      %492 = vmatprep.subr.bf16.mxu0 0
      %493 = vmatpush1.bf16.msra.mxu0 0
      %494 = vmatprep.subr.bf16.mxu0 0
      %495 = vmatpush1.bf16.msra.mxu0 0
      %496 = vmatprep.subr.bf16.mxu0 0
      %497 = vmatpush1.bf16.msra.mxu0 0
      %498 = vmatprep.subr.bf16.mxu0 0
      %499 = vmatpush1.bf16.msra.mxu0 0
      %500 = vmatprep.subr.bf16.mxu0 0
      %501 = vmatpush1.bf16.msra.mxu0 0
      %502 = vmatprep.subr.bf16.mxu0 0
      %503 = vmatpush1.bf16.msra.mxu0 0
      %504 = vmatprep.mubr.bf16.mxu0 0
      %505 = vmatmul.mubr.bf16.gmra.mrb[0].mxu0 %v470
      %v506 = vpop.f32.mrb[0].mxu0
      %v507 = vadd.f32 %v430, %v506
      %v508 = vpop.f32.mrb[0].mxu0
      %v509 = vpop.f32.mrb[0].mxu0
      %v510 = vadd.f32 %v430, %v509
      %v511 = vpop.f32.mrb[0].mxu0
      %512 = vdwg.mxu0
      %v513 = vmax.f32 %v507, 0.0
      %v514 = vmax.f32 %v510, 0.0
      %v515 = vpack.c.bf16 %v514, %v513
      %v516 = vld [vmem:[%s5] sm:$0xf]
      %v517 = vld [vmem:[%s5 + $0x4] sm:$0xf]
      %v518 = vld [vmem:[%s5 + $0x8] sm:$0xf]
      %v519 = vld [vmem:[%s5 + $0xc] sm:$0xf]
      %v520 = vld [vmem:[%s6] sm:$0x1]
      %v522 = vlaneseq
      %v523 = vshrl.u32 %v522, 7
      %v524 = vsub.s32 0, %v523
      %v525 = vrot.slane %v520, %v524
      %v531 = vunpack.c.l.b16 %v516
      %v532 = vunpack.c.l.b16 %v517
      %v533 = vunpack.c.l.b16 %v518
      %v534 = vunpack.c.l.b16 %v519
      %v535 = vpack.c.b16 %v532, %v531
      %v536 = vpack.c.b16 %v534, %v533
      %v540 = vsel %vm280, %v515, 0
      %542 = vmatprep.subr.bf16.mxu0 0
      %543 = vmatpush1.bf16.msra.mxu0 %v535
      %544 = vmatprep.subr.bf16.mxu0 0
      %545 = vmatpush1.bf16.msra.mxu0 %v536
      %546 = vmatprep.subr.bf16.mxu0 0
      %547 = vmatpush1.bf16.msra.mxu0 0
      %548 = vmatprep.subr.bf16.mxu0 0
      %549 = vmatpush1.bf16.msra.mxu0 0
      %550 = vmatprep.subr.bf16.mxu0 0
      %551 = vmatpush1.bf16.msra.mxu0 0
      %552 = vmatprep.subr.bf16.mxu0 0
      %553 = vmatpush1.bf16.msra.mxu0 0
      %554 = vmatprep.subr.bf16.mxu0 0
      %555 = vmatpush1.bf16.msra.mxu0 0
      %556 = vmatprep.subr.bf16.mxu0 0
      %557 = vmatpush1.bf16.msra.mxu0 0
      %558 = vmatprep.subr.bf16.mxu0 0
      %559 = vmatpush1.bf16.msra.mxu0 0
      %560 = vmatprep.subr.bf16.mxu0 0
      %561 = vmatpush1.bf16.msra.mxu0 0
      %562 = vmatprep.subr.bf16.mxu0 0
      %563 = vmatpush1.bf16.msra.mxu0 0
      %564 = vmatprep.subr.bf16.mxu0 0
      %565 = vmatpush1.bf16.msra.mxu0 0
      %566 = vmatprep.subr.bf16.mxu0 0
      %567 = vmatpush1.bf16.msra.mxu0 0
      %568 = vmatprep.subr.bf16.mxu0 0
      %569 = vmatpush1.bf16.msra.mxu0 0
      %570 = vmatprep.subr.bf16.mxu0 0
      %571 = vmatpush1.bf16.msra.mxu0 0
      %572 = vmatprep.subr.bf16.mxu0 0
      %573 = vmatpush1.bf16.msra.mxu0 0
      %574 = vmatprep.mubr.bf16.mxu0 0
      %575 = vmatmul.mubr.bf16.gmra.mrb[0].mxu0 %v540
      %v576 = vpop.f32.mrb[0].mxu0
      %v577 = vadd.f32 %v525, %v576
      %v578 = vpop.f32.mrb[0].mxu0
      %v579 = vpop.f32.mrb[0].mxu0
      %v580 = vadd.f32 %v525, %v579
      %v581 = vpop.f32.mrb[0].mxu0
      %582 = vdwg.mxu0
      %583 = vst [vmem:[%s278] sm:$0xff] %v577
      %584 = vst [vmem:[%s278 + $0x8] sm:$0xff] %v580
      %p585 = scmp.lt.s32.totalorder %s18, 1
      %s586 = scalar_select %p585, %s18, 1
      %s587 = smul.addr %s586, 2
      %s588 = smul.addr %s587, 8
      %s589 = scalar_lea.vmem %s7, %s588
      // Predicated region
      $region49: #{network_forward.2} parent=47 // pred_check
        %p590 = pneg %p188
      $region50: #{network_forward.2} parent=47 // pred_check_branch
        %592 = sbr.rel (%p590) target = $region52
      $region51: #{network_forward.2} parent=47 // pred_region
        _
      $region52: #{network_forward.2} parent=47 // pred_fallthru
        _
    $region48: #{network_forward.2} parent=5 // pred_fallthru
      _
    %p593 = scmp.le.s32.totalorder 2, %s13
    // Predicated region
    $region53: #{network_forward.2} parent=5 // pred_check
      %p594 = pneg %p593
    $region54: #{network_forward.2} parent=5 // pred_check_branch
      %596 = sbr.rel (%p594) target = $region56
    $region55: #{network_forward.2} parent=5 // pred_region
      %s597 = ssub.s32 %s13, 2
      // Predicated region
      $region57: #{network_forward.2} parent=55 // pred_check
        %p598 = pneg %p194
      $region58: #{network_forward.2} parent=55 // pred_check_branch
        %600 = sbr.rel (%p598) target = $region60
      $region59: #{network_forward.2} parent=55 // pred_region
        %p601 = scmp.lt.s32.totalorder %s19, 1
        %s602 = scalar_select %p601, %s19, 1
        %s603 = smul.addr %s602, 2
        %s604 = smul.addr %s603, 8
        %s605 = scalar_lea.vmem %s7, %s604
      $region60: #{network_forward.2} parent=55 // pred_fallthru
        _
    $region56: #{network_forward.2} parent=5 // pred_fallthru
      _
  $region6: #{network_forward.2} parent=0 // loop_footer
    %s17 = sadd.s32 1, %s13
  $region7: #{network_forward.2} parent=0 // loop_footer_branch
    %12 = sbr.rel target = $region3
  $region8: #{network_forward.2} parent=0 // loop_exit
    _

// kernel: network_forward.3
$region0: #{network_forward.3}
  #allocation0 [shape = 'u32[]', space=smem, size = 0x4, offset = 0x4, fixed_abs, tag = 'smem constant byte address 0x4 - core index']
  #allocation1 [shape = 'u32[144,128]{1,0:T(1,128)}', space=vmem, size = 0x12000, scoped, tag = 'internal scratch']
  #allocation2 [shape = 'f32[8,32]{1,0:T(8,128)}', space=vmem, size = 0x1000, scoped, tag = 'scratch operand']
  #allocation3 [shape = 'f32[8,32]{1,0:T(8,128)}', space=vmem, size = 0x1000, scoped, tag = 'scratch operand']
  #allocation4 [shape = 'bf16[16,8,32]{2,1,0:T(8,128)(2,1)}', space=vmem, size = 0x8000, scoped, tag = 'scratch operand']
  %s0 = inlined_call_operand.vmem [shape: f32[16,8,128], index: 0, kind: input, shape index: {}]
  %s1 = inlined_call_operand.vmem [shape: bf16[32,128], index: 1, kind: input, shape index: {}]
  %s2 = inlined_call_operand.vmem [shape: bf16[32,5], index: 2, kind: input, shape index: {}]
  %s3 = inlined_call_operand.vmem [shape: f32[1,5], index: 3, kind: input, shape index: {}]
  %s4 = inlined_call_operand.vmem [shape: f32[16,8,5], index: 4, kind: output, shape index: {}]
  %s5 = sld [smem:[#allocation0]]
  $region30: #{network_forward.3} parent=0
    _
  %s7 = ssub.s32 1, %s5
  %s8 = scalar_select 0, %s7, %s5
  // Predicated region
  $region2: #{network_forward.3} parent=0 // pred_check
    _
  $region3: #{network_forward.3} parent=0 // pred_check_branch
    %10 = sbr.rel (0) target = $region5
  $region4: #{network_forward.3} parent=0 // pred_region
    _
  $region5: #{network_forward.3} parent=0 // pred_fallthru
    _
  // Predicated region
  $region6: #{network_forward.3} parent=0 // pred_check
    _
  $region7: #{network_forward.3} parent=0 // pred_check_branch
    %12 = sbr.rel (0) target = $region9
  $region8: #{network_forward.3} parent=0 // pred_region
    _
  $region9: #{network_forward.3} parent=0 // pred_fallthru
    _
  // Predicated region
  $region10: #{network_forward.3} parent=0 // pred_check
    _
  $region11: #{network_forward.3} parent=0 // pred_check_branch
    %14 = sbr.rel (0) target = $region13
  $region12: #{network_forward.3} parent=0 // pred_region
    _
  $region13: #{network_forward.3} parent=0 // pred_fallthru
    _
  // Predicated region
  $region14: #{network_forward.3} parent=0 // pred_check
    _
  $region15: #{network_forward.3} parent=0 // pred_check_branch
    %16 = sbr.rel (0) target = $region17
  $region16: #{network_forward.3} parent=0 // pred_region
    _
  $region17: #{network_forward.3} parent=0 // pred_fallthru
    _
  %p18 = scmp.eq.s32.totalorder 0, 0
  // Predicated region
  $region18: #{network_forward.3} parent=0 // pred_check
    %p19 = pneg %p18
  $region19: #{network_forward.3} parent=0 // pred_check_branch
    %21 = sbr.rel (%p19) target = $region21
  $region20: #{network_forward.3} parent=0 // pred_region
    %vm22 = vcmask 261120
    %23 = vst.msk [vmem:[#allocation2] sm:$0xff] %vm22, 0.0
    %24 = vst.msk [vmem:[#allocation3] sm:$0xff] %vm22, 0.0
  $region21: #{network_forward.3} parent=0 // pred_fallthru
    _
  %v25 = vld [vmem:[%s0] sm:$0xff]
  %v26 = vld [vmem:[#allocation2] sm:$0xff]
  %v27 = vpack.c.bf16 %v26, %v26
  %v28 = vld [vmem:[%s1] sm:$0xf]
  %v29 = vld [vmem:[%s1 + $0x4] sm:$0xf]
  %v30 = vld [vmem:[%s1 + $0x8] sm:$0xf]
  %v31 = vld [vmem:[%s1 + $0xc] sm:$0xf]
  %v36 = vunpack.c.l.b16 %v28
  %v37 = vunpack.c.l.b16 %v29
  %v38 = vunpack.c.l.b16 %v30
  %v39 = vunpack.c.l.b16 %v31
  %v40 = vpack.c.b16 %v37, %v36
  %v41 = vpack.c.b16 %v39, %v38
  %vm44 = vcmask 261120
  %v46 = vsel %vm44, %v27, 0
  %48 = vmatprep.subr.bf16.mxu0 0
  %49 = vmatpush1.bf16.msra.mxu0 %v40
  %50 = vmatprep.subr.bf16.mxu0 0
  %51 = vmatpush1.bf16.msra.mxu0 %v41
  %52 = vmatprep.subr.bf16.mxu0 0
  %53 = vmatpush1.bf16.msra.mxu0 0
  %54 = vmatprep.subr.bf16.mxu0 0
  %55 = vmatpush1.bf16.msra.mxu0 0
  %56 = vmatprep.subr.bf16.mxu0 0
  %57 = vmatpush1.bf16.msra.mxu0 0
  %58 = vmatprep.subr.bf16.mxu0 0
  %59 = vmatpush1.bf16.msra.mxu0 0
  %60 = vmatprep.subr.bf16.mxu0 0
  %61 = vmatpush1.bf16.msra.mxu0 0
  %62 = vmatprep.subr.bf16.mxu0 0
  %63 = vmatpush1.bf16.msra.mxu0 0
  %64 = vmatprep.subr.bf16.mxu0 0
  %65 = vmatpush1.bf16.msra.mxu0 0
  %66 = vmatprep.subr.bf16.mxu0 0
  %67 = vmatpush1.bf16.msra.mxu0 0
  %68 = vmatprep.subr.bf16.mxu0 0
  %69 = vmatpush1.bf16.msra.mxu0 0
  %70 = vmatprep.subr.bf16.mxu0 0
  %71 = vmatpush1.bf16.msra.mxu0 0
  %72 = vmatprep.subr.bf16.mxu0 0
  %73 = vmatpush1.bf16.msra.mxu0 0
  %74 = vmatprep.subr.bf16.mxu0 0
  %75 = vmatpush1.bf16.msra.mxu0 0
  %76 = vmatprep.subr.bf16.mxu0 0
  %77 = vmatpush1.bf16.msra.mxu0 0
  %78 = vmatprep.subr.bf16.mxu0 0
  %79 = vmatpush1.bf16.msra.mxu0 0
  %80 = vmatprep.mubr.bf16.mxu0 0
  %81 = vmatmul.mubr.bf16.gmra.mrb[0].mxu0 %v46
  %v82 = vpop.f32.mrb[0].mxu0
  %v83 = vadd.f32 0.0, %v82
  %v84 = vpop.f32.mrb[0].mxu0
  %v85 = vpop.f32.mrb[0].mxu0
  %v86 = vpop.f32.mrb[0].mxu0
  %87 = vdwg.mxu0
  %v88 = vadd.f32 %v25, %v83
  %v89 = vxor.u32 %v88, 2147483648
  %v90 = vmul.f32 %v89, 1.442695
  %v91 = vpow.pop %v90
  %v92 = vadd.f32 %v91, 1.0
  %v93 = vrcp.pop %v92
  %v94 = vmul.f32 1.0, %v93
  %v95 = vtanh.pop %v88
  %v96 = vld [vmem:[#allocation3] sm:$0xff]
  %98 = vrot.lane.b32.xlu0 %v96, 32
  %v99 = vpop.permute.xlu0 %98
  %v101 = vmul.f32 %v94, %v99
  %103 = vrot.lane.b32.xlu0 %v95, 64
  %v104 = vpop.permute.xlu0 %103
  %v106 = vmul.f32 %v94, %v104
  %108 = vrot.lane.b32.xlu0 %v106, 32
  %v109 = vpop.permute.xlu0 %108
  %v111 = vadd.f32 %v101, %v109
  %v112 = vtanh.pop %v111
  %114 = vrot.lane.b32.xlu0 %v112, 64
  %v115 = vpop.permute.xlu0 %114
  %v117 = vmul.f32 %v94, %v115
  %119 = vrot.lane.b32.xlu0 %v111, 96
  %v120 = vpop.permute.xlu0 %119
  %122 = vst.msk [vmem:[#allocation3] sm:$0xff] %vm44, %v120
  %124 = vrot.lane.b32.xlu0 %v117, 32
  %v125 = vpop.permute.xlu0 %124
  %127 = vst.msk [vmem:[#allocation2] sm:$0xff] %vm44, %v125
  %v128 = vpack.c.bf16 %v117, %v117
  %v130 = vunpack.c.l.b16 %v128
  %v131 = vpack.c.b16 %v130, %v130
  %132 = vrot.lane.b32.xlu0 %v131, 32
  %v133 = vpop.permute.xlu0 %132
  %vm135 = vcmask 257024
  %136 = vst.msk [vmem:[#allocation4] sm:$0xf] %vm135, %v133
  %s137 = scalar_lea.vmem %s0, 8
  %v138 = vld [vmem:[%s137] sm:$0xff]
  %v139 = vld [vmem:[#allocation2] sm:$0xff]
  %v140 = vpack.c.bf16 %v139, %v139
  %v141 = vld [vmem:[%s1] sm:$0xf]
  %v142 = vld [vmem:[%s1 + $0x4] sm:$0xf]
  %v143 = vld [vmem:[%s1 + $0x8] sm:$0xf]
  %v144 = vld [vmem:[%s1 + $0xc] sm:$0xf]
  %v149 = vunpack.c.l.b16 %v141
  %v150 = vunpack.c.l.b16 %v142
  %v151 = vunpack.c.l.b16 %v143
  %v152 = vunpack.c.l.b16 %v144
  %v153 = vpack.c.b16 %v150, %v149
  %v154 = vpack.c.b16 %v152, %v151
  %v158 = vsel %vm44, %v140, 0
  %160 = vmatprep.subr.bf16.mxu0 0
  %161 = vmatpush1.bf16.msra.mxu0 %v153
  %162 = vmatprep.subr.bf16.mxu0 0
  %163 = vmatpush1.bf16.msra.mxu0 %v154
  %164 = vmatprep.subr.bf16.mxu0 0
  %165 = vmatpush1.bf16.msra.mxu0 0
  %166 = vmatprep.subr.bf16.mxu0 0
  %167 = vmatpush1.bf16.msra.mxu0 0
  %168 = vmatprep.subr.bf16.mxu0 0
  %169 = vmatpush1.bf16.msra.mxu0 0
  %170 = vmatprep.subr.bf16.mxu0 0
  %171 = vmatpush1.bf16.msra.mxu0 0
  %172 = vmatprep.subr.bf16.mxu0 0
  %173 = vmatpush1.bf16.msra.mxu0 0
  %174 = vmatprep.subr.bf16.mxu0 0
  %175 = vmatpush1.bf16.msra.mxu0 0
  %176 = vmatprep.subr.bf16.mxu0 0
  %177 = vmatpush1.bf16.msra.mxu0 0
  %178 = vmatprep.subr.bf16.mxu0 0
  %179 = vmatpush1.bf16.msra.mxu0 0
  %180 = vmatprep.subr.bf16.mxu0 0
  %181 = vmatpush1.bf16.msra.mxu0 0
  %182 = vmatprep.subr.bf16.mxu0 0
  %183 = vmatpush1.bf16.msra.mxu0 0
  %184 = vmatprep.subr.bf16.mxu0 0
  %185 = vmatpush1.bf16.msra.mxu0 0
  %186 = vmatprep.subr.bf16.mxu0 0
  %187 = vmatpush1.bf16.msra.mxu0 0
  %188 = vmatprep.subr.bf16.mxu0 0
  %189 = vmatpush1.bf16.msra.mxu0 0
  %190 = vmatprep.subr.bf16.mxu0 0
  %191 = vmatpush1.bf16.msra.mxu0 0
  %192 = vmatprep.mubr.bf16.mxu0 0
  %193 = vmatmul.mubr.bf16.gmra.mrb[0].mxu0 %v158
  %v194 = vpop.f32.mrb[0].mxu0
  %v195 = vadd.f32 0.0, %v194
  %v196 = vpop.f32.mrb[0].mxu0
  %v197 = vpop.f32.mrb[0].mxu0
  %v198 = vpop.f32.mrb[0].mxu0
  %199 = vdwg.mxu0
  %v200 = vadd.f32 %v138, %v195
  %v201 = vxor.u32 %v200, 2147483648
  %v202 = vmul.f32 %v201, 1.442695
  %v203 = vpow.pop %v202
  %v204 = vadd.f32 %v203, 1.0
  %v205 = vrcp.pop %v204
  %v206 = vmul.f32 1.0, %v205
  %v207 = vtanh.pop %v200
  %v208 = vld [vmem:[#allocation3] sm:$0xff]
  %210 = vrot.lane.b32.xlu0 %v208, 32
  %v211 = vpop.permute.xlu0 %210
  %v213 = vmul.f32 %v206, %v211
  %215 = vrot.lane.b32.xlu0 %v207, 64
  %v216 = vpop.permute.xlu0 %215
  %v218 = vmul.f32 %v206, %v216
  %220 = vrot.lane.b32.xlu0 %v218, 32
  %v221 = vpop.permute.xlu0 %220
  %v223 = vadd.f32 %v213, %v221
  %v224 = vtanh.pop %v223
  %226 = vrot.lane.b32.xlu0 %v224, 64
  %v227 = vpop.permute.xlu0 %226
  %v229 = vmul.f32 %v206, %v227
  %231 = vrot.lane.b32.xlu0 %v223, 96
  %v232 = vpop.permute.xlu0 %231
  %234 = vst.msk [vmem:[#allocation3] sm:$0xff] %vm44, %v232
  %236 = vrot.lane.b32.xlu0 %v229, 32
  %v237 = vpop.permute.xlu0 %236
  %239 = vst.msk [vmem:[#allocation2] sm:$0xff] %vm44, %v237
  %v240 = vpack.c.bf16 %v229, %v229
  %v242 = vunpack.c.l.b16 %v240
  %v243 = vpack.c.b16 %v242, %v242
  %244 = vrot.lane.b32.xlu0 %v243, 32
  %v245 = vpop.permute.xlu0 %244
  %s247 = scalar_lea.vmem [#allocation4], 4
  %248 = vst.msk [vmem:[%s247] sm:$0xf] %vm135, %v245
  %s249 = scalar_lea.vmem %s0, 16
  %v250 = vld [vmem:[%s249] sm:$0xff]
  %v251 = vld [vmem:[#allocation2] sm:$0xff]
  %v252 = vpack.c.bf16 %v251, %v251
  %v253 = vld [vmem:[%s1] sm:$0xf]
  %v254 = vld [vmem:[%s1 + $0x4] sm:$0xf]
  %v255 = vld [vmem:[%s1 + $0x8] sm:$0xf]
  %v256 = vld [vmem:[%s1 + $0xc] sm:$0xf]
  %v261 = vunpack.c.l.b16 %v253
  %v262 = vunpack.c.l.b16 %v254
  %v263 = vunpack.c.l.b16 %v255
  %v264 = vunpack.c.l.b16 %v256
  %v265 = vpack.c.b16 %v262, %v261
  %v266 = vpack.c.b16 %v264, %v263
  %v270 = vsel %vm44, %v252, 0
  %272 = vmatprep.subr.bf16.mxu0 0
  %273 = vmatpush1.bf16.msra.mxu0 %v265
  %274 = vmatprep.subr.bf16.mxu0 0
  %275 = vmatpush1.bf16.msra.mxu0 %v266
  %276 = vmatprep.subr.bf16.mxu0 0
  %277 = vmatpush1.bf16.msra.mxu0 0
  %278 = vmatprep.subr.bf16.mxu0 0
  %279 = vmatpush1.bf16.msra.mxu0 0
  %280 = vmatprep.subr.bf16.mxu0 0
  %281 = vmatpush1.bf16.msra.mxu0 0
  %282 = vmatprep.subr.bf16.mxu0 0
  %283 = vmatpush1.bf16.msra.mxu0 0
  %284 = vmatprep.subr.bf16.mxu0 0
  %285 = vmatpush1.bf16.msra.mxu0 0
  %286 = vmatprep.subr.bf16.mxu0 0
  %287 = vmatpush1.bf16.msra.mxu0 0
  %288 = vmatprep.subr.bf16.mxu0 0
  %289 = vmatpush1.bf16.msra.mxu0 0
  %290 = vmatprep.subr.bf16.mxu0 0
  %291 = vmatpush1.bf16.msra.mxu0 0
  %292 = vmatprep.subr.bf16.mxu0 0
  %293 = vmatpush1.bf16.msra.mxu0 0
  %294 = vmatprep.subr.bf16.mxu0 0
  %295 = vmatpush1.bf16.msra.mxu0 0
  %296 = vmatprep.subr.bf16.mxu0 0
  %297 = vmatpush1.bf16.msra.mxu0 0
  %298 = vmatprep.subr.bf16.mxu0 0
  %299 = vmatpush1.bf16.msra.mxu0 0
  %300 = vmatprep.subr.bf16.mxu0 0
  %301 = vmatpush1.bf16.msra.mxu0 0
  %302 = vmatprep.subr.bf16.mxu0 0
  %303 = vmatpush1.bf16.msra.mxu0 0
  %304 = vmatprep.mubr.bf16.mxu0 0
  %305 = vmatmul.mubr.bf16.gmra.mrb[0].mxu0 %v270
  %v306 = vpop.f32.mrb[0].mxu0
  %v307 = vadd.f32 0.0, %v306
  %v308 = vpop.f32.mrb[0].mxu0
  %v309 = vpop.f32.mrb[0].mxu0
  %v310 = vpop.f32.mrb[0].mxu0
  %311 = vdwg.mxu0
  %v312 = vadd.f32 %v250, %v307
  %v313 = vxor.u32 %v312, 2147483648
  %v314 = vmul.f32 %v313, 1.442695
  %v315 = vpow.pop %v314
  %v316 = vadd.f32 %v315, 1.0
  %v317 = vrcp.pop %v316
  %v318 = vmul.f32 1.0, %v317
  %v319 = vtanh.pop %v312
  %v320 = vld [vmem:[#allocation3] sm:$0xff]
  %322 = vrot.lane.b32.xlu0 %v320, 32
  %v323 = vpop.permute.xlu0 %322
  %v325 = vmul.f32 %v318, %v323
  %327 = vrot.lane.b32.xlu0 %v319, 64
  %v328 = vpop.permute.xlu0 %327
  %v330 = vmul.f32 %v318, %v328
  %332 = vrot.lane.b32.xlu0 %v330, 32
  %v333 = vpop.permute.xlu0 %332
  %v335 = vadd.f32 %v325, %v333
  %v336 = vtanh.pop %v335
  %338 = vrot.lane.b32.xlu0 %v336, 64
  %v339 = vpop.permute.xlu0 %338
  %v341 = vmul.f32 %v318, %v339
  %343 = vrot.lane.b32.xlu0 %v335, 96
  %v344 = vpop.permute.xlu0 %343
  %346 = vst.msk [vmem:[#allocation3] sm:$0xff] %vm44, %v344
  %348 = vrot.lane.b32.xlu0 %v341, 32
  %v349 = vpop.permute.xlu0 %348
  %351 = vst.msk [vmem:[#allocation2] sm:$0xff] %vm44, %v349
  %v352 = vpack.c.bf16 %v341, %v341
  %v354 = vunpack.c.l.b16 %v352
  %v355 = vpack.c.b16 %v354, %v354
  %356 = vrot.lane.b32.xlu0 %v355, 32
  %v357 = vpop.permute.xlu0 %356
  %s359 = scalar_lea.vmem [#allocation4], 8
  %360 = vst.msk [vmem:[%s359] sm:$0xf] %vm135, %v357
  %s361 = scalar_lea.vmem %s0, 24
  %v362 = vld [vmem:[%s361] sm:$0xff]
  %v363 = vld [vmem:[#allocation2] sm:$0xff]
  %v364 = vpack.c.bf16 %v363, %v363
  %v365 = vld [vmem:[%s1] sm:$0xf]
  %v366 = vld [vmem:[%s1 + $0x4] sm:$0xf]
  %v367 = vld [vmem:[%s1 + $0x8] sm:$0xf]
  %v368 = vld [vmem:[%s1 + $0xc] sm:$0xf]
  %v373 = vunpack.c.l.b16 %v365
  %v374 = vunpack.c.l.b16 %v366
  %v375 = vunpack.c.l.b16 %v367
  %v376 = vunpack.c.l.b16 %v368
  %v377 = vpack.c.b16 %v374, %v373
  %v378 = vpack.c.b16 %v376, %v375
  %v382 = vsel %vm44, %v364, 0
  %384 = vmatprep.subr.bf16.mxu0 0
  %385 = vmatpush1.bf16.msra.mxu0 %v377
  %386 = vmatprep.subr.bf16.mxu0 0
  %387 = vmatpush1.bf16.msra.mxu0 %v378
  %388 = vmatprep.subr.bf16.mxu0 0
  %389 = vmatpush1.bf16.msra.mxu0 0
  %390 = vmatprep.subr.bf16.mxu0 0
  %391 = vmatpush1.bf16.msra.mxu0 0
  %392 = vmatprep.subr.bf16.mxu0 0
  %393 = vmatpush1.bf16.msra.mxu0 0
  %394 = vmatprep.subr.bf16.mxu0 0
  %395 = vmatpush1.bf16.msra.mxu0 0
  %396 = vmatprep.subr.bf16.mxu0 0
  %397 = vmatpush1.bf16.msra.mxu0 0
  %398 = vmatprep.subr.bf16.mxu0 0
  %399 = vmatpush1.bf16.msra.mxu0 0
  %400 = vmatprep.subr.bf16.mxu0 0
  %401 = vmatpush1.bf16.msra.mxu0 0
  %402 = vmatprep.subr.bf16.mxu0 0
  %403 = vmatpush1.bf16.msra.mxu0 0
  %404 = vmatprep.subr.bf16.mxu0 0
  %405 = vmatpush1.bf16.msra.mxu0 0
  %406 = vmatprep.subr.bf16.mxu0 0
  %407 = vmatpush1.bf16.msra.mxu0 0
  %408 = vmatprep.subr.bf16.mxu0 0
  %409 = vmatpush1.bf16.msra.mxu0 0
  %410 = vmatprep.subr.bf16.mxu0 0
  %411 = vmatpush1.bf16.msra.mxu0 0
  %412 = vmatprep.subr.bf16.mxu0 0
  %413 = vmatpush1.bf16.msra.mxu0 0
  %414 = vmatprep.subr.bf16.mxu0 0
  %415 = vmatpush1.bf16.msra.mxu0 0
  %416 = vmatprep.mubr.bf16.mxu0 0
  %417 = vmatmul.mubr.bf16.gmra.mrb[0].mxu0 %v382
  %v418 = vpop.f32.mrb[0].mxu0
  %v419 = vadd.f32 0.0, %v418
  %v420 = vpop.f32.mrb[0].mxu0
  %v421 = vpop.f32.mrb[0].mxu0
  %v422 = vpop.f32.mrb[0].mxu0
  %423 = vdwg.mxu0
  %v424 = vadd.f32 %v362, %v419
  %v425 = vxor.u32 %v424, 2147483648
  %v426 = vmul.f32 %v425, 1.442695
  %v427 = vpow.pop %v426
  %v428 = vadd.f32 %v427, 1.0
  %v429 = vrcp.pop %v428
  %v430 = vmul.f32 1.0, %v429
  %v431 = vtanh.pop %v424
  %v432 = vld [vmem:[#allocation3] sm:$0xff]
  %434 = vrot.lane.b32.xlu0 %v432, 32
  %v435 = vpop.permute.xlu0 %434
  %v437 = vmul.f32 %v430, %v435
  %439 = vrot.lane.b32.xlu0 %v431, 64
  %v440 = vpop.permute.xlu0 %439
  %v442 = vmul.f32 %v430, %v440
  %444 = vrot.lane.b32.xlu0 %v442, 32
  %v445 = vpop.permute.xlu0 %444
  %v447 = vadd.f32 %v437, %v445
  %v448 = vtanh.pop %v447
  %450 = vrot.lane.b32.xlu0 %v448, 64
  %v451 = vpop.permute.xlu0 %450
  %v453 = vmul.f32 %v430, %v451
  %455 = vrot.lane.b32.xlu0 %v447, 96
  %v456 = vpop.permute.xlu0 %455
  %458 = vst.msk [vmem:[#allocation3] sm:$0xff] %vm44, %v456
  %460 = vrot.lane.b32.xlu0 %v453, 32
  %v461 = vpop.permute.xlu0 %460
  %463 = vst.msk [vmem:[#allocation2] sm:$0xff] %vm44, %v461
  %v464 = vpack.c.bf16 %v453, %v453
  %v466 = vunpack.c.l.b16 %v464
  %v467 = vpack.c.b16 %v466, %v466
  %468 = vrot.lane.b32.xlu0 %v467, 32
  %v469 = vpop.permute.xlu0 %468
  %s471 = scalar_lea.vmem [#allocation4], 12
  %472 = vst.msk [vmem:[%s471] sm:$0xf] %vm135, %v469
  %s473 = scalar_lea.vmem %s0, 32
  %v474 = vld [vmem:[%s473] sm:$0xff]
  %v475 = vld [vmem:[#allocation2] sm:$0xff]
  %v476 = vpack.c.bf16 %v475, %v475
  %v477 = vld [vmem:[%s1] sm:$0xf]
  %v478 = vld [vmem:[%s1 + $0x4] sm:$0xf]
  %v479 = vld [vmem:[%s1 + $0x8] sm:$0xf]
  %v480 = vld [vmem:[%s1 + $0xc] sm:$0xf]
  %v485 = vunpack.c.l.b16 %v477
  %v486 = vunpack.c.l.b16 %v478
  %v487 = vunpack.c.l.b16 %v479
  %v488 = vunpack.c.l.b16 %v480
  %v489 = vpack.c.b16 %v486, %v485
  %v490 = vpack.c.b16 %v488, %v487
  %v494 = vsel %vm44, %v476, 0
  %496 = vmatprep.subr.bf16.mxu0 0
  %497 = vmatpush1.bf16.msra.mxu0 %v489
  %498 = vmatprep.subr.bf16.mxu0 0
  %499 = vmatpush1.bf16.msra.mxu0 %v490
  %500 = vmatprep.subr.bf16.mxu0 0
  %501 = vmatpush1.bf16.msra.mxu0 0
  %502 = vmatprep.subr.bf16.mxu0 0
  %503 = vmatpush1.bf16.msra.mxu0 0
  %504 = vmatprep.subr.bf16.mxu0 0
  %505 = vmatpush1.bf16.msra.mxu0 0
  %506 = vmatprep.subr.bf16.mxu0 0
  %507 = vmatpush1.bf16.msra.mxu0 0
  %508 = vmatprep.subr.bf16.mxu0 0
  %509 = vmatpush1.bf16.msra.mxu0 0
  %510 = vmatprep.subr.bf16.mxu0 0
  %511 = vmatpush1.bf16.msra.mxu0 0
  %512 = vmatprep.subr.bf16.mxu0 0
  %513 = vmatpush1.bf16.msra.mxu0 0
  %514 = vmatprep.subr.bf16.mxu0 0
  %515 = vmatpush1.bf16.msra.mxu0 0
  %516 = vmatprep.subr.bf16.mxu0 0
  %517 = vmatpush1.bf16.msra.mxu0 0
  %518 = vmatprep.subr.bf16.mxu0 0
  %519 = vmatpush1.bf16.msra.mxu0 0
  %520 = vmatprep.subr.bf16.mxu0 0
  %521 = vmatpush1.bf16.msra.mxu0 0
  %522 = vmatprep.subr.bf16.mxu0 0
  %523 = vmatpush1.bf16.msra.mxu0 0
  %524 = vmatprep.subr.bf16.mxu0 0
  %525 = vmatpush1.bf16.msra.mxu0 0
  %526 = vmatprep.subr.bf16.mxu0 0
  %527 = vmatpush1.bf16.msra.mxu0 0
  %528 = vmatprep.mubr.bf16.mxu0 0
  %529 = vmatmul.mubr.bf16.gmra.mrb[0].mxu0 %v494
  %v530 = vpop.f32.mrb[0].mxu0
  %v531 = vadd.f32 0.0, %v530
  %v532 = vpop.f32.mrb[0].mxu0
  %v533 = vpop.f32.mrb[0].mxu0
  %v534 = vpop.f32.mrb[0].mxu0
  %535 = vdwg.mxu0
  %v536 = vadd.f32 %v474, %v531
  %v537 = vxor.u32 %v536, 2147483648
  %v538 = vmul.f32 %v537, 1.442695
  %v539 = vpow.pop %v538
  %v540 = vadd.f32 %v539, 1.0
  %v541 = vrcp.pop %v540
  %v542 = vmul.f32 1.0, %v541
  %v543 = vtanh.pop %v536
  %v544 = vld [vmem:[#allocation3] sm:$0xff]
  %546 = vrot.lane.b32.xlu0 %v544, 32
  %v547 = vpop.permute.xlu0 %546
  %v549 = vmul.f32 %v542, %v547
  %551 = vrot.lane.b32.xlu0 %v543, 64
  %v552 = vpop.permute.xlu0 %551
  %v554 = vmul.f32 %v542, %v552
  %556 = vrot.lane.b32.xlu0 %v554, 32
  %v557 = vpop.permute.xlu0 %556
  %v559 = vadd.f32 %v549, %v557
  %v560 = vtanh.pop %v559
  %562 = vrot.lane.b32.xlu0 %v560, 64
  %v563 = vpop.permute.xlu0 %562
  %v565 = vmul.f32 %v542, %v563
  %567 = vrot.lane.b32.xlu0 %v559, 96
  %v568 = vpop.permute.xlu0 %567
  %570 = vst.msk [vmem:[#allocation3] sm:$0xff] %vm44, %v568
  %572 = vrot.lane.b32.xlu0 %v565, 32
  %v573 = vpop.permute.xlu0 %572
  %575 = vst.msk [vmem:[#allocation2] sm:$0xff] %vm44, %v573
  %v576 = vpack.c.bf16 %v565, %v565
  %v578 = vunpack.c.l.b16 %v576
  %v579 = vpack.c.b16 %v578, %v578
  %580 = vrot.lane.b32.xlu0 %v579, 32
  %v581 = vpop.permute.xlu0 %580
  %s583 = scalar_lea.vmem [#allocation4], 16
  %584 = vst.msk [vmem:[%s583] sm:$0xf] %vm135, %v581
  %s585 = scalar_lea.vmem %s0, 40
  %v586 = vld [vmem:[%s585] sm:$0xff]
  %v587 = vld [vmem:[#allocation2] sm:$0xff]
  %v588 = vpack.c.bf16 %v587, %v587
  %v589 = vld [vmem:[%s1] sm:$0xf]
  %v590 = vld [vmem:[%s1 + $0x4] sm:$0xf]
  %v591 = vld [vmem:[%s1 + $0x8] sm:$0xf]
  %v592 = vld [vmem:[%s1 + $0xc] sm:$0xf]
  %v597 = vunpack.c.l.b16 %v589
  %v598 = vunpack.c.l.b16 %v590
  %v599 = vunpack.c.l.b16 %v591
  %v600 = vunpack.c.l.b16 %v592
  %v601 = vpack.c.b16 %v598, %v597
  %v602 = vpack.c.b16 %v600, %v599
  %v606 = vsel %vm44, %v588, 0
  %608 = vmatprep.subr.bf16.mxu0 0
  %609 = vmatpush1.bf16.msra.mxu0 %v601
  %610 = vmatprep.subr.bf16.mxu0 0
  %611 = vmatpush1.bf16.msra.mxu0 %v602
  %612 = vmatprep.subr.bf16.mxu0 0
  %613 = vmatpush1.bf16.msra.mxu0 0
  %614 = vmatprep.subr.bf16.mxu0 0
  %615 = vmatpush1.bf16.msra.mxu0 0
  %616 = vmatprep.subr.bf16.mxu0 0
  %617 = vmatpush1.bf16.msra.mxu0 0
  %618 = vmatprep.subr.bf16.mxu0 0
  %619 = vmatpush1.bf16.msra.mxu0 0
  %620 = vmatprep.subr.bf16.mxu0 0
  %621 = vmatpush1.bf16.msra.mxu0 0
  %622 = vmatprep.subr.bf16.mxu0 0
  %623 = vmatpush1.bf16.msra.mxu0 0
  %624 = vmatprep.subr.bf16.mxu0 0
  %625 = vmatpush1.bf16.msra.mxu0 0
  %626 = vmatprep.subr.bf16.mxu0 0
  %627 = vmatpush1.bf16.msra.mxu0 0
  %628 = vmatprep.subr.bf16.mxu0 0
  %629 = vmatpush1.bf16.msra.mxu0 0
  %630 = vmatprep.subr.bf16.mxu0 0
  %631 = vmatpush1.bf16.msra.mxu0 0
  %632 = vmatprep.subr.bf16.mxu0 0
  %633 = vmatpush1.bf16.msra.mxu0 0
  %634 = vmatprep.subr.bf16.mxu0 0
  %635 = vmatpush1.bf16.msra.mxu0 0
  %636 = vmatprep.subr.bf16.mxu0 0
  %637 = vmatpush1.bf16.msra.mxu0 0
  %638 = vmatprep.subr.bf16.mxu0 0
  %639 = vmatpush1.bf16.msra.mxu0 0
  %640 = vmatprep.mubr.bf16.mxu0 0
  %641 = vmatmul.mubr.bf16.gmra.mrb[0].mxu0 %v606
  %v642 = vpop.f32.mrb[0].mxu0
  %v643 = vadd.f32 0.0, %v642
  %v644 = vpop.f32.mrb[0].mxu0
  %v645 = vpop.f32.mrb[0].mxu0
  %v646 = vpop.f32.mrb[0].mxu0
  %647 = vdwg.mxu0
  %v648 = vadd.f32 %v586, %v643
  %v649 = vxor.u32 %v648, 2147483648
  %v650 = vmul.f32 %v649, 1.442695
  %v651 = vpow.pop %v650
  %v652 = vadd.f32 %v651, 1.0
  %v653 = vrcp.pop %v652
  %v654 = vmul.f32 1.0, %v653
  %v655 = vtanh.pop %v648
  %v656 = vld [vmem:[#allocation3] sm:$0xff]
  %658 = vrot.lane.b32.xlu0 %v656, 32
  %v659 = vpop.permute.xlu0 %658
  %v661 = vmul.f32 %v654, %v659
  %663 = vrot.lane.b32.xlu0 %v655, 64
  %v664 = vpop.permute.xlu0 %663
  %v666 = vmul.f32 %v654, %v664
  %668 = vrot.lane.b32.xlu0 %v666, 32
  %v669 = vpop.permute.xlu0 %668
  %v671 = vadd.f32 %v661, %v669
  %v672 = vtanh.pop %v671
  %674 = vrot.lane.b32.xlu0 %v672, 64
  %v675 = vpop.permute.xlu0 %674
  %v677 = vmul.f32 %v654, %v675
  %679 = vrot.lane.b32.xlu0 %v671, 96
  %v680 = vpop.permute.xlu0 %679
  %682 = vst.msk [vmem:[#allocation3] sm:$0xff] %vm44, %v680
  %684 = vrot.lane.b32.xlu0 %v677, 32
  %v685 = vpop.permute.xlu0 %684
  %687 = vst.msk [vmem:[#allocation2] sm:$0xff] %vm44, %v685
  %v688 = vpack.c.bf16 %v677, %v677
  %v690 = vunpack.c.l.b16 %v688
  %v691 = vpack.c.b16 %v690, %v690
  %692 = vrot.lane.b32.xlu0 %v691, 32
  %v693 = vpop.permute.xlu0 %692
  %s695 = scalar_lea.vmem [#allocation4], 20
  %696 = vst.msk [vmem:[%s695] sm:$0xf] %vm135, %v693
  %s697 = scalar_lea.vmem %s0, 48
  %v698 = vld [vmem:[%s697] sm:$0xff]
  %v699 = vld [vmem:[#allocation2] sm:$0xff]
  %v700 = vpack.c.bf16 %v699, %v699
  %v701 = vld [vmem:[%s1] sm:$0xf]
  %v702 = vld [vmem:[%s1 + $0x4] sm:$0xf]
  %v703 = vld [vmem:[%s1 + $0x8] sm:$0xf]
  %v704 = vld [vmem:[%s1 + $0xc] sm:$0xf]
  %v709 = vunpack.c.l.b16 %v701
  %v710 = vunpack.c.l.b16 %v702
  %v711 = vunpack.c.l.b16 %v703
  %v712 = vunpack.c.l.b16 %v704
  %v713 = vpack.c.b16 %v710, %v709
  %v714 = vpack.c.b16 %v712, %v711
  %v718 = vsel %vm44, %v700, 0
  %720 = vmatprep.subr.bf16.mxu0 0
  %721 = vmatpush1.bf16.msra.mxu0 %v713
  %722 = vmatprep.subr.bf16.mxu0 0
  %723 = vmatpush1.bf16.msra.mxu0 %v714
  %724 = vmatprep.subr.bf16.mxu0 0
  %725 = vmatpush1.bf16.msra.mxu0 0
  %726 = vmatprep.subr.bf16.mxu0 0
  %727 = vmatpush1.bf16.msra.mxu0 0
  %728 = vmatprep.subr.bf16.mxu0 0
  %729 = vmatpush1.bf16.msra.mxu0 0
  %730 = vmatprep.subr.bf16.mxu0 0
  %731 = vmatpush1.bf16.msra.mxu0 0
  %732 = vmatprep.subr.bf16.mxu0 0
  %733 = vmatpush1.bf16.msra.mxu0 0
  %734 = vmatprep.subr.bf16.mxu0 0
  %735 = vmatpush1.bf16.msra.mxu0 0
  %736 = vmatprep.subr.bf16.mxu0 0
  %737 = vmatpush1.bf16.msra.mxu0 0
  %738 = vmatprep.subr.bf16.mxu0 0
  %739 = vmatpush1.bf16.msra.mxu0 0
  %740 = vmatprep.subr.bf16.mxu0 0
  %741 = vmatpush1.bf16.msra.mxu0 0
  %742 = vmatprep.subr.bf16.mxu0 0
  %743 = vmatpush1.bf16.msra.mxu0 0
  %744 = vmatprep.subr.bf16.mxu0 0
  %745 = vmatpush1.bf16.msra.mxu0 0
  %746 = vmatprep.subr.bf16.mxu0 0
  %747 = vmatpush1.bf16.msra.mxu0 0
  %748 = vmatprep.subr.bf16.mxu0 0
  %749 = vmatpush1.bf16.msra.mxu0 0
  %750 = vmatprep.subr.bf16.mxu0 0
  %751 = vmatpush1.bf16.msra.mxu0 0
  %752 = vmatprep.mubr.bf16.mxu0 0
  %753 = vmatmul.mubr.bf16.gmra.mrb[0].mxu0 %v718
  %v754 = vpop.f32.mrb[0].mxu0
  %v755 = vadd.f32 0.0, %v754
  %v756 = vpop.f32.mrb[0].mxu0
  %v757 = vpop.f32.mrb[0].mxu0
  %v758 = vpop.f32.mrb[0].mxu0
  %759 = vdwg.mxu0
  %v760 = vadd.f32 %v698, %v755
  %v761 = vxor.u32 %v760, 2147483648
  %v762 = vmul.f32 %v761, 1.442695
  %v763 = vpow.pop %v762
  %v764 = vadd.f32 %v763, 1.0
  %v765 = vrcp.pop %v764
  %v766 = vmul.f32 1.0, %v765
  %v767 = vtanh.pop %v760
  %v768 = vld [vmem:[#allocation3] sm:$0xff]
  %770 = vrot.lane.b32.xlu0 %v768, 32
  %v771 = vpop.permute.xlu0 %770
  %v773 = vmul.f32 %v766, %v771
  %775 = vrot.lane.b32.xlu0 %v767, 64
  %v776 = vpop.permute.xlu0 %775
  %v778 = vmul.f32 %v766, %v776
  %780 = vrot.lane.b32.xlu0 %v778, 32
  %v781 = vpop.permute.xlu0 %780
  %v783 = vadd.f32 %v773, %v781
  %v784 = vtanh.pop %v783
  %786 = vrot.lane.b32.xlu0 %v784, 64
  %v787 = vpop.permute.xlu0 %786
  %v789 = vmul.f32 %v766, %v787
  %791 = vrot.lane.b32.xlu0 %v783, 96
  %v792 = vpop.permute.xlu0 %791
  %794 = vst.msk [vmem:[#allocation3] sm:$0xff] %vm44, %v792
  %796 = vrot.lane.b32.xlu0 %v789, 32
  %v797 = vpop.permute.xlu0 %796
  %799 = vst.msk [vmem:[#allocation2] sm:$0xff] %vm44, %v797
  %v800 = vpack.c.bf16 %v789, %v789
  %v802 = vunpack.c.l.b16 %v800
  %v803 = vpack.c.b16 %v802, %v802
  %804 = vrot.lane.b32.xlu0 %v803, 32
  %v805 = vpop.permute.xlu0 %804
  %s807 = scalar_lea.vmem [#allocation4], 24
  %808 = vst.msk [vmem:[%s807] sm:$0xf] %vm135, %v805
  %s809 = scalar_lea.vmem %s0, 56
  %v810 = vld [vmem:[%s809] sm:$0xff]
  %v811 = vld [vmem:[#allocation2] sm:$0xff]
  %v812 = vpack.c.bf16 %v811, %v811
  %v813 = vld [vmem:[%s1] sm:$0xf]
  %v814 = vld [vmem:[%s1 + $0x4] sm:$0xf]
  %v815 = vld [vmem:[%s1 + $0x8] sm:$0xf]
  %v816 = vld [vmem:[%s1 + $0xc] sm:$0xf]
  %v821 = vunpack.c.l.b16 %v813
  %v822 = vunpack.c.l.b16 %v814
  %v823 = vunpack.c.l.b16 %v815
  %v824 = vunpack.c.l.b16 %v816
  %v825 = vpack.c.b16 %v822, %v821
  %v826 = vpack.c.b16 %v824, %v823
  %v830 = vsel %vm44, %v812, 0
  %832 = vmatprep.subr.bf16.mxu0 0
  %833 = vmatpush1.bf16.msra.mxu0 %v825
  %834 = vmatprep.subr.bf16.mxu0 0
  %835 = vmatpush1.bf16.msra.mxu0 %v826
  %836 = vmatprep.subr.bf16.mxu0 0
  %837 = vmatpush1.bf16.msra.mxu0 0
  %838 = vmatprep.subr.bf16.mxu0 0
  %839 = vmatpush1.bf16.msra.mxu0 0
  %840 = vmatprep.subr.bf16.mxu0 0
  %841 = vmatpush1.bf16.msra.mxu0 0
  %842 = vmatprep.subr.bf16.mxu0 0
  %843 = vmatpush1.bf16.msra.mxu0 0
  %844 = vmatprep.subr.bf16.mxu0 0
  %845 = vmatpush1.bf16.msra.mxu0 0
  %846 = vmatprep.subr.bf16.mxu0 0
  %847 = vmatpush1.bf16.msra.mxu0 0
  %848 = vmatprep.subr.bf16.mxu0 0
  %849 = vmatpush1.bf16.msra.mxu0 0
  %850 = vmatprep.subr.bf16.mxu0 0
  %851 = vmatpush1.bf16.msra.mxu0 0
  %852 = vmatprep.subr.bf16.mxu0 0
  %853 = vmatpush1.bf16.msra.mxu0 0
  %854 = vmatprep.subr.bf16.mxu0 0
  %855 = vmatpush1.bf16.msra.mxu0 0
  %856 = vmatprep.subr.bf16.mxu0 0
  %857 = vmatpush1.bf16.msra.mxu0 0
  %858 = vmatprep.subr.bf16.mxu0 0
  %859 = vmatpush1.bf16.msra.mxu0 0
  %860 = vmatprep.subr.bf16.mxu0 0
  %861 = vmatpush1.bf16.msra.mxu0 0
  %862 = vmatprep.subr.bf16.mxu0 0
  %863 = vmatpush1.bf16.msra.mxu0 0
  %864 = vmatprep.mubr.bf16.mxu0 0
  %865 = vmatmul.mubr.bf16.gmra.mrb[0].mxu0 %v830
  %v866 = vpop.f32.mrb[0].mxu0
  %v867 = vadd.f32 0.0, %v866
  %v868 = vpop.f32.mrb[0].mxu0
  %v869 = vpop.f32.mrb[0].mxu0
  %v870 = vpop.f32.mrb[0].mxu0
  %871 = vdwg.mxu0
  %v872 = vadd.f32 %v810, %v867
  %v873 = vxor.u32 %v872, 2147483648
  %v874 = vmul.f32 %v873, 1.442695
  %v875 = vpow.pop %v874
  %v876 = vadd.f32 %v875, 1.0
  %v877 = vrcp.pop %v876
  %v878 = vmul.f32 1.0, %v877
  %v879 = vtanh.pop %v872
  %v880 = vld [vmem:[#allocation3] sm:$0xff]
  %882 = vrot.lane.b32.xlu0 %v880, 32
  %v883 = vpop.permute.xlu0 %882
  %v885 = vmul.f32 %v878, %v883
  %887 = vrot.lane.b32.xlu0 %v879, 64
  %v888 = vpop.permute.xlu0 %887
  %v890 = vmul.f32 %v878, %v888
  %892 = vrot.lane.b32.xlu0 %v890, 32
  %v893 = vpop.permute.xlu0 %892
  %v895 = vadd.f32 %v885, %v893
  %v896 = vtanh.pop %v895
  %898 = vrot.lane.b32.xlu0 %v896, 64
  %v899 = vpop.permute.xlu0 %898
  %v901 = vmul.f32 %v878, %v899
  %903 = vrot.lane.b32.xlu0 %v895, 96
  %v904 = vpop.permute.xlu0 %903
  %906 = vst.msk [vmem:[#allocation3] sm:$0xff] %vm44, %v904
  %908 = vrot.lane.b32.xlu0 %v901, 32
  %v909 = vpop.permute.xlu0 %908
  %911 = vst.msk [vmem:[#allocation2] sm:$0xff] %vm44, %v909
  %v912 = vpack.c.bf16 %v901, %v901
  %v914 = vunpack.c.l.b16 %v912
  %v915 = vpack.c.b16 %v914, %v914
  %916 = vrot.lane.b32.xlu0 %v915, 32
  %v917 = vpop.permute.xlu0 %916
  %s919 = scalar_lea.vmem [#allocation4], 28
  %920 = vst.msk [vmem:[%s919] sm:$0xf] %vm135, %v917
  %s921 = scalar_lea.vmem %s0, 64
  %v922 = vld [vmem:[%s921] sm:$0xff]
  %v923 = vld [vmem:[#allocation2] sm:$0xff]
  %v924 = vpack.c.bf16 %v923, %v923
  %v925 = vld [vmem:[%s1] sm:$0xf]
  %v926 = vld [vmem:[%s1 + $0x4] sm:$0xf]
  %v927 = vld [vmem:[%s1 + $0x8] sm:$0xf]
  %v928 = vld [vmem:[%s1 + $0xc] sm:$0xf]
  %v933 = vunpack.c.l.b16 %v925
  %v934 = vunpack.c.l.b16 %v926
  %v935 = vunpack.c.l.b16 %v927
  %v936 = vunpack.c.l.b16 %v928
  %v937 = vpack.c.b16 %v934, %v933
  %v938 = vpack.c.b16 %v936, %v935
  %v942 = vsel %vm44, %v924, 0
  %944 = vmatprep.subr.bf16.mxu0 0
  %945 = vmatpush1.bf16.msra.mxu0 %v937
  %946 = vmatprep.subr.bf16.mxu0 0
  %947 = vmatpush1.bf16.msra.mxu0 %v938
  %948 = vmatprep.subr.bf16.mxu0 0
  %949 = vmatpush1.bf16.msra.mxu0 0
  %950 = vmatprep.subr.bf16.mxu0 0
  %951 = vmatpush1.bf16.msra.mxu0 0
  %952 = vmatprep.subr.bf16.mxu0 0
  %953 = vmatpush1.bf16.msra.mxu0 0
  %954 = vmatprep.subr.bf16.mxu0 0
  %955 = vmatpush1.bf16.msra.mxu0 0
  %956 = vmatprep.subr.bf16.mxu0 0
  %957 = vmatpush1.bf16.msra.mxu0 0
  %958 = vmatprep.subr.bf16.mxu0 0
  %959 = vmatpush1.bf16.msra.mxu0 0
  %960 = vmatprep.subr.bf16.mxu0 0
  %961 = vmatpush1.bf16.msra.mxu0 0
  %962 = vmatprep.subr.bf16.mxu0 0
  %963 = vmatpush1.bf16.msra.mxu0 0
  %964 = vmatprep.subr.bf16.mxu0 0
  %965 = vmatpush1.bf16.msra.mxu0 0
  %966 = vmatprep.subr.bf16.mxu0 0
  %967 = vmatpush1.bf16.msra.mxu0 0
  %968 = vmatprep.subr.bf16.mxu0 0
  %969 = vmatpush1.bf16.msra.mxu0 0
  %970 = vmatprep.subr.bf16.mxu0 0
  %971 = vmatpush1.bf16.msra.mxu0 0
  %972 = vmatprep.subr.bf16.mxu0 0
  %973 = vmatpush1.bf16.msra.mxu0 0
  %974 = vmatprep.subr.bf16.mxu0 0
  %975 = vmatpush1.bf16.msra.mxu0 0
  %976 = vmatprep.mubr.bf16.mxu0 0
  %977 = vmatmul.mubr.bf16.gmra.mrb[0].mxu0 %v942
  %v978 = vpop.f32.mrb[0].mxu0
  %v979 = vadd.f32 0.0, %v978
  %v980 = vpop.f32.mrb[0].mxu0
  %v981 = vpop.f32.mrb[0].mxu0
  %v982 = vpop.f32.mrb[0].mxu0
  %983 = vdwg.mxu0
  %v984 = vadd.f32 %v922, %v979
  %v985 = vxor.u32 %v984, 2147483648
  %v986 = vmul.f32 %v985, 1.442695
  %v987 = vpow.pop %v986
  %v988 = vadd.f32 %v987, 1.0
  %v989 = vrcp.pop %v988
  %v990 = vmul.f32 1.0, %v989
  %v991 = vtanh.pop %v984
  %v992 = vld [vmem:[#allocation3] sm:$0xff]
  %994 = vrot.lane.b32.xlu0 %v992, 32
  %v995 = vpop.permute.xlu0 %994
  %v997 = vmul.f32 %v990, %v995
  %999 = vrot.lane.b32.xlu0 %v991, 64
  %v1000 = vpop.permute.xlu0 %999
  %v1002 = vmul.f32 %v990, %v1000
  %1004 = vrot.lane.b32.xlu0 %v1002, 32
  %v1005 = vpop.permute.xlu0 %1004
  %v1007 = vadd.f32 %v997, %v1005
  %v1008 = vtanh.pop %v1007
  %1010 = vrot.lane.b32.xlu0 %v1008, 64
  %v1011 = vpop.permute.xlu0 %1010
  %v1013 = vmul.f32 %v990, %v1011
  %1015 = vrot.lane.b32.xlu0 %v1007, 96
  %v1016 = vpop.permute.xlu0 %1015
  %1018 = vst.msk [vmem:[#allocation3] sm:$0xff] %vm44, %v1016
  %1020 = vrot.lane.b32.xlu0 %v1013, 32
  %v1021 = vpop.permute.xlu0 %1020
  %1023 = vst.msk [vmem:[#allocation2] sm:$0xff] %vm44, %v1021
  %v1024 = vpack.c.bf16 %v1013, %v1013
  %v1026 = vunpack.c.l.b16 %v1024
  %v1027 = vpack.c.b16 %v1026, %v1026
  %1028 = vrot.lane.b32.xlu0 %v1027, 32
  %v1029 = vpop.permute.xlu0 %1028
  %s1031 = scalar_lea.vmem [#allocation4], 32
  %1032 = vst.msk [vmem:[%s1031] sm:$0xf] %vm135, %v1029
  %s1033 = scalar_lea.vmem %s0, 72
  %v1034 = vld [vmem:[%s1033] sm:$0xff]
  %v1035 = vld [vmem:[#allocation2] sm:$0xff]
  %v1036 = vpack.c.bf16 %v1035, %v1035
  %v1037 = vld [vmem:[%s1] sm:$0xf]
  %v1038 = vld [vmem:[%s1 + $0x4] sm:$0xf]
  %v1039 = vld [vmem:[%s1 + $0x8] sm:$0xf]
  %v1040 = vld [vmem:[%s1 + $0xc] sm:$0xf]
  %v1045 = vunpack.c.l.b16 %v1037
  %v1046 = vunpack.c.l.b16 %v1038
  %v1047 = vunpack.c.l.b16 %v1039
  %v1048 = vunpack.c.l.b16 %v1040
  %v1049 = vpack.c.b16 %v1046, %v1045
  %v1050 = vpack.c.b16 %v1048, %v1047
  %v1054 = vsel %vm44, %v1036, 0
  %1056 = vmatprep.subr.bf16.mxu0 0
  %1057 = vmatpush1.bf16.msra.mxu0 %v1049
  %1058 = vmatprep.subr.bf16.mxu0 0
  %1059 = vmatpush1.bf16.msra.mxu0 %v1050
  %1060 = vmatprep.subr.bf16.mxu0 0
  %1061 = vmatpush1.bf16.msra.mxu0 0
  %1062 = vmatprep.subr.bf16.mxu0 0
  %1063 = vmatpush1.bf16.msra.mxu0 0
  %1064 = vmatprep.subr.bf16.mxu0 0
  %1065 = vmatpush1.bf16.msra.mxu0 0
  %1066 = vmatprep.subr.bf16.mxu0 0
  %1067 = vmatpush1.bf16.msra.mxu0 0
  %1068 = vmatprep.subr.bf16.mxu0 0
  %1069 = vmatpush1.bf16.msra.mxu0 0
  %1070 = vmatprep.subr.bf16.mxu0 0
  %1071 = vmatpush1.bf16.msra.mxu0 0
  %1072 = vmatprep.subr.bf16.mxu0 0
  %1073 = vmatpush1.bf16.msra.mxu0 0
  %1074 = vmatprep.subr.bf16.mxu0 0
  %1075 = vmatpush1.bf16.msra.mxu0 0
  %1076 = vmatprep.subr.bf16.mxu0 0
  %1077 = vmatpush1.bf16.msra.mxu0 0
  %1078 = vmatprep.subr.bf16.mxu0 0
  %1079 = vmatpush1.bf16.msra.mxu0 0
  %1080 = vmatprep.subr.bf16.mxu0 0
  %1081 = vmatpush1.bf16.msra.mxu0 0
  %1082 = vmatprep.subr.bf16.mxu0 0
  %1083 = vmatpush1.bf16.msra.mxu0 0
  %1084 = vmatprep.subr.bf16.mxu0 0
  %1085 = vmatpush1.bf16.msra.mxu0 0
  %1086 = vmatprep.subr.bf16.mxu0 0
  %1087 = vmatpush1.bf16.msra.mxu0 0
  %1088 = vmatprep.mubr.bf16.mxu0 0
  %1089 = vmatmul.mubr.bf16.gmra.mrb[0].mxu0 %v1054
  %v1090 = vpop.f32.mrb[0].mxu0
  %v1091 = vadd.f32 0.0, %v1090
  %v1092 = vpop.f32.mrb[0].mxu0
  %v1093 = vpop.f32.mrb[0].mxu0
  %v1094 = vpop.f32.mrb[0].mxu0
  %1095 = vdwg.mxu0
  %v1096 = vadd.f32 %v1034, %v1091
  %v1097 = vxor.u32 %v1096, 2147483648
  %v1098 = vmul.f32 %v1097, 1.442695
  %v1099 = vpow.pop %v1098
  %v1100 = vadd.f32 %v1099, 1.0
  %v1101 = vrcp.pop %v1100
  %v1102 = vmul.f32 1.0, %v1101
  %v1103 = vtanh.pop %v1096
  %v1104 = vld [vmem:[#allocation3] sm:$0xff]
  %1106 = vrot.lane.b32.xlu0 %v1104, 32
  %v1107 = vpop.permute.xlu0 %1106
  %v1109 = vmul.f32 %v1102, %v1107
  %1111 = vrot.lane.b32.xlu0 %v1103, 64
  %v1112 = vpop.permute.xlu0 %1111
  %v1114 = vmul.f32 %v1102, %v1112
  %1116 = vrot.lane.b32.xlu0 %v1114, 32
  %v1117 = vpop.permute.xlu0 %1116
  %v1119 = vadd.f32 %v1109, %v1117
  %v1120 = vtanh.pop %v1119
  %1122 = vrot.lane.b32.xlu0 %v1120, 64
  %v1123 = vpop.permute.xlu0 %1122
  %v1125 = vmul.f32 %v1102, %v1123
  %1127 = vrot.lane.b32.xlu0 %v1119, 96
  %v1128 = vpop.permute.xlu0 %1127
  %1130 = vst.msk [vmem:[#allocation3] sm:$0xff] %vm44, %v1128
  %1132 = vrot.lane.b32.xlu0 %v1125, 32
  %v1133 = vpop.permute.xlu0 %1132
  %1135 = vst.msk [vmem:[#allocation2] sm:$0xff] %vm44, %v1133
  %v1136 = vpack.c.bf16 %v1125, %v1125
  %v1138 = vunpack.c.l.b16 %v1136
  %v1139 = vpack.c.b16 %v1138, %v1138
  %1140 = vrot.lane.b32.xlu0 %v1139, 32
  %v1141 = vpop.permute.xlu0 %1140
  %s1143 = scalar_lea.vmem [#allocation4], 36
  %1144 = vst.msk [vmem:[%s1143] sm:$0xf] %vm135, %v1141
  %s1145 = scalar_lea.vmem %s0, 80
  %v1146 = vld [vmem:[%s1145] sm:$0xff]
  %v1147 = vld [vmem:[#allocation2] sm:$0xff]
  %v1148 = vpack.c.bf16 %v1147, %v1147
  %v1149 = vld [vmem:[%s1] sm:$0xf]
  %v1150 = vld [vmem:[%s1 + $0x4] sm:$0xf]
  %v1151 = vld [vmem:[%s1 + $0x8] sm:$0xf]
  %v1152 = vld [vmem:[%s1 + $0xc] sm:$0xf]
  %v1157 = vunpack.c.l.b16 %v1149
  %v1158 = vunpack.c.l.b16 %v1150
  %v1159 = vunpack.c.l.b16 %v1151
  %v1160 = vunpack.c.l.b16 %v1152
  %v1161 = vpack.c.b16 %v1158, %v1157
  %v1162 = vpack.c.b16 %v1160, %v1159
  %v1166 = vsel %vm44, %v1148, 0
  %1168 = vmatprep.subr.bf16.mxu0 0
  %1169 = vmatpush1.bf16.msra.mxu0 %v1161
  %1170 = vmatprep.subr.bf16.mxu0 0
  %1171 = vmatpush1.bf16.msra.mxu0 %v1162
  %1172 = vmatprep.subr.bf16.mxu0 0
  %1173 = vmatpush1.bf16.msra.mxu0 0
  %1174 = vmatprep.subr.bf16.mxu0 0
  %1175 = vmatpush1.bf16.msra.mxu0 0
  %1176 = vmatprep.subr.bf16.mxu0 0
  %1177 = vmatpush1.bf16.msra.mxu0 0
  %1178 = vmatprep.subr.bf16.mxu0 0
  %1179 = vmatpush1.bf16.msra.mxu0 0
  %1180 = vmatprep.subr.bf16.mxu0 0
  %1181 = vmatpush1.bf16.msra.mxu0 0
  %1182 = vmatprep.subr.bf16.mxu0 0
  %1183 = vmatpush1.bf16.msra.mxu0 0
  %1184 = vmatprep.subr.bf16.mxu0 0
  %1185 = vmatpush1.bf16.msra.mxu0 0
  %1186 = vmatprep.subr.bf16.mxu0 0
  %1187 = vmatpush1.bf16.msra.mxu0 0
  %1188 = vmatprep.subr.bf16.mxu0 0
  %1189 = vmatpush1.bf16.msra.mxu0 0
  %1190 = vmatprep.subr.bf16.mxu0 0
  %1191 = vmatpush1.bf16.msra.mxu0 0
  %1192 = vmatprep.subr.bf16.mxu0 0
  %1193 = vmatpush1.bf16.msra.mxu0 0
  %1194 = vmatprep.subr.bf16.mxu0 0
  %1195 = vmatpush1.bf16.msra.mxu0 0
  %1196 = vmatprep.subr.bf16.mxu0 0
  %1197 = vmatpush1.bf16.msra.mxu0 0
  %1198 = vmatprep.subr.bf16.mxu0 0
  %1199 = vmatpush1.bf16.msra.mxu0 0
  %1200 = vmatprep.mubr.bf16.mxu0 0
  %1201 = vmatmul.mubr.bf16.gmra.mrb[0].mxu0 %v1166
  %v1202 = vpop.f32.mrb[0].mxu0
  %v1203 = vadd.f32 0.0, %v1202
  %v1204 = vpop.f32.mrb[0].mxu0
  %v1205 = vpop.f32.mrb[0].mxu0
  %v1206 = vpop.f32.mrb[0].mxu0
  %1207 = vdwg.mxu0
  %v1208 = vadd.f32 %v1146, %v1203
  %v1209 = vxor.u32 %v1208, 2147483648
  %v1210 = vmul.f32 %v1209, 1.442695
  %v1211 = vpow.pop %v1210
  %v1212 = vadd.f32 %v1211, 1.0
  %v1213 = vrcp.pop %v1212
  %v1214 = vmul.f32 1.0, %v1213
  %v1215 = vtanh.pop %v1208
  %v1216 = vld [vmem:[#allocation3] sm:$0xff]
  %1218 = vrot.lane.b32.xlu0 %v1216, 32
  %v1219 = vpop.permute.xlu0 %1218
  %v1221 = vmul.f32 %v1214, %v1219
  %1223 = vrot.lane.b32.xlu0 %v1215, 64
  %v1224 = vpop.permute.xlu0 %1223
  %v1226 = vmul.f32 %v1214, %v1224
  %1228 = vrot.lane.b32.xlu0 %v1226, 32
  %v1229 = vpop.permute.xlu0 %1228
  %v1231 = vadd.f32 %v1221, %v1229
  %v1232 = vtanh.pop %v1231
  %1234 = vrot.lane.b32.xlu0 %v1232, 64
  %v1235 = vpop.permute.xlu0 %1234
  %v1237 = vmul.f32 %v1214, %v1235
  %1239 = vrot.lane.b32.xlu0 %v1231, 96
  %v1240 = vpop.permute.xlu0 %1239
  %1242 = vst.msk [vmem:[#allocation3] sm:$0xff] %vm44, %v1240
  %1244 = vrot.lane.b32.xlu0 %v1237, 32
  %v1245 = vpop.permute.xlu0 %1244
  %1247 = vst.msk [vmem:[#allocation2] sm:$0xff] %vm44, %v1245
  %v1248 = vpack.c.bf16 %v1237, %v1237
  %v1250 = vunpack.c.l.b16 %v1248
  %v1251 = vpack.c.b16 %v1250, %v1250
  %1252 = vrot.lane.b32.xlu0 %v1251, 32
  %v1253 = vpop.permute.xlu0 %1252
  %s1255 = scalar_lea.vmem [#allocation4], 40
  %1256 = vst.msk [vmem:[%s1255] sm:$0xf] %vm135, %v1253
  %s1257 = scalar_lea.vmem %s0, 88
  %v1258 = vld [vmem:[%s1257] sm:$0xff]
  %v1259 = vld [vmem:[#allocation2] sm:$0xff]
  %v1260 = vpack.c.bf16 %v1259, %v1259
  %v1261 = vld [vmem:[%s1] sm:$0xf]
  %v1262 = vld [vmem:[%s1 + $0x4] sm:$0xf]
  %v1263 = vld [vmem:[%s1 + $0x8] sm:$0xf]
  %v1264 = vld [vmem:[%s1 + $0xc] sm:$0xf]
  %v1269 = vunpack.c.l.b16 %v1261
  %v1270 = vunpack.c.l.b16 %v1262
  %v1271 = vunpack.c.l.b16 %v1263
  %v1272 = vunpack.c.l.b16 %v1264
  %v1273 = vpack.c.b16 %v1270, %v1269
  %v1274 = vpack.c.b16 %v1272, %v1271
  %v1278 = vsel %vm44, %v1260, 0
  %1280 = vmatprep.subr.bf16.mxu0 0
  %1281 = vmatpush1.bf16.msra.mxu0 %v1273
  %1282 = vmatprep.subr.bf16.mxu0 0
  %1283 = vmatpush1.bf16.msra.mxu0 %v1274
  %1284 = vmatprep.subr.bf16.mxu0 0
  %1285 = vmatpush1.bf16.msra.mxu0 0
  %1286 = vmatprep.subr.bf16.mxu0 0
  %1287 = vmatpush1.bf16.msra.mxu0 0
  %1288 = vmatprep.subr.bf16.mxu0 0
  %1289 = vmatpush1.bf16.msra.mxu0 0
  %1290 = vmatprep.subr.bf16.mxu0 0
  %1291 = vmatpush1.bf16.msra.mxu0 0
  %1292 = vmatprep.subr.bf16.mxu0 0
  %1293 = vmatpush1.bf16.msra.mxu0 0
  %1294 = vmatprep.subr.bf16.mxu0 0
  %1295 = vmatpush1.bf16.msra.mxu0 0
  %1296 = vmatprep.subr.bf16.mxu0 0
  %1297 = vmatpush1.bf16.msra.mxu0 0
  %1298 = vmatprep.subr.bf16.mxu0 0
  %1299 = vmatpush1.bf16.msra.mxu0 0
  %1300 = vmatprep.subr.bf16.mxu0 0
  %1301 = vmatpush1.bf16.msra.mxu0 0
  %1302 = vmatprep.subr.bf16.mxu0 0
  %1303 = vmatpush1.bf16.msra.mxu0 0
  %1304 = vmatprep.subr.bf16.mxu0 0
  %1305 = vmatpush1.bf16.msra.mxu0 0
  %1306 = vmatprep.subr.bf16.mxu0 0
  %1307 = vmatpush1.bf16.msra.mxu0 0
  %1308 = vmatprep.subr.bf16.mxu0 0
  %1309 = vmatpush1.bf16.msra.mxu0 0
  %1310 = vmatprep.subr.bf16.mxu0 0
  %1311 = vmatpush1.bf16.msra.mxu0 0
  %1312 = vmatprep.mubr.bf16.mxu0 0
  %1313 = vmatmul.mubr.bf16.gmra.mrb[0].mxu0 %v1278
  %v1314 = vpop.f32.mrb[0].mxu0
  %v1315 = vadd.f32 0.0, %v1314
  %v1316 = vpop.f32.mrb[0].mxu0
  %v1317 = vpop.f32.mrb[0].mxu0
  %v1318 = vpop.f32.mrb[0].mxu0
  %1319 = vdwg.mxu0
  %v1320 = vadd.f32 %v1258, %v1315
  %v1321 = vxor.u32 %v1320, 2147483648
  %v1322 = vmul.f32 %v1321, 1.442695
  %v1323 = vpow.pop %v1322
  %v1324 = vadd.f32 %v1323, 1.0
  %v1325 = vrcp.pop %v1324
  %v1326 = vmul.f32 1.0, %v1325
  %v1327 = vtanh.pop %v1320
  %v1328 = vld [vmem:[#allocation3] sm:$0xff]
  %1330 = vrot.lane.b32.xlu0 %v1328, 32
  %v1331 = vpop.permute.xlu0 %1330
  %v1333 = vmul.f32 %v1326, %v1331
  %1335 = vrot.lane.b32.xlu0 %v1327, 64
  %v1336 = vpop.permute.xlu0 %1335
  %v1338 = vmul.f32 %v1326, %v1336
  %1340 = vrot.lane.b32.xlu0 %v1338, 32
  %v1341 = vpop.permute.xlu0 %1340
  %v1343 = vadd.f32 %v1333, %v1341
  %v1344 = vtanh.pop %v1343
  %1346 = vrot.lane.b32.xlu0 %v1344, 64
  %v1347 = vpop.permute.xlu0 %1346
  %v1349 = vmul.f32 %v1326, %v1347
  %1351 = vrot.lane.b32.xlu0 %v1343, 96
  %v1352 = vpop.permute.xlu0 %1351
  %1354 = vst.msk [vmem:[#allocation3] sm:$0xff] %vm44, %v1352
  %1356 = vrot.lane.b32.xlu0 %v1349, 32
  %v1357 = vpop.permute.xlu0 %1356
  %1359 = vst.msk [vmem:[#allocation2] sm:$0xff] %vm44, %v1357
  %v1360 = vpack.c.bf16 %v1349, %v1349
  %v1362 = vunpack.c.l.b16 %v1360
  %v1363 = vpack.c.b16 %v1362, %v1362
  %1364 = vrot.lane.b32.xlu0 %v1363, 32
  %v1365 = vpop.permute.xlu0 %1364
  %s1367 = scalar_lea.vmem [#allocation4], 44
  %1368 = vst.msk [vmem:[%s1367] sm:$0xf] %vm135, %v1365
  %s1369 = scalar_lea.vmem %s0, 96
  %v1370 = vld [vmem:[%s1369] sm:$0xff]
  %v1371 = vld [vmem:[#allocation2] sm:$0xff]
  %v1372 = vpack.c.bf16 %v1371, %v1371
  %v1373 = vld [vmem:[%s1] sm:$0xf]
  %v1374 = vld [vmem:[%s1 + $0x4] sm:$0xf]
  %v1375 = vld [vmem:[%s1 + $0x8] sm:$0xf]
  %v1376 = vld [vmem:[%s1 + $0xc] sm:$0xf]
  %v1381 = vunpack.c.l.b16 %v1373
  %v1382 = vunpack.c.l.b16 %v1374
  %v1383 = vunpack.c.l.b16 %v1375
  %v1384 = vunpack.c.l.b16 %v1376
  %v1385 = vpack.c.b16 %v1382, %v1381
  %v1386 = vpack.c.b16 %v1384, %v1383
  %v1390 = vsel %vm44, %v1372, 0
  %1392 = vmatprep.subr.bf16.mxu0 0
  %1393 = vmatpush1.bf16.msra.mxu0 %v1385
  %1394 = vmatprep.subr.bf16.mxu0 0
  %1395 = vmatpush1.bf16.msra.mxu0 %v1386
  %1396 = vmatprep.subr.bf16.mxu0 0
  %1397 = vmatpush1.bf16.msra.mxu0 0
  %1398 = vmatprep.subr.bf16.mxu0 0
  %1399 = vmatpush1.bf16.msra.mxu0 0
  %1400 = vmatprep.subr.bf16.mxu0 0
  %1401 = vmatpush1.bf16.msra.mxu0 0
  %1402 = vmatprep.subr.bf16.mxu0 0
  %1403 = vmatpush1.bf16.msra.mxu0 0
  %1404 = vmatprep.subr.bf16.mxu0 0
  %1405 = vmatpush1.bf16.msra.mxu0 0
  %1406 = vmatprep.subr.bf16.mxu0 0
  %1407 = vmatpush1.bf16.msra.mxu0 0
  %1408 = vmatprep.subr.bf16.mxu0 0
  %1409 = vmatpush1.bf16.msra.mxu0 0
  %1410 = vmatprep.subr.bf16.mxu0 0
  %1411 = vmatpush1.bf16.msra.mxu0 0
  %1412 = vmatprep.subr.bf16.mxu0 0
  %1413 = vmatpush1.bf16.msra.mxu0 0
  %1414 = vmatprep.subr.bf16.mxu0 0
  %1415 = vmatpush1.bf16.msra.mxu0 0
  %1416 = vmatprep.subr.bf16.mxu0 0
  %1417 = vmatpush1.bf16.msra.mxu0 0
  %1418 = vmatprep.subr.bf16.mxu0 0
  %1419 = vmatpush1.bf16.msra.mxu0 0
  %1420 = vmatprep.subr.bf16.mxu0 0
  %1421 = vmatpush1.bf16.msra.mxu0 0
  %1422 = vmatprep.subr.bf16.mxu0 0
  %1423 = vmatpush1.bf16.msra.mxu0 0
  %1424 = vmatprep.mubr.bf16.mxu0 0
  %1425 = vmatmul.mubr.bf16.gmra.mrb[0].mxu0 %v1390
  %v1426 = vpop.f32.mrb[0].mxu0
  %v1427 = vadd.f32 0.0, %v1426
  %v1428 = vpop.f32.mrb[0].mxu0
  %v1429 = vpop.f32.mrb[0].mxu0
  %v1430 = vpop.f32.mrb[0].mxu0
  %1431 = vdwg.mxu0
  %v1432 = vadd.f32 %v1370, %v1427
  %v1433 = vxor.u32 %v1432, 2147483648
  %v1434 = vmul.f32 %v1433, 1.442695
  %v1435 = vpow.pop %v1434
  %v1436 = vadd.f32 %v1435, 1.0
  %v1437 = vrcp.pop %v1436
  %v1438 = vmul.f32 1.0, %v1437
  %v1439 = vtanh.pop %v1432
  %v1440 = vld [vmem:[#allocation3] sm:$0xff]
  %1442 = vrot.lane.b32.xlu0 %v1440, 32
  %v1443 = vpop.permute.xlu0 %1442
  %v1445 = vmul.f32 %v1438, %v1443
  %1447 = vrot.lane.b32.xlu0 %v1439, 64
  %v1448 = vpop.permute.xlu0 %1447
  %v1450 = vmul.f32 %v1438, %v1448
  %1452 = vrot.lane.b32.xlu0 %v1450, 32
  %v1453 = vpop.permute.xlu0 %1452
  %v1455 = vadd.f32 %v1445, %v1453
  %v1456 = vtanh.pop %v1455
  %1458 = vrot.lane.b32.xlu0 %v1456, 64
  %v1459 = vpop.permute.xlu0 %1458
  %v1461 = vmul.f32 %v1438, %v1459
  %1463 = vrot.lane.b32.xlu0 %v1455, 96
  %v1464 = vpop.permute.xlu0 %1463
  %1466 = vst.msk [vmem:[#allocation3] sm:$0xff] %vm44, %v1464
  %1468 = vrot.lane.b32.xlu0 %v1461, 32
  %v1469 = vpop.permute.xlu0 %1468
  %1471 = vst.msk [vmem:[#allocation2] sm:$0xff] %vm44, %v1469
  %v1472 = vpack.c.bf16 %v1461, %v1461
  %v1474 = vunpack.c.l.b16 %v1472
  %v1475 = vpack.c.b16 %v1474, %v1474
  %1476 = vrot.lane.b32.xlu0 %v1475, 32
  %v1477 = vpop.permute.xlu0 %1476
  %s1479 = scalar_lea.vmem [#allocation4], 48
  %1480 = vst.msk [vmem:[%s1479] sm:$0xf] %vm135, %v1477
  %s1481 = scalar_lea.vmem %s0, 104
  %v1482 = vld [vmem:[%s1481] sm:$0xff]
  %v1483 = vld [vmem:[#allocation2] sm:$0xff]
  %v1484 = vpack.c.bf16 %v1483, %v1483
  %v1485 = vld [vmem:[%s1] sm:$0xf]
  %v1486 = vld [vmem:[%s1 + $0x4] sm:$0xf]
  %v1487 = vld [vmem:[%s1 + $0x8] sm:$0xf]
  %v1488 = vld [vmem:[%s1 + $0xc] sm:$0xf]
  %v1493 = vunpack.c.l.b16 %v1485
  %v1494 = vunpack.c.l.b16 %v1486
  %v1495 = vunpack.c.l.b16 %v1487
  %v1496 = vunpack.c.l.b16 %v1488
  %v1497 = vpack.c.b16 %v1494, %v1493
  %v1498 = vpack.c.b16 %v1496, %v1495
  %v1502 = vsel %vm44, %v1484, 0
  %1504 = vmatprep.subr.bf16.mxu0 0
  %1505 = vmatpush1.bf16.msra.mxu0 %v1497
  %1506 = vmatprep.subr.bf16.mxu0 0
  %1507 = vmatpush1.bf16.msra.mxu0 %v1498
  %1508 = vmatprep.subr.bf16.mxu0 0
  %1509 = vmatpush1.bf16.msra.mxu0 0
  %1510 = vmatprep.subr.bf16.mxu0 0
  %1511 = vmatpush1.bf16.msra.mxu0 0
  %1512 = vmatprep.subr.bf16.mxu0 0
  %1513 = vmatpush1.bf16.msra.mxu0 0
  %1514 = vmatprep.subr.bf16.mxu0 0
  %1515 = vmatpush1.bf16.msra.mxu0 0
  %1516 = vmatprep.subr.bf16.mxu0 0
  %1517 = vmatpush1.bf16.msra.mxu0 0
  %1518 = vmatprep.subr.bf16.mxu0 0
  %1519 = vmatpush1.bf16.msra.mxu0 0
  %1520 = vmatprep.subr.bf16.mxu0 0
  %1521 = vmatpush1.bf16.msra.mxu0 0
  %1522 = vmatprep.subr.bf16.mxu0 0
  %1523 = vmatpush1.bf16.msra.mxu0 0
  %1524 = vmatprep.subr.bf16.mxu0 0
  %1525 = vmatpush1.bf16.msra.mxu0 0
  %1526 = vmatprep.subr.bf16.mxu0 0
  %1527 = vmatpush1.bf16.msra.mxu0 0
  %1528 = vmatprep.subr.bf16.mxu0 0
  %1529 = vmatpush1.bf16.msra.mxu0 0
  %1530 = vmatprep.subr.bf16.mxu0 0
  %1531 = vmatpush1.bf16.msra.mxu0 0
  %1532 = vmatprep.subr.bf16.mxu0 0
  %1533 = vmatpush1.bf16.msra.mxu0 0
  %1534 = vmatprep.subr.bf16.mxu0 0
  %1535 = vmatpush1.bf16.msra.mxu0 0
  %1536 = vmatprep.mubr.bf16.mxu0 0
  %1537 = vmatmul.mubr.bf16.gmra.mrb[0].mxu0 %v1502
  %v1538 = vpop.f32.mrb[0].mxu0
  %v1539 = vadd.f32 0.0, %v1538
  %v1540 = vpop.f32.mrb[0].mxu0
  %v1541 = vpop.f32.mrb[0].mxu0
  %v1542 = vpop.f32.mrb[0].mxu0
  %1543 = vdwg.mxu0
  %v1544 = vadd.f32 %v1482, %v1539
  %v1545 = vxor.u32 %v1544, 2147483648
  %v1546 = vmul.f32 %v1545, 1.442695
  %v1547 = vpow.pop %v1546
  %v1548 = vadd.f32 %v1547, 1.0
  %v1549 = vrcp.pop %v1548
  %v1550 = vmul.f32 1.0, %v1549
  %v1551 = vtanh.pop %v1544
  %v1552 = vld [vmem:[#allocation3] sm:$0xff]
  %1554 = vrot.lane.b32.xlu0 %v1552, 32
  %v1555 = vpop.permute.xlu0 %1554
  %v1557 = vmul.f32 %v1550, %v1555
  %1559 = vrot.lane.b32.xlu0 %v1551, 64
  %v1560 = vpop.permute.xlu0 %1559
  %v1562 = vmul.f32 %v1550, %v1560
  %1564 = vrot.lane.b32.xlu0 %v1562, 32
  %v1565 = vpop.permute.xlu0 %1564
  %v1567 = vadd.f32 %v1557, %v1565
  %v1568 = vtanh.pop %v1567
  %1570 = vrot.lane.b32.xlu0 %v1568, 64
  %v1571 = vpop.permute.xlu0 %1570
  %v1573 = vmul.f32 %v1550, %v1571
  %1575 = vrot.lane.b32.xlu0 %v1567, 96
  %v1576 = vpop.permute.xlu0 %1575
  %1578 = vst.msk [vmem:[#allocation3] sm:$0xff] %vm44, %v1576
  %1580 = vrot.lane.b32.xlu0 %v1573, 32
  %v1581 = vpop.permute.xlu0 %1580
  %1583 = vst.msk [vmem:[#allocation2] sm:$0xff] %vm44, %v1581
  %v1584 = vpack.c.bf16 %v1573, %v1573
  %v1586 = vunpack.c.l.b16 %v1584
  %v1587 = vpack.c.b16 %v1586, %v1586
  %1588 = vrot.lane.b32.xlu0 %v1587, 32
  %v1589 = vpop.permute.xlu0 %1588
  %s1591 = scalar_lea.vmem [#allocation4], 52
  %1592 = vst.msk [vmem:[%s1591] sm:$0xf] %vm135, %v1589
  %s1593 = scalar_lea.vmem %s0, 112
  %v1594 = vld [vmem:[%s1593] sm:$0xff]
  %v1595 = vld [vmem:[#allocation2] sm:$0xff]
  %v1596 = vpack.c.bf16 %v1595, %v1595
  %v1597 = vld [vmem:[%s1] sm:$0xf]
  %v1598 = vld [vmem:[%s1 + $0x4] sm:$0xf]
  %v1599 = vld [vmem:[%s1 + $0x8] sm:$0xf]
  %v1600 = vld [vmem:[%s1 + $0xc] sm:$0xf]
  %v1605 = vunpack.c.l.b16 %v1597
  %v1606 = vunpack.c.l.b16 %v1598
  %v1607 = vunpack.c.l.b16 %v1599
  %v1608 = vunpack.c.l.b16 %v1600
  %v1609 = vpack.c.b16 %v1606, %v1605
  %v1610 = vpack.c.b16 %v1608, %v1607
  %v1614 = vsel %vm44, %v1596, 0
  %1616 = vmatprep.subr.bf16.mxu0 0
  %1617 = vmatpush1.bf16.msra.mxu0 %v1609
  %1618 = vmatprep.subr.bf16.mxu0 0
  %1619 = vmatpush1.bf16.msra.mxu0 %v1610
  %1620 = vmatprep.subr.bf16.mxu0 0
  %1621 = vmatpush1.bf16.msra.mxu0 0
  %1622 = vmatprep.subr.bf16.mxu0 0
  %1623 = vmatpush1.bf16.msra.mxu0 0
  %1624 = vmatprep.subr.bf16.mxu0 0
  %1625 = vmatpush1.bf16.msra.mxu0 0
  %1626 = vmatprep.subr.bf16.mxu0 0
  %1627 = vmatpush1.bf16.msra.mxu0 0
  %1628 = vmatprep.subr.bf16.mxu0 0
  %1629 = vmatpush1.bf16.msra.mxu0 0
  %1630 = vmatprep.subr.bf16.mxu0 0
  %1631 = vmatpush1.bf16.msra.mxu0 0
  %1632 = vmatprep.subr.bf16.mxu0 0
  %1633 = vmatpush1.bf16.msra.mxu0 0
  %1634 = vmatprep.subr.bf16.mxu0 0
  %1635 = vmatpush1.bf16.msra.mxu0 0
  %1636 = vmatprep.subr.bf16.mxu0 0
  %1637 = vmatpush1.bf16.msra.mxu0 0
  %1638 = vmatprep.subr.bf16.mxu0 0
  %1639 = vmatpush1.bf16.msra.mxu0 0
  %1640 = vmatprep.subr.bf16.mxu0 0
  %1641 = vmatpush1.bf16.msra.mxu0 0
  %1642 = vmatprep.subr.bf16.mxu0 0
  %1643 = vmatpush1.bf16.msra.mxu0 0
  %1644 = vmatprep.subr.bf16.mxu0 0
  %1645 = vmatpush1.bf16.msra.mxu0 0
  %1646 = vmatprep.subr.bf16.mxu0 0
  %1647 = vmatpush1.bf16.msra.mxu0 0
  %1648 = vmatprep.mubr.bf16.mxu0 0
  %1649 = vmatmul.mubr.bf16.gmra.mrb[0].mxu0 %v1614
  %v1650 = vpop.f32.mrb[0].mxu0
  %v1651 = vadd.f32 0.0, %v1650
  %v1652 = vpop.f32.mrb[0].mxu0
  %v1653 = vpop.f32.mrb[0].mxu0
  %v1654 = vpop.f32.mrb[0].mxu0
  %1655 = vdwg.mxu0
  %v1656 = vadd.f32 %v1594, %v1651
  %v1657 = vxor.u32 %v1656, 2147483648
  %v1658 = vmul.f32 %v1657, 1.442695
  %v1659 = vpow.pop %v1658
  %v1660 = vadd.f32 %v1659, 1.0
  %v1661 = vrcp.pop %v1660
  %v1662 = vmul.f32 1.0, %v1661
  %v1663 = vtanh.pop %v1656
  %v1664 = vld [vmem:[#allocation3] sm:$0xff]
  %1666 = vrot.lane.b32.xlu0 %v1664, 32
  %v1667 = vpop.permute.xlu0 %1666
  %v1669 = vmul.f32 %v1662, %v1667
  %1671 = vrot.lane.b32.xlu0 %v1663, 64
  %v1672 = vpop.permute.xlu0 %1671
  %v1674 = vmul.f32 %v1662, %v1672
  %1676 = vrot.lane.b32.xlu0 %v1674, 32
  %v1677 = vpop.permute.xlu0 %1676
  %v1679 = vadd.f32 %v1669, %v1677
  %v1680 = vtanh.pop %v1679
  %1682 = vrot.lane.b32.xlu0 %v1680, 64
  %v1683 = vpop.permute.xlu0 %1682
  %v1685 = vmul.f32 %v1662, %v1683
  %1687 = vrot.lane.b32.xlu0 %v1679, 96
  %v1688 = vpop.permute.xlu0 %1687
  %1690 = vst.msk [vmem:[#allocation3] sm:$0xff] %vm44, %v1688
  %1692 = vrot.lane.b32.xlu0 %v1685, 32
  %v1693 = vpop.permute.xlu0 %1692
  %1695 = vst.msk [vmem:[#allocation2] sm:$0xff] %vm44, %v1693
  %v1696 = vpack.c.bf16 %v1685, %v1685
  %v1698 = vunpack.c.l.b16 %v1696
  %v1699 = vpack.c.b16 %v1698, %v1698
  %1700 = vrot.lane.b32.xlu0 %v1699, 32
  %v1701 = vpop.permute.xlu0 %1700
  %s1703 = scalar_lea.vmem [#allocation4], 56
  %1704 = vst.msk [vmem:[%s1703] sm:$0xf] %vm135, %v1701
  %s1705 = scalar_lea.vmem %s0, 120
  %v1706 = vld [vmem:[%s1705] sm:$0xff]
  %v1707 = vld [vmem:[#allocation2] sm:$0xff]
  %v1708 = vpack.c.bf16 %v1707, %v1707
  %v1709 = vld [vmem:[%s1] sm:$0xf]
  %v1710 = vld [vmem:[%s1 + $0x4] sm:$0xf]
  %v1711 = vld [vmem:[%s1 + $0x8] sm:$0xf]
  %v1712 = vld [vmem:[%s1 + $0xc] sm:$0xf]
  %v1717 = vunpack.c.l.b16 %v1709
  %v1718 = vunpack.c.l.b16 %v1710
  %v1719 = vunpack.c.l.b16 %v1711
  %v1720 = vunpack.c.l.b16 %v1712
  %v1721 = vpack.c.b16 %v1718, %v1717
  %v1722 = vpack.c.b16 %v1720, %v1719
  %v1726 = vsel %vm44, %v1708, 0
  %1728 = vmatprep.subr.bf16.mxu0 0
  %1729 = vmatpush1.bf16.msra.mxu0 %v1721
  %1730 = vmatprep.subr.bf16.mxu0 0
  %1731 = vmatpush1.bf16.msra.mxu0 %v1722
  %1732 = vmatprep.subr.bf16.mxu0 0
  %1733 = vmatpush1.bf16.msra.mxu0 0
  %1734 = vmatprep.subr.bf16.mxu0 0
  %1735 = vmatpush1.bf16.msra.mxu0 0
  %1736 = vmatprep.subr.bf16.mxu0 0
  %1737 = vmatpush1.bf16.msra.mxu0 0
  %1738 = vmatprep.subr.bf16.mxu0 0
  %1739 = vmatpush1.bf16.msra.mxu0 0
  %1740 = vmatprep.subr.bf16.mxu0 0
  %1741 = vmatpush1.bf16.msra.mxu0 0
  %1742 = vmatprep.subr.bf16.mxu0 0
  %1743 = vmatpush1.bf16.msra.mxu0 0
  %1744 = vmatprep.subr.bf16.mxu0 0
  %1745 = vmatpush1.bf16.msra.mxu0 0
  %1746 = vmatprep.subr.bf16.mxu0 0
  %1747 = vmatpush1.bf16.msra.mxu0 0
  %1748 = vmatprep.subr.bf16.mxu0 0
  %1749 = vmatpush1.bf16.msra.mxu0 0
  %1750 = vmatprep.subr.bf16.mxu0 0
  %1751 = vmatpush1.bf16.msra.mxu0 0
  %1752 = vmatprep.subr.bf16.mxu0 0
  %1753 = vmatpush1.bf16.msra.mxu0 0
  %1754 = vmatprep.subr.bf16.mxu0 0
  %1755 = vmatpush1.bf16.msra.mxu0 0
  %1756 = vmatprep.subr.bf16.mxu0 0
  %1757 = vmatpush1.bf16.msra.mxu0 0
  %1758 = vmatprep.subr.bf16.mxu0 0
  %1759 = vmatpush1.bf16.msra.mxu0 0
  %1760 = vmatprep.mubr.bf16.mxu0 0
  %1761 = vmatmul.mubr.bf16.gmra.mrb[0].mxu0 %v1726
  %v1762 = vpop.f32.mrb[0].mxu0
  %v1763 = vadd.f32 0.0, %v1762
  %v1764 = vpop.f32.mrb[0].mxu0
  %v1765 = vpop.f32.mrb[0].mxu0
  %v1766 = vpop.f32.mrb[0].mxu0
  %1767 = vdwg.mxu0
  %v1768 = vadd.f32 %v1706, %v1763
  %v1769 = vxor.u32 %v1768, 2147483648
  %v1770 = vmul.f32 %v1769, 1.442695
  %v1771 = vpow.pop %v1770
  %v1772 = vadd.f32 %v1771, 1.0
  %v1773 = vrcp.pop %v1772
  %v1774 = vmul.f32 1.0, %v1773
  %v1775 = vtanh.pop %v1768
  %v1776 = vld [vmem:[#allocation3] sm:$0xff]
  %1778 = vrot.lane.b32.xlu0 %v1776, 32
  %v1779 = vpop.permute.xlu0 %1778
  %v1781 = vmul.f32 %v1774, %v1779
  %1783 = vrot.lane.b32.xlu0 %v1775, 64
  %v1784 = vpop.permute.xlu0 %1783
  %v1786 = vmul.f32 %v1774, %v1784
  %1788 = vrot.lane.b32.xlu0 %v1786, 32
  %v1789 = vpop.permute.xlu0 %1788
  %v1791 = vadd.f32 %v1781, %v1789
  %v1792 = vtanh.pop %v1791
  %1794 = vrot.lane.b32.xlu0 %v1792, 64
  %v1795 = vpop.permute.xlu0 %1794
  %v1797 = vmul.f32 %v1774, %v1795
  %1799 = vrot.lane.b32.xlu0 %v1791, 96
  %v1800 = vpop.permute.xlu0 %1799
  %1802 = vst.msk [vmem:[#allocation3] sm:$0xff] %vm44, %v1800
  %1804 = vrot.lane.b32.xlu0 %v1797, 32
  %v1805 = vpop.permute.xlu0 %1804
  %1807 = vst.msk [vmem:[#allocation2] sm:$0xff] %vm44, %v1805
  %v1808 = vpack.c.bf16 %v1797, %v1797
  %v1810 = vunpack.c.l.b16 %v1808
  %v1811 = vpack.c.b16 %v1810, %v1810
  %1812 = vrot.lane.b32.xlu0 %v1811, 32
  %v1813 = vpop.permute.xlu0 %1812
  %s1815 = scalar_lea.vmem [#allocation4], 60
  %1816 = vst.msk [vmem:[%s1815] sm:$0xf] %vm135, %v1813
  %v1817 = vld [vmem:[#allocation4] sm:$0xf]
  %v1818 = vld [vmem:[#allocation4 + $0x4] sm:$0xf]
  %v1819 = vld [vmem:[#allocation4 + $0x8] sm:$0xf]
  %v1820 = vld [vmem:[#allocation4 + $0xc] sm:$0xf]
  %v1821 = vld [vmem:[#allocation4 + $0x10] sm:$0xf]
  %v1822 = vld [vmem:[#allocation4 + $0x14] sm:$0xf]
  %v1823 = vld [vmem:[#allocation4 + $0x18] sm:$0xf]
  %v1824 = vld [vmem:[#allocation4 + $0x1c] sm:$0xf]
  %v1825 = vld [vmem:[#allocation4 + $0x20] sm:$0xf]
  %v1826 = vld [vmem:[#allocation4 + $0x24] sm:$0xf]
  %v1827 = vld [vmem:[#allocation4 + $0x28] sm:$0xf]
  %v1828 = vld [vmem:[#allocation4 + $0x2c] sm:$0xf]
  %v1829 = vld [vmem:[#allocation4 + $0x30] sm:$0xf]
  %v1830 = vld [vmem:[#allocation4 + $0x34] sm:$0xf]
  %v1831 = vld [vmem:[#allocation4 + $0x38] sm:$0xf]
  %v1832 = vld [vmem:[#allocation4 + $0x3c] sm:$0xf]
  %v1833 = vld [vmem:[%s2] sm:$0xf]
  %v1834 = vld [vmem:[%s2 + $0x4] sm:$0xf]
  %v1835 = vld [vmem:[%s2 + $0x8] sm:$0xf]
  %v1836 = vld [vmem:[%s2 + $0xc] sm:$0xf]
  %v1837 = vld [vmem:[%s3] sm:$0x1]
  %v1839 = vlaneseq
  %v1840 = vshrl.u32 %v1839, 7
  %v1841 = vsub.s32 0, %v1840
  %v1842 = vrot.slane %v1837, %v1841
  %v1860 = vunpack.c.l.b16 %v1817
  %v1861 = vunpack.c.l.b16 %v1818
  %v1862 = vunpack.c.l.b16 %v1819
  %v1863 = vunpack.c.l.b16 %v1820
  %v1864 = vunpack.c.l.b16 %v1821
  %v1865 = vunpack.c.l.b16 %v1822
  %v1866 = vunpack.c.l.b16 %v1823
  %v1867 = vunpack.c.l.b16 %v1824
  %v1868 = vunpack.c.l.b16 %v1825
  %v1869 = vunpack.c.l.b16 %v1826
  %v1870 = vunpack.c.l.b16 %v1827
  %v1871 = vunpack.c.l.b16 %v1828
  %v1872 = vunpack.c.l.b16 %v1829
  %v1873 = vunpack.c.l.b16 %v1830
  %v1874 = vunpack.c.l.b16 %v1831
  %v1875 = vunpack.c.l.b16 %v1832
  %v1876 = vpack.c.b16 %v1861, %v1860
  %v1877 = vpack.c.b16 %v1863, %v1862
  %v1878 = vpack.c.b16 %v1865, %v1864
  %v1879 = vpack.c.b16 %v1867, %v1866
  %v1880 = vpack.c.b16 %v1869, %v1868
  %v1881 = vpack.c.b16 %v1871, %v1870
  %v1882 = vpack.c.b16 %v1873, %v1872
  %v1883 = vpack.c.b16 %v1875, %v1874
  %v1888 = vunpack.c.l.b16 %v1833
  %v1889 = vunpack.c.l.b16 %v1834
  %v1890 = vunpack.c.l.b16 %v1835
  %v1891 = vunpack.c.l.b16 %v1836
  %v1892 = vpack.c.b16 %v1889, %v1888
  %v1893 = vpack.c.b16 %v1891, %v1890
  %v1897 = vsel %vm44, %v1876, 0
  %v1900 = vsel %vm44, %v1877, 0
  %v1903 = vsel %vm44, %v1878, 0
  %v1906 = vsel %vm44, %v1879, 0
  %v1909 = vsel %vm44, %v1880, 0
  %v1912 = vsel %vm44, %v1881, 0
  %v1915 = vsel %vm44, %v1882, 0
  %v1918 = vsel %vm44, %v1883, 0
  %1920 = vmatprep.subr.bf16.mxu0 0
  %1921 = vmatpush1.bf16.msra.mxu0 %v1892
  %1922 = vmatprep.subr.bf16.mxu0 0
  %1923 = vmatpush1.bf16.msra.mxu0 %v1893
  %1924 = vmatprep.subr.bf16.mxu0 0
  %1925 = vmatpush1.bf16.msra.mxu0 0
  %1926 = vmatprep.subr.bf16.mxu0 0
  %1927 = vmatpush1.bf16.msra.mxu0 0
  %1928 = vmatprep.subr.bf16.mxu0 0
  %1929 = vmatpush1.bf16.msra.mxu0 0
  %1930 = vmatprep.subr.bf16.mxu0 0
  %1931 = vmatpush1.bf16.msra.mxu0 0
  %1932 = vmatprep.subr.bf16.mxu0 0
  %1933 = vmatpush1.bf16.msra.mxu0 0
  %1934 = vmatprep.subr.bf16.mxu0 0
  %1935 = vmatpush1.bf16.msra.mxu0 0
  %1936 = vmatprep.subr.bf16.mxu0 0
  %1937 = vmatpush1.bf16.msra.mxu0 0
  %1938 = vmatprep.subr.bf16.mxu0 0
  %1939 = vmatpush1.bf16.msra.mxu0 0
  %1940 = vmatprep.subr.bf16.mxu0 0
  %1941 = vmatpush1.bf16.msra.mxu0 0
  %1942 = vmatprep.subr.bf16.mxu0 0
  %1943 = vmatpush1.bf16.msra.mxu0 0
  %1944 = vmatprep.subr.bf16.mxu0 0
  %1945 = vmatpush1.bf16.msra.mxu0 0
  %1946 = vmatprep.subr.bf16.mxu0 0
  %1947 = vmatpush1.bf16.msra.mxu0 0
  %1948 = vmatprep.subr.bf16.mxu0 0
  %1949 = vmatpush1.bf16.msra.mxu0 0
  %1950 = vmatprep.subr.bf16.mxu0 0
  %1951 = vmatpush1.bf16.msra.mxu0 0
  %1952 = vmatprep.mubr.bf16.mxu0 0
  %1953 = vmatmul.mubr.bf16.gmra.mrb[0].mxu0 %v1897
  %v1954 = vpop.f32.mrb[0].mxu0
  %v1955 = vadd.f32 %v1842, %v1954
  %v1956 = vpop.f32.mrb[0].mxu0
  %v1957 = vpop.f32.mrb[0].mxu0
  %v1958 = vadd.f32 %v1842, %v1957
  %v1959 = vpop.f32.mrb[0].mxu0
  %1960 = vmatprep.mubr.bf16.mxu0 0
  %1961 = vmatmul.mubr.bf16.gmra.mrb[0].mxu0 %v1900
  %v1962 = vpop.f32.mrb[0].mxu0
  %v1963 = vadd.f32 %v1842, %v1962
  %v1964 = vpop.f32.mrb[0].mxu0
  %v1965 = vpop.f32.mrb[0].mxu0
  %v1966 = vadd.f32 %v1842, %v1965
  %v1967 = vpop.f32.mrb[0].mxu0
  %1968 = vmatprep.mubr.bf16.mxu0 0
  %1969 = vmatmul.mubr.bf16.gmra.mrb[0].mxu0 %v1903
  %v1970 = vpop.f32.mrb[0].mxu0
  %v1971 = vadd.f32 %v1842, %v1970
  %v1972 = vpop.f32.mrb[0].mxu0
  %v1973 = vpop.f32.mrb[0].mxu0
  %v1974 = vadd.f32 %v1842, %v1973
  %v1975 = vpop.f32.mrb[0].mxu0
  %1976 = vmatprep.mubr.bf16.mxu0 0
  %1977 = vmatmul.mubr.bf16.gmra.mrb[0].mxu0 %v1906
  %v1978 = vpop.f32.mrb[0].mxu0
  %v1979 = vadd.f32 %v1842, %v1978
  %v1980 = vpop.f32.mrb[0].mxu0
  %v1981 = vpop.f32.mrb[0].mxu0
  %v1982 = vadd.f32 %v1842, %v1981
  %v1983 = vpop.f32.mrb[0].mxu0
  %1984 = vmatprep.mubr.bf16.mxu0 0
  %1985 = vmatmul.mubr.bf16.gmra.mrb[0].mxu0 %v1909
  %v1986 = vpop.f32.mrb[0].mxu0
  %v1987 = vadd.f32 %v1842, %v1986
  %v1988 = vpop.f32.mrb[0].mxu0
  %v1989 = vpop.f32.mrb[0].mxu0
  %v1990 = vadd.f32 %v1842, %v1989
  %v1991 = vpop.f32.mrb[0].mxu0
  %1992 = vmatprep.mubr.bf16.mxu0 0
  %1993 = vmatmul.mubr.bf16.gmra.mrb[0].mxu0 %v1912
  %v1994 = vpop.f32.mrb[0].mxu0
  %v1995 = vadd.f32 %v1842, %v1994
  %v1996 = vpop.f32.mrb[0].mxu0
  %v1997 = vpop.f32.mrb[0].mxu0
  %v1998 = vadd.f32 %v1842, %v1997
  %v1999 = vpop.f32.mrb[0].mxu0
  %2000 = vmatprep.mubr.bf16.mxu0 0
  %2001 = vmatmul.mubr.bf16.gmra.mrb[0].mxu0 %v1915
  %v2002 = vpop.f32.mrb[0].mxu0
  %v2003 = vadd.f32 %v1842, %v2002
  %v2004 = vpop.f32.mrb[0].mxu0
  %v2005 = vpop.f32.mrb[0].mxu0
  %v2006 = vadd.f32 %v1842, %v2005
  %v2007 = vpop.f32.mrb[0].mxu0
  %2008 = vmatprep.mubr.bf16.mxu0 0
  %2009 = vmatmul.mubr.bf16.gmra.mrb[0].mxu0 %v1918
  %v2010 = vpop.f32.mrb[0].mxu0
  %v2011 = vadd.f32 %v1842, %v2010
  %v2012 = vpop.f32.mrb[0].mxu0
  %v2013 = vpop.f32.mrb[0].mxu0
  %v2014 = vadd.f32 %v1842, %v2013
  %v2015 = vpop.f32.mrb[0].mxu0
  %2016 = vdwg.mxu0
  %vm2017 = vcmask 39936
  %v2018 = vsel %vm2017, %v1955, -inf
  %2019 = vmax.xlane.f32.xlu0 %v2018
  %v2020 = vpop.xlane.xlu0 %2019
  %v2021 = vsel %vm2017, %v1958, -inf
  %2022 = vmax.xlane.f32.xlu0 %v2021
  %v2023 = vpop.xlane.xlu0 %2022
  %v2024 = vsel %vm2017, %v1963, -inf
  %2025 = vmax.xlane.f32.xlu0 %v2024
  %v2026 = vpop.xlane.xlu0 %2025
  %v2027 = vsel %vm2017, %v1966, -inf
  %2028 = vmax.xlane.f32.xlu0 %v2027
  %v2029 = vpop.xlane.xlu0 %2028
  %v2030 = vsel %vm2017, %v1971, -inf
  %2031 = vmax.xlane.f32.xlu0 %v2030
  %v2032 = vpop.xlane.xlu0 %2031
  %v2033 = vsel %vm2017, %v1974, -inf
  %2034 = vmax.xlane.f32.xlu0 %v2033
  %v2035 = vpop.xlane.xlu0 %2034
  %v2036 = vsel %vm2017, %v1979, -inf
  %2037 = vmax.xlane.f32.xlu0 %v2036
  %v2038 = vpop.xlane.xlu0 %2037
  %v2039 = vsel %vm2017, %v1982, -inf
  %2040 = vmax.xlane.f32.xlu0 %v2039
  %v2041 = vpop.xlane.xlu0 %2040
  %v2042 = vsel %vm2017, %v1987, -inf
  %2043 = vmax.xlane.f32.xlu0 %v2042
  %v2044 = vpop.xlane.xlu0 %2043
  %v2045 = vsel %vm2017, %v1990, -inf
  %2046 = vmax.xlane.f32.xlu0 %v2045
  %v2047 = vpop.xlane.xlu0 %2046
  %v2048 = vsel %vm2017, %v1995, -inf
  %2049 = vmax.xlane.f32.xlu0 %v2048
  %v2050 = vpop.xlane.xlu0 %2049
  %v2051 = vsel %vm2017, %v1998, -inf
  %2052 = vmax.xlane.f32.xlu0 %v2051
  %v2053 = vpop.xlane.xlu0 %2052
  %v2054 = vsel %vm2017, %v2003, -inf
  %2055 = vmax.xlane.f32.xlu0 %v2054
  %v2056 = vpop.xlane.xlu0 %2055
  %v2057 = vsel %vm2017, %v2006, -inf
  %2058 = vmax.xlane.f32.xlu0 %v2057
  %v2059 = vpop.xlane.xlu0 %2058
  %v2060 = vsel %vm2017, %v2011, -inf
  %2061 = vmax.xlane.f32.xlu0 %v2060
  %v2062 = vpop.xlane.xlu0 %2061
  %v2063 = vsel %vm2017, %v2014, -inf
  %2064 = vmax.xlane.f32.xlu0 %v2063
  %v2065 = vpop.xlane.xlu0 %2064
  %v2066 = vsub.f32 %v1955, %v2020
  %v2067 = vsub.f32 %v1958, %v2023
  %v2068 = vsub.f32 %v1963, %v2026
  %v2069 = vsub.f32 %v1966, %v2029
  %v2070 = vsub.f32 %v1971, %v2032
  %v2071 = vsub.f32 %v1974, %v2035
  %v2072 = vsub.f32 %v1979, %v2038
  %v2073 = vsub.f32 %v1982, %v2041
  %v2074 = vsub.f32 %v1987, %v2044
  %v2075 = vsub.f32 %v1990, %v2047
  %v2076 = vsub.f32 %v1995, %v2050
  %v2077 = vsub.f32 %v1998, %v2053
  %v2078 = vsub.f32 %v2003, %v2056
  %v2079 = vsub.f32 %v2006, %v2059
  %v2080 = vsub.f32 %v2011, %v2062
  %v2081 = vsub.f32 %v2014, %v2065
  %v2082 = vmul.f32 %v2066, 1.442695
  %v2083 = vpow.pop %v2082
  %v2084 = vmul.f32 %v2067, 1.442695
  %v2085 = vpow.pop %v2084
  %v2086 = vmul.f32 %v2068, 1.442695
  %v2087 = vpow.pop %v2086
  %v2088 = vmul.f32 %v2069, 1.442695
  %v2089 = vpow.pop %v2088
  %v2090 = vmul.f32 %v2070, 1.442695
  %v2091 = vpow.pop %v2090
  %v2092 = vmul.f32 %v2071, 1.442695
  %v2093 = vpow.pop %v2092
  %v2094 = vmul.f32 %v2072, 1.442695
  %v2095 = vpow.pop %v2094
  %v2096 = vmul.f32 %v2073, 1.442695
  %v2097 = vpow.pop %v2096
  %v2098 = vmul.f32 %v2074, 1.442695
  %v2099 = vpow.pop %v2098
  %v2100 = vmul.f32 %v2075, 1.442695
  %v2101 = vpow.pop %v2100
  %v2102 = vmul.f32 %v2076, 1.442695
  %v2103 = vpow.pop %v2102
  %v2104 = vmul.f32 %v2077, 1.442695
  %v2105 = vpow.pop %v2104
  %v2106 = vmul.f32 %v2078, 1.442695
  %v2107 = vpow.pop %v2106
  %v2108 = vmul.f32 %v2079, 1.442695
  %v2109 = vpow.pop %v2108
  %v2110 = vmul.f32 %v2080, 1.442695
  %v2111 = vpow.pop %v2110
  %v2112 = vmul.f32 %v2081, 1.442695
  %v2113 = vpow.pop %v2112
  %v2114 = vsel %vm2017, %v2083, 0.0
  %2115 = vadd.xlane.f32.xlu0 %v2114
  %v2116 = vpop.xlane.xlu0 %2115
  %v2117 = vsel %vm2017, %v2085, 0.0
  %2118 = vadd.xlane.f32.xlu0 %v2117
  %v2119 = vpop.xlane.xlu0 %2118
  %v2120 = vsel %vm2017, %v2087, 0.0
  %2121 = vadd.xlane.f32.xlu0 %v2120
  %v2122 = vpop.xlane.xlu0 %2121
  %v2123 = vsel %vm2017, %v2089, 0.0
  %2124 = vadd.xlane.f32.xlu0 %v2123
  %v2125 = vpop.xlane.xlu0 %2124
  %v2126 = vsel %vm2017, %v2091, 0.0
  %2127 = vadd.xlane.f32.xlu0 %v2126
  %v2128 = vpop.xlane.xlu0 %2127
  %v2129 = vsel %vm2017, %v2093, 0.0
  %2130 = vadd.xlane.f32.xlu0 %v2129
  %v2131 = vpop.xlane.xlu0 %2130
  %v2132 = vsel %vm2017, %v2095, 0.0
  %2133 = vadd.xlane.f32.xlu0 %v2132
  %v2134 = vpop.xlane.xlu0 %2133
  %v2135 = vsel %vm2017, %v2097, 0.0
  %2136 = vadd.xlane.f32.xlu0 %v2135
  %v2137 = vpop.xlane.xlu0 %2136
  %v2138 = vsel %vm2017, %v2099, 0.0
  %2139 = vadd.xlane.f32.xlu0 %v2138
  %v2140 = vpop.xlane.xlu0 %2139
  %v2141 = vsel %vm2017, %v2101, 0.0
  %2142 = vadd.xlane.f32.xlu0 %v2141
  %v2143 = vpop.xlane.xlu0 %2142
  %v2144 = vsel %vm2017, %v2103, 0.0
  %2145 = vadd.xlane.f32.xlu0 %v2144
  %v2146 = vpop.xlane.xlu0 %2145
  %v2147 = vsel %vm2017, %v2105, 0.0
  %2148 = vadd.xlane.f32.xlu0 %v2147
  %v2149 = vpop.xlane.xlu0 %2148
  %v2150 = vsel %vm2017, %v2107, 0.0
  %2151 = vadd.xlane.f32.xlu0 %v2150
  %v2152 = vpop.xlane.xlu0 %2151
  %v2153 = vsel %vm2017, %v2109, 0.0
  %2154 = vadd.xlane.f32.xlu0 %v2153
  %v2155 = vpop.xlane.xlu0 %2154
  %v2156 = vsel %vm2017, %v2111, 0.0
  %2157 = vadd.xlane.f32.xlu0 %v2156
  %v2158 = vpop.xlane.xlu0 %2157
  %v2159 = vsel %vm2017, %v2113, 0.0
  %2160 = vadd.xlane.f32.xlu0 %v2159
  %v2161 = vpop.xlane.xlu0 %2160
  %v2162 = vlog2.pop %v2116
  %v2163 = vmul.f32 %v2162, 0.6931472
  %v2164 = vlog2.pop %v2119
  %v2165 = vmul.f32 %v2164, 0.6931472
  %v2166 = vlog2.pop %v2122
  %v2167 = vmul.f32 %v2166, 0.6931472
  %v2168 = vlog2.pop %v2125
  %v2169 = vmul.f32 %v2168, 0.6931472
  %v2170 = vlog2.pop %v2128
  %v2171 = vmul.f32 %v2170, 0.6931472
  %v2172 = vlog2.pop %v2131
  %v2173 = vmul.f32 %v2172, 0.6931472
  %v2174 = vlog2.pop %v2134
  %v2175 = vmul.f32 %v2174, 0.6931472
  %v2176 = vlog2.pop %v2137
  %v2177 = vmul.f32 %v2176, 0.6931472
  %v2178 = vlog2.pop %v2140
  %v2179 = vmul.f32 %v2178, 0.6931472
  %v2180 = vlog2.pop %v2143
  %v2181 = vmul.f32 %v2180, 0.6931472
  %v2182 = vlog2.pop %v2146
  %v2183 = vmul.f32 %v2182, 0.6931472
  %v2184 = vlog2.pop %v2149
  %v2185 = vmul.f32 %v2184, 0.6931472
  %v2186 = vlog2.pop %v2152
  %v2187 = vmul.f32 %v2186, 0.6931472
  %v2188 = vlog2.pop %v2155
  %v2189 = vmul.f32 %v2188, 0.6931472
  %v2190 = vlog2.pop %v2158
  %v2191 = vmul.f32 %v2190, 0.6931472
  %v2192 = vlog2.pop %v2161
  %v2193 = vmul.f32 %v2192, 0.6931472
  %v2194 = vsub.f32 %v2066, %v2163
  %v2195 = vsub.f32 %v2067, %v2165
  %v2196 = vsub.f32 %v2068, %v2167
  %v2197 = vsub.f32 %v2069, %v2169
  %v2198 = vsub.f32 %v2070, %v2171
  %v2199 = vsub.f32 %v2071, %v2173
  %v2200 = vsub.f32 %v2072, %v2175
  %v2201 = vsub.f32 %v2073, %v2177
  %v2202 = vsub.f32 %v2074, %v2179
  %v2203 = vsub.f32 %v2075, %v2181
  %v2204 = vsub.f32 %v2076, %v2183
  %v2205 = vsub.f32 %v2077, %v2185
  %v2206 = vsub.f32 %v2078, %v2187
  %v2207 = vsub.f32 %v2079, %v2189
  %v2208 = vsub.f32 %v2080, %v2191
  %v2209 = vsub.f32 %v2081, %v2193
  %2210 = vst.msk [vmem:[%s4] sm:$0xff] %vm2017, %v2194
  %2211 = vst.msk [vmem:[%s4 + $0x8] sm:$0xff] %vm2017, %v2195
  %2212 = vst.msk [vmem:[%s4 + $0x10] sm:$0xff] %vm2017, %v2196
  %2213 = vst.msk [vmem:[%s4 + $0x18] sm:$0xff] %vm2017, %v2197
  %2214 = vst.msk [vmem:[%s4 + $0x20] sm:$0xff] %vm2017, %v2198
  %2215 = vst.msk [vmem:[%s4 + $0x28] sm:$0xff] %vm2017, %v2199
  %2216 = vst.msk [vmem:[%s4 + $0x30] sm:$0xff] %vm2017, %v2200
  %2217 = vst.msk [vmem:[%s4 + $0x38] sm:$0xff] %vm2017, %v2201
  %2218 = vst.msk [vmem:[%s4 + $0x40] sm:$0xff] %vm2017, %v2202
  %2219 = vst.msk [vmem:[%s4 + $0x48] sm:$0xff] %vm2017, %v2203
  %2220 = vst.msk [vmem:[%s4 + $0x50] sm:$0xff] %vm2017, %v2204
  %2221 = vst.msk [vmem:[%s4 + $0x58] sm:$0xff] %vm2017, %v2205
  %2222 = vst.msk [vmem:[%s4 + $0x60] sm:$0xff] %vm2017, %v2206
  %2223 = vst.msk [vmem:[%s4 + $0x68] sm:$0xff] %vm2017, %v2207
  %2224 = vst.msk [vmem:[%s4 + $0x70] sm:$0xff] %vm2017, %v2208
  %2225 = vst.msk [vmem:[%s4 + $0x78] sm:$0xff] %vm2017, %v2209
  // Predicated region
  $region22: #{network_forward.3} parent=0 // pred_check
    _
  $region23: #{network_forward.3} parent=0 // pred_check_branch
    %2227 = sbr.rel (0) target = $region25
  $region24: #{network_forward.3} parent=0 // pred_region
    _
  $region25: #{network_forward.3} parent=0 // pred_fallthru
    _
  // Predicated region
  $region26: #{network_forward.3} parent=0 // pred_check
    _
  $region27: #{network_forward.3} parent=0 // pred_check_branch
    %2229 = sbr.rel (0) target = $region29
  $region28: #{network_forward.3} parent=0 // pred_region
    _
  $region29: #{network_forward.3} parent=0 // pred_fallthru
    _

</llo_original>
